<compile_context>
chip_gen: v7x
topology: tpu7x:2x2x1
jax: 0.10.0
libtpu: 0.0.40
codegen_flags: <defaults>
</compile_context>

<pallas_src>
import numpy as np
import jax
import jax.numpy as jnp
from jax import lax
from jax.experimental import pallas as pl
from jax.experimental.pallas import tpu as pltpu

# ---------------- configuration (small, consistent with the module) ----------------
S = 8                                   # sequence length (dim 0)
B = 2                                   # batch (dim 1)
NUM_CONT = 4                            # num_continuous_features
CAT_VOCABS = (7, 5)                     # one nn.Embedding per categorical feature
EMB_PER_CAT = 4
EMB_DIM = EMB_PER_CAT * len(CAT_VOCABS) # embedding_dim = 8
F_IN = NUM_CONT + EMB_DIM               # encoder input features = 12
D_MODEL = 32
N_HEADS = 4
HEAD_DIM = D_MODEL // N_HEADS
D_FF = 4 * D_MODEL
N_LAYERS = 2
OUT_SIZE = 3
OUT_PAD = 128                           # lane-dense output width (sliced in wrapper)
LN_EPS = 1e-5                           # PyTorch LayerNorm default eps


def _layernorm(x, gamma, beta):
    mu = jnp.mean(x, axis=-1, keepdims=True)
    var = jnp.mean((x - mu) ** 2, axis=-1, keepdims=True)
    return (x - mu) * lax.rsqrt(var + LN_EPS) * gamma + beta


# ------------------------------- Pallas kernel -------------------------------------
def transformer_kernel(x_ref, add_ref, enc_w_ref,
                       qkvw_ref, qkvb_ref, outw_ref, vec_ref,
                       ff1w_ref, ff1b_ref, ff2w_ref,
                       decw_ref, decb_ref, o_ref):
    # input encoder + (positional encoding + encoder bias) folded slab
    h_all = jnp.dot(x_ref[...], enc_w_ref[...],
                    preferred_element_type=jnp.float32) + add_ref[...]

    scale = 1.0 / float(np.sqrt(HEAD_DIM))

    # Keep each batch as its own contiguous sublane-aligned (S, D_MODEL) block;
    # batches never interact, so no re-concatenation is needed anywhere.
    hs = [h_all[b * S:(b + 1) * S, :] for b in range(B)]

    for l in range(N_LAYERS):                      # static unroll over layers
        r = l * 6                                  # row base into packed vec params
        for b in range(B):                         # static unroll over batch blocks
            h = hs[b]                              # (S, D_MODEL)

            # ------------ multi-head self-attention (per-head weights) ------------
            attn = None
            for hh in range(N_HEADS):              # static unroll over heads
                iq = (l * 3 + 0) * N_HEADS + hh
                ik = (l * 3 + 1) * N_HEADS + hh
                iv = (l * 3 + 2) * N_HEADS + hh
                q = jnp.dot(h, qkvw_ref[iq],
                            preferred_element_type=jnp.float32) + qkvb_ref[iq:iq + 1, :]
                k = jnp.dot(h, qkvw_ref[ik],
                            preferred_element_type=jnp.float32) + qkvb_ref[ik:ik + 1, :]
                v = jnp.dot(h, qkvw_ref[iv],
                            preferred_element_type=jnp.float32) + qkvb_ref[iv:iv + 1, :]

                # q @ k^T without materializing a transpose (contract dim 1 of both)
                sc = lax.dot_general(q, k, (((1,), (1,)), ((), ())),
                                     preferred_element_type=jnp.float32) * scale
                sc = sc - jnp.max(sc, axis=-1, keepdims=True)
                p = jnp.exp(sc)
                p = p * pl.reciprocal(jnp.sum(p, axis=-1, keepdims=True), approx=True)

                ctx = jnp.dot(p, v, preferred_element_type=jnp.float32)   # (S, HEAD_DIM)
                proj = jnp.dot(ctx, outw_ref[l * N_HEADS + hh],
                               preferred_element_type=jnp.float32)        # (S, D_MODEL)
                attn = proj if attn is None else attn + proj

            attn = attn + vec_ref[r:r + 1, :]                              # out-proj bias
            h = _layernorm(h + attn, vec_ref[r + 1:r + 2, :], vec_ref[r + 2:r + 3, :])

            # ------------------------ feed-forward (ReLU) --------------------------
            f = jnp.dot(h, ff1w_ref[l],
                        preferred_element_type=jnp.float32) + ff1b_ref[l:l + 1, :]
            f = jnp.maximum(f, 0.0)
            f = jnp.dot(f, ff2w_ref[l],
                        preferred_element_type=jnp.float32) + vec_ref[r + 3:r + 4, :]
            h = _layernorm(h + f, vec_ref[r + 4:r + 5, :], vec_ref[r + 5:r + 6, :])
            hs[b] = h

    # out[:, -1, :] in the PyTorch code -> last batch block (batch_first=False).
    # Lane-dense (S, 128) output slab; wrapper slices [:, :OUT_SIZE].
    o_ref[...] = jnp.dot(hs[B - 1], decw_ref[...],
                         preferred_element_type=jnp.float32) + decb_ref[...]


# ------------------------------- glue (plain JAX) ----------------------------------
def positional_encoding(seq_len, d):
    pos = np.arange(seq_len, dtype=np.float32)[:, None]
    div = np.exp(np.arange(0, d, 2, dtype=np.float32) * (-np.log(10000.0) / d))
    pe = np.zeros((seq_len, d), dtype=np.float32)
    pe[:, 0::2] = np.sin(pos * div)
    pe[:, 1::2] = np.cos(pos * div)
    return jnp.asarray(pe)


def process_embeddings(tables, x_cat, x_cont):
    # Assumed semantics of the (undefined) process_embeddings helper: embed each
    # categorical column with its nn.Embedding and concat with continuous features.
    embs = [tables[i][x_cat[..., i]] for i in range(len(tables))]
    return jnp.concatenate([x_cont] + embs, axis=-1)              # (S, B, F_IN)


def pack_params(p):
    """Repack module parameters into the head-split / lane-friendly kernel layout."""
    # q/k/v weights: (L, D, 3D) with columns [q|k|v], each head-major
    w = p['in_w'].reshape(N_LAYERS, D_MODEL, 3, N_HEADS, HEAD_DIM)
    qkv_w = jnp.transpose(w, (0, 2, 3, 1, 4)).reshape(
        N_LAYERS * 3 * N_HEADS, D_MODEL, HEAD_DIM)
    qkv_b = p['in_b'].reshape(N_LAYERS * 3 * N_HEADS, HEAD_DIM)

    # output projection split by input-rows per head: (L, D, D) -> (L*H, HEAD_DIM, D)
    outw_h = p['out_w'].reshape(N_LAYERS, N_HEADS, HEAD_DIM, D_MODEL).reshape(
        N_LAYERS * N_HEADS, HEAD_DIM, D_MODEL)

    # all (L, D_MODEL)-shaped vectors packed into one slab:
    # rows per layer: [out_b, ln1_w, ln1_b, ff2_b, ln2_w, ln2_b]
    vec = jnp.stack([p['out_b'], p['ln1_w'], p['ln1_b'],
                     p['ff2_b'], p['ln2_w'], p['ln2_b']], axis=1)
    vec = vec.reshape(N_LAYERS * 6, D_MODEL)

    # decoder padded to a lane-dense 128-wide slab
    dec_w = jnp.zeros((D_MODEL, OUT_PAD), jnp.float32).at[:, :OUT_SIZE].set(p['dec_w'])
    dec_b = jnp.zeros((1, OUT_PAD), jnp.float32).at[:, :OUT_SIZE].set(p['dec_b'])
    return qkv_w, qkv_b, outw_h, vec, dec_w, dec_b


def transformer_base_forward(x_cont, x_cat, p):
    x_comb = process_embeddings(p['emb_tables'], x_cat, x_cont)   # (S, B, F_IN)
    pe = positional_encoding(S, D_MODEL)                          # (S, D_MODEL)

    # seq-first (S,B,F) -> batch-major 2-D slab (B*S, F) for the kernel
    x2 = jnp.transpose(x_comb, (1, 0, 2)).reshape(B * S, F_IN)
    # positional encoding + encoder bias folded into one additive slab (saves one
    # input and one vector add inside the kernel); dropout is identity (eval)
    add_slab = jnp.tile(pe, (B, 1)) + p['enc_b']                  # (B*S, D_MODEL)

    qkv_w, qkv_b, outw_h, vec, dec_w, dec_b = pack_params(p)

    inputs = [x2, add_slab, p['enc_w'], qkv_w, qkv_b, outw_h, vec,
              p['ff1_w'], p['ff1_b'], p['ff2_w'], dec_w, dec_b]

    vmem = pl.BlockSpec(memory_space=pltpu.MemorySpace.VMEM)
    # Single invocation, no grid: total resident footprint is tens of KB, far under
    # the scoped-VMEM limit on every generation; nothing to pipeline at these sizes.
    out_pad = pl.pallas_call(
        transformer_kernel,
        out_shape=jax.ShapeDtypeStruct((S, OUT_PAD), jnp.float32),
        in_specs=[vmem] * len(inputs),
        out_specs=vmem,
    )(*inputs)
    return out_pad[:, :OUT_SIZE]


# ---------------------------- deterministic parameters -----------------------------
def init_params(key):
    ks = iter(jax.random.split(key, 64))

    def rnd(shape, scale=0.05):
        return (scale * jax.random.normal(next(ks), shape)).astype(jnp.float32)

    p = {}
    p['emb_tables'] = [rnd((v, EMB_PER_CAT), 0.1) for v in CAT_VOCABS]
    # NOTE: linear weights stored already transposed to (in, out) layout (synthetic init).
    p['enc_w'] = rnd((F_IN, D_MODEL)); p['enc_b'] = rnd((1, D_MODEL))
    p['in_w'] = rnd((N_LAYERS, D_MODEL, 3 * D_MODEL)); p['in_b'] = rnd((N_LAYERS, 3 * D_MODEL))
    p['out_w'] = rnd((N_LAYERS, D_MODEL, D_MODEL));    p['out_b'] = rnd((N_LAYERS, D_MODEL))
    p['ln1_w'] = jnp.ones((N_LAYERS, D_MODEL), jnp.float32)
    p['ln1_b'] = jnp.zeros((N_LAYERS, D_MODEL), jnp.float32)
    p['ff1_w'] = rnd((N_LAYERS, D_MODEL, D_FF));       p['ff1_b'] = rnd((N_LAYERS, D_FF))
    p['ff2_w'] = rnd((N_LAYERS, D_FF, D_MODEL));       p['ff2_b'] = rnd((N_LAYERS, D_MODEL))
    p['ln2_w'] = jnp.ones((N_LAYERS, D_MODEL), jnp.float32)
    p['ln2_b'] = jnp.zeros((N_LAYERS, D_MODEL), jnp.float32)
    p['dec_w'] = rnd((D_MODEL, OUT_SIZE)); p['dec_b'] = rnd((1, OUT_SIZE))
    return p


# ------------------------------- pure-JAX reference --------------------------------
def reference_forward(x_cont, x_cat, p):
    # TODO(synk): dropout layers are treated as identity (eval/inference mode).
    x_comb = process_embeddings(p['emb_tables'], x_cat, x_cont)   # (S, B, F_IN)
    pe = positional_encoding(S, D_MODEL)
    h = x_comb @ p['enc_w'] + p['enc_b'][0]
    h = h + pe[:, None, :]
    for l in range(N_LAYERS):
        qkv = h @ p['in_w'][l] + p['in_b'][l]
        q, k, v = jnp.split(qkv, 3, axis=-1)
        qh = q.reshape(S, B, N_HEADS, HEAD_DIM)
        kh = k.reshape(S, B, N_HEADS, HEAD_DIM)
        vh = v.reshape(S, B, N_HEADS, HEAD_DIM)
        sc = jnp.einsum('sbhd,tbhd->bhst', qh, kh) / np.sqrt(HEAD_DIM)
        pr = jax.nn.softmax(sc, axis=-1)
        ctx = jnp.einsum('bhst,tbhd->sbhd', pr, vh).reshape(S, B, D_MODEL)
        attn = ctx @ p['out_w'][l] + p['out_b'][l]
        h = _layernorm(h + attn, p['ln1_w'][l], p['ln1_b'][l])
        f = jax.nn.relu(h @ p['ff1_w'][l] + p['ff1_b'][l])
        f = f @ p['ff2_w'][l] + p['ff2_b'][l]
        h = _layernorm(h + f, p['ln2_w'][l], p['ln2_b'][l])
    last = h[:, -1, :]
    return last @ p['dec_w'] + p['dec_b'][0]


# -------------------------------------- main ---------------------------------------
if __name__ == "__main__":
    key = jax.random.PRNGKey(0)
    kp, kc, kcat = jax.random.split(key, 3)
    params = init_params(kp)

    x_continuous = jax.random.normal(kc, (S, B, NUM_CONT), dtype=jnp.float32)
    x_categorical = jnp.stack(
        [jax.random.randint(jax.random.fold_in(kcat, i), (S, B), 0, CAT_VOCABS[i])
         for i in range(len(CAT_VOCABS))], axis=-1)

    out = transformer_base_forward(x_continuous, x_categorical, params)
    out = jax.block_until_ready(out)

    ref = reference_forward(x_continuous, x_categorical, params)
    # Tolerance tightened from 5e-2 to 1e-3 (per review); the small slack absorbs the
    # approx-reciprocal softmax normalization while still verifying the head-split /
    # sum-of-projections restructuring.
    np.testing.assert_allclose(np.asarray(out), np.asarray(ref), rtol=1e-3, atol=1e-3)

    assert out.shape == (S, OUT_SIZE)
    print("KERNEL_OK")
</pallas_src>

<mosaic_0001>
module attributes {stable_mosaic.version = 11 : i64} {
  func.func @transformer_kernel(%arg0: memref<16x12xf32, #tpu.memory_space<vmem>>, %arg1: memref<16x32xf32, #tpu.memory_space<vmem>>, %arg2: memref<12x32xf32, #tpu.memory_space<vmem>>, %arg3: memref<24x32x8xf32, #tpu.memory_space<vmem>>, %arg4: memref<24x8xf32, #tpu.memory_space<vmem>>, %arg5: memref<8x8x32xf32, #tpu.memory_space<vmem>>, %arg6: memref<12x32xf32, #tpu.memory_space<vmem>>, %arg7: memref<2x32x128xf32, #tpu.memory_space<vmem>>, %arg8: memref<2x128xf32, #tpu.memory_space<vmem>>, %arg9: memref<2x128x32xf32, #tpu.memory_space<vmem>>, %arg10: memref<32x128xf32, #tpu.memory_space<vmem>>, %arg11: memref<1x128xf32, #tpu.memory_space<vmem>>, %arg12: memref<8x128xf32, #tpu.memory_space<vmem>>) attributes {dimension_semantics = [], scalar_prefetch = 0 : i64, scratch_operands = 0 : i64, tpu.core_type = #tpu.core_type<tc>} {
    %c0 = arith.constant 0 : index
    %c0_0 = arith.constant 0 : index
    %0 = vector.load %arg0[%c0, %c0_0] : memref<16x12xf32, #tpu.memory_space<vmem>>, vector<16x12xf32>
    %c0_1 = arith.constant 0 : index
    %c0_2 = arith.constant 0 : index
    %1 = vector.load %arg2[%c0_1, %c0_2] : memref<12x32xf32, #tpu.memory_space<vmem>>, vector<12x32xf32>
    %cst = arith.constant dense<0.000000e+00> : vector<16x32xf32>
    %2 = tpu.matmul %0, %1, %cst {dimension_numbers = #tpu.dot_dimension_numbers<[1], [0], [0], [1], [0, 0, 1, 1], [], []>} : vector<16x12xf32>, vector<12x32xf32>, vector<16x32xf32> -> vector<16x32xf32>
    %c0_3 = arith.constant 0 : index
    %c0_4 = arith.constant 0 : index
    %3 = vector.load %arg1[%c0_3, %c0_4] : memref<16x32xf32, #tpu.memory_space<vmem>>, vector<16x32xf32>
    %4 = arith.addf %2, %3 : vector<16x32xf32>
    %5 = vector.extract_strided_slice %4 {offsets = [8, 0], sizes = [8, 32], strides = [1, 1]} : vector<16x32xf32> to vector<8x32xf32>
    %c0_5 = arith.constant 0 : index
    %c0_6 = arith.constant 0 : index
    %c0_7 = arith.constant 0 : index
    %6 = vector.load %arg3[%c0_5, %c0_6, %c0_7] : memref<24x32x8xf32, #tpu.memory_space<vmem>>, vector<1x32x8xf32>
    %7 = vector.shape_cast %6 : vector<1x32x8xf32> to vector<32x8xf32>
    %cst_8 = arith.constant dense<0.000000e+00> : vector<8x8xf32>
    %8 = tpu.matmul %5, %7, %cst_8 {dimension_numbers = #tpu.dot_dimension_numbers<[1], [0], [0], [1], [0, 0, 1, 1], [], []>} : vector<8x32xf32>, vector<32x8xf32>, vector<8x8xf32> -> vector<8x8xf32>
    %c0_9 = arith.constant 0 : index
    %c0_10 = arith.constant 0 : index
    %9 = vector.load %arg4[%c0_9, %c0_10] : memref<24x8xf32, #tpu.memory_space<vmem>>, vector<1x8xf32>
    %10 = vector.broadcast %9 : vector<1x8xf32> to vector<8x8xf32>
    %11 = arith.addf %8, %10 : vector<8x8xf32>
    %c4 = arith.constant 4 : index
    %c0_11 = arith.constant 0 : index
    %c0_12 = arith.constant 0 : index
    %12 = vector.load %arg3[%c4, %c0_11, %c0_12] : memref<24x32x8xf32, #tpu.memory_space<vmem>>, vector<1x32x8xf32>
    %13 = vector.shape_cast %12 : vector<1x32x8xf32> to vector<32x8xf32>
    %cst_13 = arith.constant dense<0.000000e+00> : vector<8x8xf32>
    %14 = tpu.matmul %5, %13, %cst_13 {dimension_numbers = #tpu.dot_dimension_numbers<[1], [0], [0], [1], [0, 0, 1, 1], [], []>} : vector<8x32xf32>, vector<32x8xf32>, vector<8x8xf32> -> vector<8x8xf32>
    %c4_14 = arith.constant 4 : index
    %c0_15 = arith.constant 0 : index
    %15 = vector.load %arg4[%c4_14, %c0_15] : memref<24x8xf32, #tpu.memory_space<vmem>>, vector<1x8xf32>
    %16 = vector.broadcast %15 : vector<1x8xf32> to vector<8x8xf32>
    %17 = arith.addf %14, %16 : vector<8x8xf32>
    %c8 = arith.constant 8 : index
    %c0_16 = arith.constant 0 : index
    %c0_17 = arith.constant 0 : index
    %18 = vector.load %arg3[%c8, %c0_16, %c0_17] : memref<24x32x8xf32, #tpu.memory_space<vmem>>, vector<1x32x8xf32>
    %19 = vector.shape_cast %18 : vector<1x32x8xf32> to vector<32x8xf32>
    %cst_18 = arith.constant dense<0.000000e+00> : vector<8x8xf32>
    %20 = tpu.matmul %5, %19, %cst_18 {dimension_numbers = #tpu.dot_dimension_numbers<[1], [0], [0], [1], [0, 0, 1, 1], [], []>} : vector<8x32xf32>, vector<32x8xf32>, vector<8x8xf32> -> vector<8x8xf32>
    %c8_19 = arith.constant 8 : index
    %c0_20 = arith.constant 0 : index
    %21 = vector.load %arg4[%c8_19, %c0_20] : memref<24x8xf32, #tpu.memory_space<vmem>>, vector<1x8xf32>
    %22 = vector.broadcast %21 : vector<1x8xf32> to vector<8x8xf32>
    %23 = arith.addf %20, %22 : vector<8x8xf32>
    %cst_21 = arith.constant dense<0.000000e+00> : vector<8x8xf32>
    %24 = tpu.matmul %11, %17, %cst_21 {dimension_numbers = #tpu.dot_dimension_numbers<[1], [1], [0], [0], [0, 0, 1, 0], [], []>} : vector<8x8xf32>, vector<8x8xf32>, vector<8x8xf32> -> vector<8x8xf32>
    %cst_22 = arith.constant 0.353553385 : f32
    %25 = vector.broadcast %cst_22 : f32 to vector<8x8xf32>
    %26 = arith.mulf %24, %25 : vector<8x8xf32>
    %cst_23 = arith.constant dense<0xFF800000> : vector<8xf32>
    %27 = vector.multi_reduction <maximumf>, %26, %cst_23 [1] : vector<8x8xf32> to vector<8xf32>
    %28 = vector.shape_cast %27 : vector<8xf32> to vector<8x1xf32>
    %29 = vector.broadcast %28 : vector<8x1xf32> to vector<8x8xf32>
    %30 = arith.subf %26, %29 : vector<8x8xf32>
    %31 = math.exp %30 : vector<8x8xf32>
    %cst_24 = arith.constant dense<0.000000e+00> : vector<8xf32>
    %32 = vector.multi_reduction <add>, %31, %cst_24 [1] : vector<8x8xf32> to vector<8xf32>
    %33 = vector.shape_cast %32 : vector<8xf32> to vector<8x1xf32>
    %34 = tpu.reciprocal %33 {approx = true} : vector<8x1xf32> -> vector<8x1xf32>
    %35 = vector.broadcast %34 : vector<8x1xf32> to vector<8x8xf32>
    %36 = arith.mulf %31, %35 : vector<8x8xf32>
    %cst_25 = arith.constant dense<0.000000e+00> : vector<8x8xf32>
    %37 = tpu.matmul %36, %23, %cst_25 {dimension_numbers = #tpu.dot_dimension_numbers<[1], [0], [0], [1], [0, 0, 1, 1], [], []>} : vector<8x8xf32>, vector<8x8xf32>, vector<8x8xf32> -> vector<8x8xf32>
    %c0_26 = arith.constant 0 : index
    %c0_27 = arith.constant 0 : index
    %c0_28 = arith.constant 0 : index
    %38 = vector.load %arg5[%c0_26, %c0_27, %c0_28] : memref<8x8x32xf32, #tpu.memory_space<vmem>>, vector<1x8x32xf32>
    %39 = vector.shape_cast %38 : vector<1x8x32xf32> to vector<8x32xf32>
    %cst_29 = arith.constant dense<0.000000e+00> : vector<8x32xf32>
    %40 = tpu.matmul %37, %39, %cst_29 {dimension_numbers = #tpu.dot_dimension_numbers<[1], [0], [0], [1], [0, 0, 1, 1], [], []>} : vector<8x8xf32>, vector<8x32xf32>, vector<8x32xf32> -> vector<8x32xf32>
    %c1 = arith.constant 1 : index
    %c0_30 = arith.constant 0 : index
    %c0_31 = arith.constant 0 : index
    %41 = vector.load %arg3[%c1, %c0_30, %c0_31] : memref<24x32x8xf32, #tpu.memory_space<vmem>>, vector<1x32x8xf32>
    %42 = vector.shape_cast %41 : vector<1x32x8xf32> to vector<32x8xf32>
    %cst_32 = arith.constant dense<0.000000e+00> : vector<8x8xf32>
    %43 = tpu.matmul %5, %42, %cst_32 {dimension_numbers = #tpu.dot_dimension_numbers<[1], [0], [0], [1], [0, 0, 1, 1], [], []>} : vector<8x32xf32>, vector<32x8xf32>, vector<8x8xf32> -> vector<8x8xf32>
    %c1_33 = arith.constant 1 : index
    %c0_34 = arith.constant 0 : index
    %44 = vector.load %arg4[%c1_33, %c0_34] : memref<24x8xf32, #tpu.memory_space<vmem>>, vector<1x8xf32>
    %45 = vector.broadcast %44 : vector<1x8xf32> to vector<8x8xf32>
    %46 = arith.addf %43, %45 : vector<8x8xf32>
    %c5 = arith.constant 5 : index
    %c0_35 = arith.constant 0 : index
    %c0_36 = arith.constant 0 : index
    %47 = vector.load %arg3[%c5, %c0_35, %c0_36] : memref<24x32x8xf32, #tpu.memory_space<vmem>>, vector<1x32x8xf32>
    %48 = vector.shape_cast %47 : vector<1x32x8xf32> to vector<32x8xf32>
    %cst_37 = arith.constant dense<0.000000e+00> : vector<8x8xf32>
    %49 = tpu.matmul %5, %48, %cst_37 {dimension_numbers = #tpu.dot_dimension_numbers<[1], [0], [0], [1], [0, 0, 1, 1], [], []>} : vector<8x32xf32>, vector<32x8xf32>, vector<8x8xf32> -> vector<8x8xf32>
    %c5_38 = arith.constant 5 : index
    %c0_39 = arith.constant 0 : index
    %50 = vector.load %arg4[%c5_38, %c0_39] : memref<24x8xf32, #tpu.memory_space<vmem>>, vector<1x8xf32>
    %51 = vector.broadcast %50 : vector<1x8xf32> to vector<8x8xf32>
    %52 = arith.addf %49, %51 : vector<8x8xf32>
    %c9 = arith.constant 9 : index
    %c0_40 = arith.constant 0 : index
    %c0_41 = arith.constant 0 : index
    %53 = vector.load %arg3[%c9, %c0_40, %c0_41] : memref<24x32x8xf32, #tpu.memory_space<vmem>>, vector<1x32x8xf32>
    %54 = vector.shape_cast %53 : vector<1x32x8xf32> to vector<32x8xf32>
    %cst_42 = arith.constant dense<0.000000e+00> : vector<8x8xf32>
    %55 = tpu.matmul %5, %54, %cst_42 {dimension_numbers = #tpu.dot_dimension_numbers<[1], [0], [0], [1], [0, 0, 1, 1], [], []>} : vector<8x32xf32>, vector<32x8xf32>, vector<8x8xf32> -> vector<8x8xf32>
    %c9_43 = arith.constant 9 : index
    %c0_44 = arith.constant 0 : index
    %56 = vector.load %arg4[%c9_43, %c0_44] : memref<24x8xf32, #tpu.memory_space<vmem>>, vector<1x8xf32>
    %57 = vector.broadcast %56 : vector<1x8xf32> to vector<8x8xf32>
    %58 = arith.addf %55, %57 : vector<8x8xf32>
    %cst_45 = arith.constant dense<0.000000e+00> : vector<8x8xf32>
    %59 = tpu.matmul %46, %52, %cst_45 {dimension_numbers = #tpu.dot_dimension_numbers<[1], [1], [0], [0], [0, 0, 1, 0], [], []>} : vector<8x8xf32>, vector<8x8xf32>, vector<8x8xf32> -> vector<8x8xf32>
    %cst_46 = arith.constant 0.353553385 : f32
    %60 = vector.broadcast %cst_46 : f32 to vector<8x8xf32>
    %61 = arith.mulf %59, %60 : vector<8x8xf32>
    %cst_47 = arith.constant dense<0xFF800000> : vector<8xf32>
    %62 = vector.multi_reduction <maximumf>, %61, %cst_47 [1] : vector<8x8xf32> to vector<8xf32>
    %63 = vector.shape_cast %62 : vector<8xf32> to vector<8x1xf32>
    %64 = vector.broadcast %63 : vector<8x1xf32> to vector<8x8xf32>
    %65 = arith.subf %61, %64 : vector<8x8xf32>
    %66 = math.exp %65 : vector<8x8xf32>
    %cst_48 = arith.constant dense<0.000000e+00> : vector<8xf32>
    %67 = vector.multi_reduction <add>, %66, %cst_48 [1] : vector<8x8xf32> to vector<8xf32>
    %68 = vector.shape_cast %67 : vector<8xf32> to vector<8x1xf32>
    %69 = tpu.reciprocal %68 {approx = true} : vector<8x1xf32> -> vector<8x1xf32>
    %70 = vector.broadcast %69 : vector<8x1xf32> to vector<8x8xf32>
    %71 = arith.mulf %66, %70 : vector<8x8xf32>
    %cst_49 = arith.constant dense<0.000000e+00> : vector<8x8xf32>
    %72 = tpu.matmul %71, %58, %cst_49 {dimension_numbers = #tpu.dot_dimension_numbers<[1], [0], [0], [1], [0, 0, 1, 1], [], []>} : vector<8x8xf32>, vector<8x8xf32>, vector<8x8xf32> -> vector<8x8xf32>
    %c1_50 = arith.constant 1 : index
    %c0_51 = arith.constant 0 : index
    %c0_52 = arith.constant 0 : index
    %73 = vector.load %arg5[%c1_50, %c0_51, %c0_52] : memref<8x8x32xf32, #tpu.memory_space<vmem>>, vector<1x8x32xf32>
    %74 = vector.shape_cast %73 : vector<1x8x32xf32> to vector<8x32xf32>
    %cst_53 = arith.constant dense<0.000000e+00> : vector<8x32xf32>
    %75 = tpu.matmul %72, %74, %cst_53 {dimension_numbers = #tpu.dot_dimension_numbers<[1], [0], [0], [1], [0, 0, 1, 1], [], []>} : vector<8x8xf32>, vector<8x32xf32>, vector<8x32xf32> -> vector<8x32xf32>
    %76 = arith.addf %40, %75 : vector<8x32xf32>
    %c2 = arith.constant 2 : index
    %c0_54 = arith.constant 0 : index
    %c0_55 = arith.constant 0 : index
    %77 = vector.load %arg3[%c2, %c0_54, %c0_55] : memref<24x32x8xf32, #tpu.memory_space<vmem>>, vector<1x32x8xf32>
    %78 = vector.shape_cast %77 : vector<1x32x8xf32> to vector<32x8xf32>
    %cst_56 = arith.constant dense<0.000000e+00> : vector<8x8xf32>
    %79 = tpu.matmul %5, %78, %cst_56 {dimension_numbers = #tpu.dot_dimension_numbers<[1], [0], [0], [1], [0, 0, 1, 1], [], []>} : vector<8x32xf32>, vector<32x8xf32>, vector<8x8xf32> -> vector<8x8xf32>
    %c2_57 = arith.constant 2 : index
    %c0_58 = arith.constant 0 : index
    %80 = vector.load %arg4[%c2_57, %c0_58] : memref<24x8xf32, #tpu.memory_space<vmem>>, vector<1x8xf32>
    %81 = vector.broadcast %80 : vector<1x8xf32> to vector<8x8xf32>
    %82 = arith.addf %79, %81 : vector<8x8xf32>
    %c6 = arith.constant 6 : index
    %c0_59 = arith.constant 0 : index
    %c0_60 = arith.constant 0 : index
    %83 = vector.load %arg3[%c6, %c0_59, %c0_60] : memref<24x32x8xf32, #tpu.memory_space<vmem>>, vector<1x32x8xf32>
    %84 = vector.shape_cast %83 : vector<1x32x8xf32> to vector<32x8xf32>
    %cst_61 = arith.constant dense<0.000000e+00> : vector<8x8xf32>
    %85 = tpu.matmul %5, %84, %cst_61 {dimension_numbers = #tpu.dot_dimension_numbers<[1], [0], [0], [1], [0, 0, 1, 1], [], []>} : vector<8x32xf32>, vector<32x8xf32>, vector<8x8xf32> -> vector<8x8xf32>
    %c6_62 = arith.constant 6 : index
    %c0_63 = arith.constant 0 : index
    %86 = vector.load %arg4[%c6_62, %c0_63] : memref<24x8xf32, #tpu.memory_space<vmem>>, vector<1x8xf32>
    %87 = vector.broadcast %86 : vector<1x8xf32> to vector<8x8xf32>
    %88 = arith.addf %85, %87 : vector<8x8xf32>
    %c10 = arith.constant 10 : index
    %c0_64 = arith.constant 0 : index
    %c0_65 = arith.constant 0 : index
    %89 = vector.load %arg3[%c10, %c0_64, %c0_65] : memref<24x32x8xf32, #tpu.memory_space<vmem>>, vector<1x32x8xf32>
    %90 = vector.shape_cast %89 : vector<1x32x8xf32> to vector<32x8xf32>
    %cst_66 = arith.constant dense<0.000000e+00> : vector<8x8xf32>
    %91 = tpu.matmul %5, %90, %cst_66 {dimension_numbers = #tpu.dot_dimension_numbers<[1], [0], [0], [1], [0, 0, 1, 1], [], []>} : vector<8x32xf32>, vector<32x8xf32>, vector<8x8xf32> -> vector<8x8xf32>
    %c10_67 = arith.constant 10 : index
    %c0_68 = arith.constant 0 : index
    %92 = vector.load %arg4[%c10_67, %c0_68] : memref<24x8xf32, #tpu.memory_space<vmem>>, vector<1x8xf32>
    %93 = vector.broadcast %92 : vector<1x8xf32> to vector<8x8xf32>
    %94 = arith.addf %91, %93 : vector<8x8xf32>
    %cst_69 = arith.constant dense<0.000000e+00> : vector<8x8xf32>
    %95 = tpu.matmul %82, %88, %cst_69 {dimension_numbers = #tpu.dot_dimension_numbers<[1], [1], [0], [0], [0, 0, 1, 0], [], []>} : vector<8x8xf32>, vector<8x8xf32>, vector<8x8xf32> -> vector<8x8xf32>
    %cst_70 = arith.constant 0.353553385 : f32
    %96 = vector.broadcast %cst_70 : f32 to vector<8x8xf32>
    %97 = arith.mulf %95, %96 : vector<8x8xf32>
    %cst_71 = arith.constant dense<0xFF800000> : vector<8xf32>
    %98 = vector.multi_reduction <maximumf>, %97, %cst_71 [1] : vector<8x8xf32> to vector<8xf32>
    %99 = vector.shape_cast %98 : vector<8xf32> to vector<8x1xf32>
    %100 = vector.broadcast %99 : vector<8x1xf32> to vector<8x8xf32>
    %101 = arith.subf %97, %100 : vector<8x8xf32>
    %102 = math.exp %101 : vector<8x8xf32>
    %cst_72 = arith.constant dense<0.000000e+00> : vector<8xf32>
    %103 = vector.multi_reduction <add>, %102, %cst_72 [1] : vector<8x8xf32> to vector<8xf32>
    %104 = vector.shape_cast %103 : vector<8xf32> to vector<8x1xf32>
    %105 = tpu.reciprocal %104 {approx = true} : vector<8x1xf32> -> vector<8x1xf32>
    %106 = vector.broadcast %105 : vector<8x1xf32> to vector<8x8xf32>
    %107 = arith.mulf %102, %106 : vector<8x8xf32>
    %cst_73 = arith.constant dense<0.000000e+00> : vector<8x8xf32>
    %108 = tpu.matmul %107, %94, %cst_73 {dimension_numbers = #tpu.dot_dimension_numbers<[1], [0], [0], [1], [0, 0, 1, 1], [], []>} : vector<8x8xf32>, vector<8x8xf32>, vector<8x8xf32> -> vector<8x8xf32>
    %c2_74 = arith.constant 2 : index
    %c0_75 = arith.constant 0 : index
    %c0_76 = arith.constant 0 : index
    %109 = vector.load %arg5[%c2_74, %c0_75, %c0_76] : memref<8x8x32xf32, #tpu.memory_space<vmem>>, vector<1x8x32xf32>
    %110 = vector.shape_cast %109 : vector<1x8x32xf32> to vector<8x32xf32>
    %cst_77 = arith.constant dense<0.000000e+00> : vector<8x32xf32>
    %111 = tpu.matmul %108, %110, %cst_77 {dimension_numbers = #tpu.dot_dimension_numbers<[1], [0], [0], [1], [0, 0, 1, 1], [], []>} : vector<8x8xf32>, vector<8x32xf32>, vector<8x32xf32> -> vector<8x32xf32>
    %112 = arith.addf %76, %111 : vector<8x32xf32>
    %c3 = arith.constant 3 : index
    %c0_78 = arith.constant 0 : index
    %c0_79 = arith.constant 0 : index
    %113 = vector.load %arg3[%c3, %c0_78, %c0_79] : memref<24x32x8xf32, #tpu.memory_space<vmem>>, vector<1x32x8xf32>
    %114 = vector.shape_cast %113 : vector<1x32x8xf32> to vector<32x8xf32>
    %cst_80 = arith.constant dense<0.000000e+00> : vector<8x8xf32>
    %115 = tpu.matmul %5, %114, %cst_80 {dimension_numbers = #tpu.dot_dimension_numbers<[1], [0], [0], [1], [0, 0, 1, 1], [], []>} : vector<8x32xf32>, vector<32x8xf32>, vector<8x8xf32> -> vector<8x8xf32>
    %c3_81 = arith.constant 3 : index
    %c0_82 = arith.constant 0 : index
    %116 = vector.load %arg4[%c3_81, %c0_82] : memref<24x8xf32, #tpu.memory_space<vmem>>, vector<1x8xf32>
    %117 = vector.broadcast %116 : vector<1x8xf32> to vector<8x8xf32>
    %118 = arith.addf %115, %117 : vector<8x8xf32>
    %c7 = arith.constant 7 : index
    %c0_83 = arith.constant 0 : index
    %c0_84 = arith.constant 0 : index
    %119 = vector.load %arg3[%c7, %c0_83, %c0_84] : memref<24x32x8xf32, #tpu.memory_space<vmem>>, vector<1x32x8xf32>
    %120 = vector.shape_cast %119 : vector<1x32x8xf32> to vector<32x8xf32>
    %cst_85 = arith.constant dense<0.000000e+00> : vector<8x8xf32>
    %121 = tpu.matmul %5, %120, %cst_85 {dimension_numbers = #tpu.dot_dimension_numbers<[1], [0], [0], [1], [0, 0, 1, 1], [], []>} : vector<8x32xf32>, vector<32x8xf32>, vector<8x8xf32> -> vector<8x8xf32>
    %c7_86 = arith.constant 7 : index
    %c0_87 = arith.constant 0 : index
    %122 = vector.load %arg4[%c7_86, %c0_87] : memref<24x8xf32, #tpu.memory_space<vmem>>, vector<1x8xf32>
    %123 = vector.broadcast %122 : vector<1x8xf32> to vector<8x8xf32>
    %124 = arith.addf %121, %123 : vector<8x8xf32>
    %c11 = arith.constant 11 : index
    %c0_88 = arith.constant 0 : index
    %c0_89 = arith.constant 0 : index
    %125 = vector.load %arg3[%c11, %c0_88, %c0_89] : memref<24x32x8xf32, #tpu.memory_space<vmem>>, vector<1x32x8xf32>
    %126 = vector.shape_cast %125 : vector<1x32x8xf32> to vector<32x8xf32>
    %cst_90 = arith.constant dense<0.000000e+00> : vector<8x8xf32>
    %127 = tpu.matmul %5, %126, %cst_90 {dimension_numbers = #tpu.dot_dimension_numbers<[1], [0], [0], [1], [0, 0, 1, 1], [], []>} : vector<8x32xf32>, vector<32x8xf32>, vector<8x8xf32> -> vector<8x8xf32>
    %c11_91 = arith.constant 11 : index
    %c0_92 = arith.constant 0 : index
    %128 = vector.load %arg4[%c11_91, %c0_92] : memref<24x8xf32, #tpu.memory_space<vmem>>, vector<1x8xf32>
    %129 = vector.broadcast %128 : vector<1x8xf32> to vector<8x8xf32>
    %130 = arith.addf %127, %129 : vector<8x8xf32>
    %cst_93 = arith.constant dense<0.000000e+00> : vector<8x8xf32>
    %131 = tpu.matmul %118, %124, %cst_93 {dimension_numbers = #tpu.dot_dimension_numbers<[1], [1], [0], [0], [0, 0, 1, 0], [], []>} : vector<8x8xf32>, vector<8x8xf32>, vector<8x8xf32> -> vector<8x8xf32>
    %cst_94 = arith.constant 0.353553385 : f32
    %132 = vector.broadcast %cst_94 : f32 to vector<8x8xf32>
    %133 = arith.mulf %131, %132 : vector<8x8xf32>
    %cst_95 = arith.constant dense<0xFF800000> : vector<8xf32>
    %134 = vector.multi_reduction <maximumf>, %133, %cst_95 [1] : vector<8x8xf32> to vector<8xf32>
    %135 = vector.shape_cast %134 : vector<8xf32> to vector<8x1xf32>
    %136 = vector.broadcast %135 : vector<8x1xf32> to vector<8x8xf32>
    %137 = arith.subf %133, %136 : vector<8x8xf32>
    %138 = math.exp %137 : vector<8x8xf32>
    %cst_96 = arith.constant dense<0.000000e+00> : vector<8xf32>
    %139 = vector.multi_reduction <add>, %138, %cst_96 [1] : vector<8x8xf32> to vector<8xf32>
    %140 = vector.shape_cast %139 : vector<8xf32> to vector<8x1xf32>
    %141 = tpu.reciprocal %140 {approx = true} : vector<8x1xf32> -> vector<8x1xf32>
    %142 = vector.broadcast %141 : vector<8x1xf32> to vector<8x8xf32>
    %143 = arith.mulf %138, %142 : vector<8x8xf32>
    %cst_97 = arith.constant dense<0.000000e+00> : vector<8x8xf32>
    %144 = tpu.matmul %143, %130, %cst_97 {dimension_numbers = #tpu.dot_dimension_numbers<[1], [0], [0], [1], [0, 0, 1, 1], [], []>} : vector<8x8xf32>, vector<8x8xf32>, vector<8x8xf32> -> vector<8x8xf32>
    %c3_98 = arith.constant 3 : index
    %c0_99 = arith.constant 0 : index
    %c0_100 = arith.constant 0 : index
    %145 = vector.load %arg5[%c3_98, %c0_99, %c0_100] : memref<8x8x32xf32, #tpu.memory_space<vmem>>, vector<1x8x32xf32>
    %146 = vector.shape_cast %145 : vector<1x8x32xf32> to vector<8x32xf32>
    %cst_101 = arith.constant dense<0.000000e+00> : vector<8x32xf32>
    %147 = tpu.matmul %144, %146, %cst_101 {dimension_numbers = #tpu.dot_dimension_numbers<[1], [0], [0], [1], [0, 0, 1, 1], [], []>} : vector<8x8xf32>, vector<8x32xf32>, vector<8x32xf32> -> vector<8x32xf32>
    %148 = arith.addf %112, %147 : vector<8x32xf32>
    %c0_102 = arith.constant 0 : index
    %c0_103 = arith.constant 0 : index
    %149 = vector.load %arg6[%c0_102, %c0_103] : memref<12x32xf32, #tpu.memory_space<vmem>>, vector<1x32xf32>
    %150 = vector.broadcast %149 : vector<1x32xf32> to vector<8x32xf32>
    %151 = arith.addf %148, %150 : vector<8x32xf32>
    %152 = arith.addf %5, %151 : vector<8x32xf32>
    %c1_104 = arith.constant 1 : index
    %c0_105 = arith.constant 0 : index
    %153 = vector.load %arg6[%c1_104, %c0_105] : memref<12x32xf32, #tpu.memory_space<vmem>>, vector<1x32xf32>
    %c2_106 = arith.constant 2 : index
    %c0_107 = arith.constant 0 : index
    %154 = vector.load %arg6[%c2_106, %c0_107] : memref<12x32xf32, #tpu.memory_space<vmem>>, vector<1x32xf32>
    %cst_108 = arith.constant dense<0.000000e+00> : vector<8xf32>
    %155 = vector.multi_reduction <add>, %152, %cst_108 [1] : vector<8x32xf32> to vector<8xf32>
    %156 = vector.shape_cast %155 : vector<8xf32> to vector<8x1xf32>
    %cst_109 = arith.constant 3.200000e+01 : f32
    %157 = vector.broadcast %cst_109 : f32 to vector<8x1xf32>
    %158 = arith.divf %156, %157 : vector<8x1xf32>
    %159 = vector.broadcast %158 : vector<8x1xf32> to vector<8x32xf32>
    %160 = arith.subf %152, %159 : vector<8x32xf32>
    %161 = arith.mulf %160, %160 : vector<8x32xf32>
    %cst_110 = arith.constant dense<0.000000e+00> : vector<8xf32>
    %162 = vector.multi_reduction <add>, %161, %cst_110 [1] : vector<8x32xf32> to vector<8xf32>
    %163 = vector.shape_cast %162 : vector<8xf32> to vector<8x1xf32>
    %cst_111 = arith.constant 3.200000e+01 : f32
    %164 = vector.broadcast %cst_111 : f32 to vector<8x1xf32>
    %165 = arith.divf %163, %164 : vector<8x1xf32>
    %166 = vector.broadcast %158 : vector<8x1xf32> to vector<8x32xf32>
    %167 = arith.subf %152, %166 : vector<8x32xf32>
    %cst_112 = arith.constant 9.99999974E-6 : f32
    %168 = vector.broadcast %cst_112 : f32 to vector<8x1xf32>
    %169 = arith.addf %165, %168 : vector<8x1xf32>
    %170 = math.rsqrt %169 : vector<8x1xf32>
    %171 = vector.broadcast %170 : vector<8x1xf32> to vector<8x32xf32>
    %172 = arith.mulf %167, %171 : vector<8x32xf32>
    %173 = vector.broadcast %153 : vector<1x32xf32> to vector<8x32xf32>
    %174 = arith.mulf %172, %173 : vector<8x32xf32>
    %175 = vector.broadcast %154 : vector<1x32xf32> to vector<8x32xf32>
    %176 = arith.addf %174, %175 : vector<8x32xf32>
    %c0_113 = arith.constant 0 : index
    %c0_114 = arith.constant 0 : index
    %c0_115 = arith.constant 0 : index
    %177 = vector.load %arg7[%c0_113, %c0_114, %c0_115] : memref<2x32x128xf32, #tpu.memory_space<vmem>>, vector<1x32x128xf32>
    %178 = vector.shape_cast %177 : vector<1x32x128xf32> to vector<32x128xf32>
    %cst_116 = arith.constant dense<0.000000e+00> : vector<8x128xf32>
    %179 = tpu.matmul %176, %178, %cst_116 {dimension_numbers = #tpu.dot_dimension_numbers<[1], [0], [0], [1], [0, 0, 1, 1], [], []>} : vector<8x32xf32>, vector<32x128xf32>, vector<8x128xf32> -> vector<8x128xf32>
    %c0_117 = arith.constant 0 : index
    %c0_118 = arith.constant 0 : index
    %180 = vector.load %arg8[%c0_117, %c0_118] : memref<2x128xf32, #tpu.memory_space<vmem>>, vector<1x128xf32>
    %181 = vector.broadcast %180 : vector<1x128xf32> to vector<8x128xf32>
    %182 = arith.addf %179, %181 : vector<8x128xf32>
    %cst_119 = arith.constant 0.000000e+00 : f32
    %183 = vector.broadcast %cst_119 : f32 to vector<8x128xf32>
    %184 = arith.maximumf %182, %183 : vector<8x128xf32>
    %c0_120 = arith.constant 0 : index
    %c0_121 = arith.constant 0 : index
    %c0_122 = arith.constant 0 : index
    %185 = vector.load %arg9[%c0_120, %c0_121, %c0_122] : memref<2x128x32xf32, #tpu.memory_space<vmem>>, vector<1x128x32xf32>
    %186 = vector.shape_cast %185 : vector<1x128x32xf32> to vector<128x32xf32>
    %cst_123 = arith.constant dense<0.000000e+00> : vector<8x32xf32>
    %187 = tpu.matmul %184, %186, %cst_123 {dimension_numbers = #tpu.dot_dimension_numbers<[1], [0], [0], [1], [0, 0, 1, 1], [], []>} : vector<8x128xf32>, vector<128x32xf32>, vector<8x32xf32> -> vector<8x32xf32>
    %c3_124 = arith.constant 3 : index
    %c0_125 = arith.constant 0 : index
    %188 = vector.load %arg6[%c3_124, %c0_125] : memref<12x32xf32, #tpu.memory_space<vmem>>, vector<1x32xf32>
    %189 = vector.broadcast %188 : vector<1x32xf32> to vector<8x32xf32>
    %190 = arith.addf %187, %189 : vector<8x32xf32>
    %191 = arith.addf %176, %190 : vector<8x32xf32>
    %c4_126 = arith.constant 4 : index
    %c0_127 = arith.constant 0 : index
    %192 = vector.load %arg6[%c4_126, %c0_127] : memref<12x32xf32, #tpu.memory_space<vmem>>, vector<1x32xf32>
    %c5_128 = arith.constant 5 : index
    %c0_129 = arith.constant 0 : index
    %193 = vector.load %arg6[%c5_128, %c0_129] : memref<12x32xf32, #tpu.memory_space<vmem>>, vector<1x32xf32>
    %cst_130 = arith.constant dense<0.000000e+00> : vector<8xf32>
    %194 = vector.multi_reduction <add>, %191, %cst_130 [1] : vector<8x32xf32> to vector<8xf32>
    %195 = vector.shape_cast %194 : vector<8xf32> to vector<8x1xf32>
    %cst_131 = arith.constant 3.200000e+01 : f32
    %196 = vector.broadcast %cst_131 : f32 to vector<8x1xf32>
    %197 = arith.divf %195, %196 : vector<8x1xf32>
    %198 = vector.broadcast %197 : vector<8x1xf32> to vector<8x32xf32>
    %199 = arith.subf %191, %198 : vector<8x32xf32>
    %200 = arith.mulf %199, %199 : vector<8x32xf32>
    %cst_132 = arith.constant dense<0.000000e+00> : vector<8xf32>
    %201 = vector.multi_reduction <add>, %200, %cst_132 [1] : vector<8x32xf32> to vector<8xf32>
    %202 = vector.shape_cast %201 : vector<8xf32> to vector<8x1xf32>
    %cst_133 = arith.constant 3.200000e+01 : f32
    %203 = vector.broadcast %cst_133 : f32 to vector<8x1xf32>
    %204 = arith.divf %202, %203 : vector<8x1xf32>
    %205 = vector.broadcast %197 : vector<8x1xf32> to vector<8x32xf32>
    %206 = arith.subf %191, %205 : vector<8x32xf32>
    %cst_134 = arith.constant 9.99999974E-6 : f32
    %207 = vector.broadcast %cst_134 : f32 to vector<8x1xf32>
    %208 = arith.addf %204, %207 : vector<8x1xf32>
    %209 = math.rsqrt %208 : vector<8x1xf32>
    %210 = vector.broadcast %209 : vector<8x1xf32> to vector<8x32xf32>
    %211 = arith.mulf %206, %210 : vector<8x32xf32>
    %212 = vector.broadcast %192 : vector<1x32xf32> to vector<8x32xf32>
    %213 = arith.mulf %211, %212 : vector<8x32xf32>
    %214 = vector.broadcast %193 : vector<1x32xf32> to vector<8x32xf32>
    %215 = arith.addf %213, %214 : vector<8x32xf32>
    %c12 = arith.constant 12 : index
    %c0_135 = arith.constant 0 : index
    %c0_136 = arith.constant 0 : index
    %216 = vector.load %arg3[%c12, %c0_135, %c0_136] : memref<24x32x8xf32, #tpu.memory_space<vmem>>, vector<1x32x8xf32>
    %217 = vector.shape_cast %216 : vector<1x32x8xf32> to vector<32x8xf32>
    %cst_137 = arith.constant dense<0.000000e+00> : vector<8x8xf32>
    %218 = tpu.matmul %215, %217, %cst_137 {dimension_numbers = #tpu.dot_dimension_numbers<[1], [0], [0], [1], [0, 0, 1, 1], [], []>} : vector<8x32xf32>, vector<32x8xf32>, vector<8x8xf32> -> vector<8x8xf32>
    %c12_138 = arith.constant 12 : index
    %c0_139 = arith.constant 0 : index
    %219 = vector.load %arg4[%c12_138, %c0_139] : memref<24x8xf32, #tpu.memory_space<vmem>>, vector<1x8xf32>
    %220 = vector.broadcast %219 : vector<1x8xf32> to vector<8x8xf32>
    %221 = arith.addf %218, %220 : vector<8x8xf32>
    %c16 = arith.constant 16 : index
    %c0_140 = arith.constant 0 : index
    %c0_141 = arith.constant 0 : index
    %222 = vector.load %arg3[%c16, %c0_140, %c0_141] : memref<24x32x8xf32, #tpu.memory_space<vmem>>, vector<1x32x8xf32>
    %223 = vector.shape_cast %222 : vector<1x32x8xf32> to vector<32x8xf32>
    %cst_142 = arith.constant dense<0.000000e+00> : vector<8x8xf32>
    %224 = tpu.matmul %215, %223, %cst_142 {dimension_numbers = #tpu.dot_dimension_numbers<[1], [0], [0], [1], [0, 0, 1, 1], [], []>} : vector<8x32xf32>, vector<32x8xf32>, vector<8x8xf32> -> vector<8x8xf32>
    %c16_143 = arith.constant 16 : index
    %c0_144 = arith.constant 0 : index
    %225 = vector.load %arg4[%c16_143, %c0_144] : memref<24x8xf32, #tpu.memory_space<vmem>>, vector<1x8xf32>
    %226 = vector.broadcast %225 : vector<1x8xf32> to vector<8x8xf32>
    %227 = arith.addf %224, %226 : vector<8x8xf32>
    %c20 = arith.constant 20 : index
    %c0_145 = arith.constant 0 : index
    %c0_146 = arith.constant 0 : index
    %228 = vector.load %arg3[%c20, %c0_145, %c0_146] : memref<24x32x8xf32, #tpu.memory_space<vmem>>, vector<1x32x8xf32>
    %229 = vector.shape_cast %228 : vector<1x32x8xf32> to vector<32x8xf32>
    %cst_147 = arith.constant dense<0.000000e+00> : vector<8x8xf32>
    %230 = tpu.matmul %215, %229, %cst_147 {dimension_numbers = #tpu.dot_dimension_numbers<[1], [0], [0], [1], [0, 0, 1, 1], [], []>} : vector<8x32xf32>, vector<32x8xf32>, vector<8x8xf32> -> vector<8x8xf32>
    %c20_148 = arith.constant 20 : index
    %c0_149 = arith.constant 0 : index
    %231 = vector.load %arg4[%c20_148, %c0_149] : memref<24x8xf32, #tpu.memory_space<vmem>>, vector<1x8xf32>
    %232 = vector.broadcast %231 : vector<1x8xf32> to vector<8x8xf32>
    %233 = arith.addf %230, %232 : vector<8x8xf32>
    %cst_150 = arith.constant dense<0.000000e+00> : vector<8x8xf32>
    %234 = tpu.matmul %221, %227, %cst_150 {dimension_numbers = #tpu.dot_dimension_numbers<[1], [1], [0], [0], [0, 0, 1, 0], [], []>} : vector<8x8xf32>, vector<8x8xf32>, vector<8x8xf32> -> vector<8x8xf32>
    %cst_151 = arith.constant 0.353553385 : f32
    %235 = vector.broadcast %cst_151 : f32 to vector<8x8xf32>
    %236 = arith.mulf %234, %235 : vector<8x8xf32>
    %cst_152 = arith.constant dense<0xFF800000> : vector<8xf32>
    %237 = vector.multi_reduction <maximumf>, %236, %cst_152 [1] : vector<8x8xf32> to vector<8xf32>
    %238 = vector.shape_cast %237 : vector<8xf32> to vector<8x1xf32>
    %239 = vector.broadcast %238 : vector<8x1xf32> to vector<8x8xf32>
    %240 = arith.subf %236, %239 : vector<8x8xf32>
    %241 = math.exp %240 : vector<8x8xf32>
    %cst_153 = arith.constant dense<0.000000e+00> : vector<8xf32>
    %242 = vector.multi_reduction <add>, %241, %cst_153 [1] : vector<8x8xf32> to vector<8xf32>
    %243 = vector.shape_cast %242 : vector<8xf32> to vector<8x1xf32>
    %244 = tpu.reciprocal %243 {approx = true} : vector<8x1xf32> -> vector<8x1xf32>
    %245 = vector.broadcast %244 : vector<8x1xf32> to vector<8x8xf32>
    %246 = arith.mulf %241, %245 : vector<8x8xf32>
    %cst_154 = arith.constant dense<0.000000e+00> : vector<8x8xf32>
    %247 = tpu.matmul %246, %233, %cst_154 {dimension_numbers = #tpu.dot_dimension_numbers<[1], [0], [0], [1], [0, 0, 1, 1], [], []>} : vector<8x8xf32>, vector<8x8xf32>, vector<8x8xf32> -> vector<8x8xf32>
    %c4_155 = arith.constant 4 : index
    %c0_156 = arith.constant 0 : index
    %c0_157 = arith.constant 0 : index
    %248 = vector.load %arg5[%c4_155, %c0_156, %c0_157] : memref<8x8x32xf32, #tpu.memory_space<vmem>>, vector<1x8x32xf32>
    %249 = vector.shape_cast %248 : vector<1x8x32xf32> to vector<8x32xf32>
    %cst_158 = arith.constant dense<0.000000e+00> : vector<8x32xf32>
    %250 = tpu.matmul %247, %249, %cst_158 {dimension_numbers = #tpu.dot_dimension_numbers<[1], [0], [0], [1], [0, 0, 1, 1], [], []>} : vector<8x8xf32>, vector<8x32xf32>, vector<8x32xf32> -> vector<8x32xf32>
    %c13 = arith.constant 13 : index
    %c0_159 = arith.constant 0 : index
    %c0_160 = arith.constant 0 : index
    %251 = vector.load %arg3[%c13, %c0_159, %c0_160] : memref<24x32x8xf32, #tpu.memory_space<vmem>>, vector<1x32x8xf32>
    %252 = vector.shape_cast %251 : vector<1x32x8xf32> to vector<32x8xf32>
    %cst_161 = arith.constant dense<0.000000e+00> : vector<8x8xf32>
    %253 = tpu.matmul %215, %252, %cst_161 {dimension_numbers = #tpu.dot_dimension_numbers<[1], [0], [0], [1], [0, 0, 1, 1], [], []>} : vector<8x32xf32>, vector<32x8xf32>, vector<8x8xf32> -> vector<8x8xf32>
    %c13_162 = arith.constant 13 : index
    %c0_163 = arith.constant 0 : index
    %254 = vector.load %arg4[%c13_162, %c0_163] : memref<24x8xf32, #tpu.memory_space<vmem>>, vector<1x8xf32>
    %255 = vector.broadcast %254 : vector<1x8xf32> to vector<8x8xf32>
    %256 = arith.addf %253, %255 : vector<8x8xf32>
    %c17 = arith.constant 17 : index
    %c0_164 = arith.constant 0 : index
    %c0_165 = arith.constant 0 : index
    %257 = vector.load %arg3[%c17, %c0_164, %c0_165] : memref<24x32x8xf32, #tpu.memory_space<vmem>>, vector<1x32x8xf32>
    %258 = vector.shape_cast %257 : vector<1x32x8xf32> to vector<32x8xf32>
    %cst_166 = arith.constant dense<0.000000e+00> : vector<8x8xf32>
    %259 = tpu.matmul %215, %258, %cst_166 {dimension_numbers = #tpu.dot_dimension_numbers<[1], [0], [0], [1], [0, 0, 1, 1], [], []>} : vector<8x32xf32>, vector<32x8xf32>, vector<8x8xf32> -> vector<8x8xf32>
    %c17_167 = arith.constant 17 : index
    %c0_168 = arith.constant 0 : index
    %260 = vector.load %arg4[%c17_167, %c0_168] : memref<24x8xf32, #tpu.memory_space<vmem>>, vector<1x8xf32>
    %261 = vector.broadcast %260 : vector<1x8xf32> to vector<8x8xf32>
    %262 = arith.addf %259, %261 : vector<8x8xf32>
    %c21 = arith.constant 21 : index
    %c0_169 = arith.constant 0 : index
    %c0_170 = arith.constant 0 : index
    %263 = vector.load %arg3[%c21, %c0_169, %c0_170] : memref<24x32x8xf32, #tpu.memory_space<vmem>>, vector<1x32x8xf32>
    %264 = vector.shape_cast %263 : vector<1x32x8xf32> to vector<32x8xf32>
    %cst_171 = arith.constant dense<0.000000e+00> : vector<8x8xf32>
    %265 = tpu.matmul %215, %264, %cst_171 {dimension_numbers = #tpu.dot_dimension_numbers<[1], [0], [0], [1], [0, 0, 1, 1], [], []>} : vector<8x32xf32>, vector<32x8xf32>, vector<8x8xf32> -> vector<8x8xf32>
    %c21_172 = arith.constant 21 : index
    %c0_173 = arith.constant 0 : index
    %266 = vector.load %arg4[%c21_172, %c0_173] : memref<24x8xf32, #tpu.memory_space<vmem>>, vector<1x8xf32>
    %267 = vector.broadcast %266 : vector<1x8xf32> to vector<8x8xf32>
    %268 = arith.addf %265, %267 : vector<8x8xf32>
    %cst_174 = arith.constant dense<0.000000e+00> : vector<8x8xf32>
    %269 = tpu.matmul %256, %262, %cst_174 {dimension_numbers = #tpu.dot_dimension_numbers<[1], [1], [0], [0], [0, 0, 1, 0], [], []>} : vector<8x8xf32>, vector<8x8xf32>, vector<8x8xf32> -> vector<8x8xf32>
    %cst_175 = arith.constant 0.353553385 : f32
    %270 = vector.broadcast %cst_175 : f32 to vector<8x8xf32>
    %271 = arith.mulf %269, %270 : vector<8x8xf32>
    %cst_176 = arith.constant dense<0xFF800000> : vector<8xf32>
    %272 = vector.multi_reduction <maximumf>, %271, %cst_176 [1] : vector<8x8xf32> to vector<8xf32>
    %273 = vector.shape_cast %272 : vector<8xf32> to vector<8x1xf32>
    %274 = vector.broadcast %273 : vector<8x1xf32> to vector<8x8xf32>
    %275 = arith.subf %271, %274 : vector<8x8xf32>
    %276 = math.exp %275 : vector<8x8xf32>
    %cst_177 = arith.constant dense<0.000000e+00> : vector<8xf32>
    %277 = vector.multi_reduction <add>, %276, %cst_177 [1] : vector<8x8xf32> to vector<8xf32>
    %278 = vector.shape_cast %277 : vector<8xf32> to vector<8x1xf32>
    %279 = tpu.reciprocal %278 {approx = true} : vector<8x1xf32> -> vector<8x1xf32>
    %280 = vector.broadcast %279 : vector<8x1xf32> to vector<8x8xf32>
    %281 = arith.mulf %276, %280 : vector<8x8xf32>
    %cst_178 = arith.constant dense<0.000000e+00> : vector<8x8xf32>
    %282 = tpu.matmul %281, %268, %cst_178 {dimension_numbers = #tpu.dot_dimension_numbers<[1], [0], [0], [1], [0, 0, 1, 1], [], []>} : vector<8x8xf32>, vector<8x8xf32>, vector<8x8xf32> -> vector<8x8xf32>
    %c5_179 = arith.constant 5 : index
    %c0_180 = arith.constant 0 : index
    %c0_181 = arith.constant 0 : index
    %283 = vector.load %arg5[%c5_179, %c0_180, %c0_181] : memref<8x8x32xf32, #tpu.memory_space<vmem>>, vector<1x8x32xf32>
    %284 = vector.shape_cast %283 : vector<1x8x32xf32> to vector<8x32xf32>
    %cst_182 = arith.constant dense<0.000000e+00> : vector<8x32xf32>
    %285 = tpu.matmul %282, %284, %cst_182 {dimension_numbers = #tpu.dot_dimension_numbers<[1], [0], [0], [1], [0, 0, 1, 1], [], []>} : vector<8x8xf32>, vector<8x32xf32>, vector<8x32xf32> -> vector<8x32xf32>
    %286 = arith.addf %250, %285 : vector<8x32xf32>
    %c14 = arith.constant 14 : index
    %c0_183 = arith.constant 0 : index
    %c0_184 = arith.constant 0 : index
    %287 = vector.load %arg3[%c14, %c0_183, %c0_184] : memref<24x32x8xf32, #tpu.memory_space<vmem>>, vector<1x32x8xf32>
    %288 = vector.shape_cast %287 : vector<1x32x8xf32> to vector<32x8xf32>
    %cst_185 = arith.constant dense<0.000000e+00> : vector<8x8xf32>
    %289 = tpu.matmul %215, %288, %cst_185 {dimension_numbers = #tpu.dot_dimension_numbers<[1], [0], [0], [1], [0, 0, 1, 1], [], []>} : vector<8x32xf32>, vector<32x8xf32>, vector<8x8xf32> -> vector<8x8xf32>
    %c14_186 = arith.constant 14 : index
    %c0_187 = arith.constant 0 : index
    %290 = vector.load %arg4[%c14_186, %c0_187] : memref<24x8xf32, #tpu.memory_space<vmem>>, vector<1x8xf32>
    %291 = vector.broadcast %290 : vector<1x8xf32> to vector<8x8xf32>
    %292 = arith.addf %289, %291 : vector<8x8xf32>
    %c18 = arith.constant 18 : index
    %c0_188 = arith.constant 0 : index
    %c0_189 = arith.constant 0 : index
    %293 = vector.load %arg3[%c18, %c0_188, %c0_189] : memref<24x32x8xf32, #tpu.memory_space<vmem>>, vector<1x32x8xf32>
    %294 = vector.shape_cast %293 : vector<1x32x8xf32> to vector<32x8xf32>
    %cst_190 = arith.constant dense<0.000000e+00> : vector<8x8xf32>
    %295 = tpu.matmul %215, %294, %cst_190 {dimension_numbers = #tpu.dot_dimension_numbers<[1], [0], [0], [1], [0, 0, 1, 1], [], []>} : vector<8x32xf32>, vector<32x8xf32>, vector<8x8xf32> -> vector<8x8xf32>
    %c18_191 = arith.constant 18 : index
    %c0_192 = arith.constant 0 : index
    %296 = vector.load %arg4[%c18_191, %c0_192] : memref<24x8xf32, #tpu.memory_space<vmem>>, vector<1x8xf32>
    %297 = vector.broadcast %296 : vector<1x8xf32> to vector<8x8xf32>
    %298 = arith.addf %295, %297 : vector<8x8xf32>
    %c22 = arith.constant 22 : index
    %c0_193 = arith.constant 0 : index
    %c0_194 = arith.constant 0 : index
    %299 = vector.load %arg3[%c22, %c0_193, %c0_194] : memref<24x32x8xf32, #tpu.memory_space<vmem>>, vector<1x32x8xf32>
    %300 = vector.shape_cast %299 : vector<1x32x8xf32> to vector<32x8xf32>
    %cst_195 = arith.constant dense<0.000000e+00> : vector<8x8xf32>
    %301 = tpu.matmul %215, %300, %cst_195 {dimension_numbers = #tpu.dot_dimension_numbers<[1], [0], [0], [1], [0, 0, 1, 1], [], []>} : vector<8x32xf32>, vector<32x8xf32>, vector<8x8xf32> -> vector<8x8xf32>
    %c22_196 = arith.constant 22 : index
    %c0_197 = arith.constant 0 : index
    %302 = vector.load %arg4[%c22_196, %c0_197] : memref<24x8xf32, #tpu.memory_space<vmem>>, vector<1x8xf32>
    %303 = vector.broadcast %302 : vector<1x8xf32> to vector<8x8xf32>
    %304 = arith.addf %301, %303 : vector<8x8xf32>
    %cst_198 = arith.constant dense<0.000000e+00> : vector<8x8xf32>
    %305 = tpu.matmul %292, %298, %cst_198 {dimension_numbers = #tpu.dot_dimension_numbers<[1], [1], [0], [0], [0, 0, 1, 0], [], []>} : vector<8x8xf32>, vector<8x8xf32>, vector<8x8xf32> -> vector<8x8xf32>
    %cst_199 = arith.constant 0.353553385 : f32
    %306 = vector.broadcast %cst_199 : f32 to vector<8x8xf32>
    %307 = arith.mulf %305, %306 : vector<8x8xf32>
    %cst_200 = arith.constant dense<0xFF800000> : vector<8xf32>
    %308 = vector.multi_reduction <maximumf>, %307, %cst_200 [1] : vector<8x8xf32> to vector<8xf32>
    %309 = vector.shape_cast %308 : vector<8xf32> to vector<8x1xf32>
    %310 = vector.broadcast %309 : vector<8x1xf32> to vector<8x8xf32>
    %311 = arith.subf %307, %310 : vector<8x8xf32>
    %312 = math.exp %311 : vector<8x8xf32>
    %cst_201 = arith.constant dense<0.000000e+00> : vector<8xf32>
    %313 = vector.multi_reduction <add>, %312, %cst_201 [1] : vector<8x8xf32> to vector<8xf32>
    %314 = vector.shape_cast %313 : vector<8xf32> to vector<8x1xf32>
    %315 = tpu.reciprocal %314 {approx = true} : vector<8x1xf32> -> vector<8x1xf32>
    %316 = vector.broadcast %315 : vector<8x1xf32> to vector<8x8xf32>
    %317 = arith.mulf %312, %316 : vector<8x8xf32>
    %cst_202 = arith.constant dense<0.000000e+00> : vector<8x8xf32>
    %318 = tpu.matmul %317, %304, %cst_202 {dimension_numbers = #tpu.dot_dimension_numbers<[1], [0], [0], [1], [0, 0, 1, 1], [], []>} : vector<8x8xf32>, vector<8x8xf32>, vector<8x8xf32> -> vector<8x8xf32>
    %c6_203 = arith.constant 6 : index
    %c0_204 = arith.constant 0 : index
    %c0_205 = arith.constant 0 : index
    %319 = vector.load %arg5[%c6_203, %c0_204, %c0_205] : memref<8x8x32xf32, #tpu.memory_space<vmem>>, vector<1x8x32xf32>
    %320 = vector.shape_cast %319 : vector<1x8x32xf32> to vector<8x32xf32>
    %cst_206 = arith.constant dense<0.000000e+00> : vector<8x32xf32>
    %321 = tpu.matmul %318, %320, %cst_206 {dimension_numbers = #tpu.dot_dimension_numbers<[1], [0], [0], [1], [0, 0, 1, 1], [], []>} : vector<8x8xf32>, vector<8x32xf32>, vector<8x32xf32> -> vector<8x32xf32>
    %322 = arith.addf %286, %321 : vector<8x32xf32>
    %c15 = arith.constant 15 : index
    %c0_207 = arith.constant 0 : index
    %c0_208 = arith.constant 0 : index
    %323 = vector.load %arg3[%c15, %c0_207, %c0_208] : memref<24x32x8xf32, #tpu.memory_space<vmem>>, vector<1x32x8xf32>
    %324 = vector.shape_cast %323 : vector<1x32x8xf32> to vector<32x8xf32>
    %cst_209 = arith.constant dense<0.000000e+00> : vector<8x8xf32>
    %325 = tpu.matmul %215, %324, %cst_209 {dimension_numbers = #tpu.dot_dimension_numbers<[1], [0], [0], [1], [0, 0, 1, 1], [], []>} : vector<8x32xf32>, vector<32x8xf32>, vector<8x8xf32> -> vector<8x8xf32>
    %c15_210 = arith.constant 15 : index
    %c0_211 = arith.constant 0 : index
    %326 = vector.load %arg4[%c15_210, %c0_211] : memref<24x8xf32, #tpu.memory_space<vmem>>, vector<1x8xf32>
    %327 = vector.broadcast %326 : vector<1x8xf32> to vector<8x8xf32>
    %328 = arith.addf %325, %327 : vector<8x8xf32>
    %c19 = arith.constant 19 : index
    %c0_212 = arith.constant 0 : index
    %c0_213 = arith.constant 0 : index
    %329 = vector.load %arg3[%c19, %c0_212, %c0_213] : memref<24x32x8xf32, #tpu.memory_space<vmem>>, vector<1x32x8xf32>
    %330 = vector.shape_cast %329 : vector<1x32x8xf32> to vector<32x8xf32>
    %cst_214 = arith.constant dense<0.000000e+00> : vector<8x8xf32>
    %331 = tpu.matmul %215, %330, %cst_214 {dimension_numbers = #tpu.dot_dimension_numbers<[1], [0], [0], [1], [0, 0, 1, 1], [], []>} : vector<8x32xf32>, vector<32x8xf32>, vector<8x8xf32> -> vector<8x8xf32>
    %c19_215 = arith.constant 19 : index
    %c0_216 = arith.constant 0 : index
    %332 = vector.load %arg4[%c19_215, %c0_216] : memref<24x8xf32, #tpu.memory_space<vmem>>, vector<1x8xf32>
    %333 = vector.broadcast %332 : vector<1x8xf32> to vector<8x8xf32>
    %334 = arith.addf %331, %333 : vector<8x8xf32>
    %c23 = arith.constant 23 : index
    %c0_217 = arith.constant 0 : index
    %c0_218 = arith.constant 0 : index
    %335 = vector.load %arg3[%c23, %c0_217, %c0_218] : memref<24x32x8xf32, #tpu.memory_space<vmem>>, vector<1x32x8xf32>
    %336 = vector.shape_cast %335 : vector<1x32x8xf32> to vector<32x8xf32>
    %cst_219 = arith.constant dense<0.000000e+00> : vector<8x8xf32>
    %337 = tpu.matmul %215, %336, %cst_219 {dimension_numbers = #tpu.dot_dimension_numbers<[1], [0], [0], [1], [0, 0, 1, 1], [], []>} : vector<8x32xf32>, vector<32x8xf32>, vector<8x8xf32> -> vector<8x8xf32>
    %c23_220 = arith.constant 23 : index
    %c0_221 = arith.constant 0 : index
    %338 = vector.load %arg4[%c23_220, %c0_221] : memref<24x8xf32, #tpu.memory_space<vmem>>, vector<1x8xf32>
    %339 = vector.broadcast %338 : vector<1x8xf32> to vector<8x8xf32>
    %340 = arith.addf %337, %339 : vector<8x8xf32>
    %cst_222 = arith.constant dense<0.000000e+00> : vector<8x8xf32>
    %341 = tpu.matmul %328, %334, %cst_222 {dimension_numbers = #tpu.dot_dimension_numbers<[1], [1], [0], [0], [0, 0, 1, 0], [], []>} : vector<8x8xf32>, vector<8x8xf32>, vector<8x8xf32> -> vector<8x8xf32>
    %cst_223 = arith.constant 0.353553385 : f32
    %342 = vector.broadcast %cst_223 : f32 to vector<8x8xf32>
    %343 = arith.mulf %341, %342 : vector<8x8xf32>
    %cst_224 = arith.constant dense<0xFF800000> : vector<8xf32>
    %344 = vector.multi_reduction <maximumf>, %343, %cst_224 [1] : vector<8x8xf32> to vector<8xf32>
    %345 = vector.shape_cast %344 : vector<8xf32> to vector<8x1xf32>
    %346 = vector.broadcast %345 : vector<8x1xf32> to vector<8x8xf32>
    %347 = arith.subf %343, %346 : vector<8x8xf32>
    %348 = math.exp %347 : vector<8x8xf32>
    %cst_225 = arith.constant dense<0.000000e+00> : vector<8xf32>
    %349 = vector.multi_reduction <add>, %348, %cst_225 [1] : vector<8x8xf32> to vector<8xf32>
    %350 = vector.shape_cast %349 : vector<8xf32> to vector<8x1xf32>
    %351 = tpu.reciprocal %350 {approx = true} : vector<8x1xf32> -> vector<8x1xf32>
    %352 = vector.broadcast %351 : vector<8x1xf32> to vector<8x8xf32>
    %353 = arith.mulf %348, %352 : vector<8x8xf32>
    %cst_226 = arith.constant dense<0.000000e+00> : vector<8x8xf32>
    %354 = tpu.matmul %353, %340, %cst_226 {dimension_numbers = #tpu.dot_dimension_numbers<[1], [0], [0], [1], [0, 0, 1, 1], [], []>} : vector<8x8xf32>, vector<8x8xf32>, vector<8x8xf32> -> vector<8x8xf32>
    %c7_227 = arith.constant 7 : index
    %c0_228 = arith.constant 0 : index
    %c0_229 = arith.constant 0 : index
    %355 = vector.load %arg5[%c7_227, %c0_228, %c0_229] : memref<8x8x32xf32, #tpu.memory_space<vmem>>, vector<1x8x32xf32>
    %356 = vector.shape_cast %355 : vector<1x8x32xf32> to vector<8x32xf32>
    %cst_230 = arith.constant dense<0.000000e+00> : vector<8x32xf32>
    %357 = tpu.matmul %354, %356, %cst_230 {dimension_numbers = #tpu.dot_dimension_numbers<[1], [0], [0], [1], [0, 0, 1, 1], [], []>} : vector<8x8xf32>, vector<8x32xf32>, vector<8x32xf32> -> vector<8x32xf32>
    %358 = arith.addf %322, %357 : vector<8x32xf32>
    %c6_231 = arith.constant 6 : index
    %c0_232 = arith.constant 0 : index
    %359 = vector.load %arg6[%c6_231, %c0_232] : memref<12x32xf32, #tpu.memory_space<vmem>>, vector<1x32xf32>
    %360 = vector.broadcast %359 : vector<1x32xf32> to vector<8x32xf32>
    %361 = arith.addf %358, %360 : vector<8x32xf32>
    %362 = arith.addf %215, %361 : vector<8x32xf32>
    %c7_233 = arith.constant 7 : index
    %c0_234 = arith.constant 0 : index
    %363 = vector.load %arg6[%c7_233, %c0_234] : memref<12x32xf32, #tpu.memory_space<vmem>>, vector<1x32xf32>
    %c8_235 = arith.constant 8 : index
    %c0_236 = arith.constant 0 : index
    %364 = vector.load %arg6[%c8_235, %c0_236] : memref<12x32xf32, #tpu.memory_space<vmem>>, vector<1x32xf32>
    %cst_237 = arith.constant dense<0.000000e+00> : vector<8xf32>
    %365 = vector.multi_reduction <add>, %362, %cst_237 [1] : vector<8x32xf32> to vector<8xf32>
    %366 = vector.shape_cast %365 : vector<8xf32> to vector<8x1xf32>
    %cst_238 = arith.constant 3.200000e+01 : f32
    %367 = vector.broadcast %cst_238 : f32 to vector<8x1xf32>
    %368 = arith.divf %366, %367 : vector<8x1xf32>
    %369 = vector.broadcast %368 : vector<8x1xf32> to vector<8x32xf32>
    %370 = arith.subf %362, %369 : vector<8x32xf32>
    %371 = arith.mulf %370, %370 : vector<8x32xf32>
    %cst_239 = arith.constant dense<0.000000e+00> : vector<8xf32>
    %372 = vector.multi_reduction <add>, %371, %cst_239 [1] : vector<8x32xf32> to vector<8xf32>
    %373 = vector.shape_cast %372 : vector<8xf32> to vector<8x1xf32>
    %cst_240 = arith.constant 3.200000e+01 : f32
    %374 = vector.broadcast %cst_240 : f32 to vector<8x1xf32>
    %375 = arith.divf %373, %374 : vector<8x1xf32>
    %376 = vector.broadcast %368 : vector<8x1xf32> to vector<8x32xf32>
    %377 = arith.subf %362, %376 : vector<8x32xf32>
    %cst_241 = arith.constant 9.99999974E-6 : f32
    %378 = vector.broadcast %cst_241 : f32 to vector<8x1xf32>
    %379 = arith.addf %375, %378 : vector<8x1xf32>
    %380 = math.rsqrt %379 : vector<8x1xf32>
    %381 = vector.broadcast %380 : vector<8x1xf32> to vector<8x32xf32>
    %382 = arith.mulf %377, %381 : vector<8x32xf32>
    %383 = vector.broadcast %363 : vector<1x32xf32> to vector<8x32xf32>
    %384 = arith.mulf %382, %383 : vector<8x32xf32>
    %385 = vector.broadcast %364 : vector<1x32xf32> to vector<8x32xf32>
    %386 = arith.addf %384, %385 : vector<8x32xf32>
    %c1_242 = arith.constant 1 : index
    %c0_243 = arith.constant 0 : index
    %c0_244 = arith.constant 0 : index
    %387 = vector.load %arg7[%c1_242, %c0_243, %c0_244] : memref<2x32x128xf32, #tpu.memory_space<vmem>>, vector<1x32x128xf32>
    %388 = vector.shape_cast %387 : vector<1x32x128xf32> to vector<32x128xf32>
    %cst_245 = arith.constant dense<0.000000e+00> : vector<8x128xf32>
    %389 = tpu.matmul %386, %388, %cst_245 {dimension_numbers = #tpu.dot_dimension_numbers<[1], [0], [0], [1], [0, 0, 1, 1], [], []>} : vector<8x32xf32>, vector<32x128xf32>, vector<8x128xf32> -> vector<8x128xf32>
    %c1_246 = arith.constant 1 : index
    %c0_247 = arith.constant 0 : index
    %390 = vector.load %arg8[%c1_246, %c0_247] : memref<2x128xf32, #tpu.memory_space<vmem>>, vector<1x128xf32>
    %391 = vector.broadcast %390 : vector<1x128xf32> to vector<8x128xf32>
    %392 = arith.addf %389, %391 : vector<8x128xf32>
    %cst_248 = arith.constant 0.000000e+00 : f32
    %393 = vector.broadcast %cst_248 : f32 to vector<8x128xf32>
    %394 = arith.maximumf %392, %393 : vector<8x128xf32>
    %c1_249 = arith.constant 1 : index
    %c0_250 = arith.constant 0 : index
    %c0_251 = arith.constant 0 : index
    %395 = vector.load %arg9[%c1_249, %c0_250, %c0_251] : memref<2x128x32xf32, #tpu.memory_space<vmem>>, vector<1x128x32xf32>
    %396 = vector.shape_cast %395 : vector<1x128x32xf32> to vector<128x32xf32>
    %cst_252 = arith.constant dense<0.000000e+00> : vector<8x32xf32>
    %397 = tpu.matmul %394, %396, %cst_252 {dimension_numbers = #tpu.dot_dimension_numbers<[1], [0], [0], [1], [0, 0, 1, 1], [], []>} : vector<8x128xf32>, vector<128x32xf32>, vector<8x32xf32> -> vector<8x32xf32>
    %c9_253 = arith.constant 9 : index
    %c0_254 = arith.constant 0 : index
    %398 = vector.load %arg6[%c9_253, %c0_254] : memref<12x32xf32, #tpu.memory_space<vmem>>, vector<1x32xf32>
    %399 = vector.broadcast %398 : vector<1x32xf32> to vector<8x32xf32>
    %400 = arith.addf %397, %399 : vector<8x32xf32>
    %401 = arith.addf %386, %400 : vector<8x32xf32>
    %c10_255 = arith.constant 10 : index
    %c0_256 = arith.constant 0 : index
    %402 = vector.load %arg6[%c10_255, %c0_256] : memref<12x32xf32, #tpu.memory_space<vmem>>, vector<1x32xf32>
    %c11_257 = arith.constant 11 : index
    %c0_258 = arith.constant 0 : index
    %403 = vector.load %arg6[%c11_257, %c0_258] : memref<12x32xf32, #tpu.memory_space<vmem>>, vector<1x32xf32>
    %cst_259 = arith.constant dense<0.000000e+00> : vector<8xf32>
    %404 = vector.multi_reduction <add>, %401, %cst_259 [1] : vector<8x32xf32> to vector<8xf32>
    %405 = vector.shape_cast %404 : vector<8xf32> to vector<8x1xf32>
    %cst_260 = arith.constant 3.200000e+01 : f32
    %406 = vector.broadcast %cst_260 : f32 to vector<8x1xf32>
    %407 = arith.divf %405, %406 : vector<8x1xf32>
    %408 = vector.broadcast %407 : vector<8x1xf32> to vector<8x32xf32>
    %409 = arith.subf %401, %408 : vector<8x32xf32>
    %410 = arith.mulf %409, %409 : vector<8x32xf32>
    %cst_261 = arith.constant dense<0.000000e+00> : vector<8xf32>
    %411 = vector.multi_reduction <add>, %410, %cst_261 [1] : vector<8x32xf32> to vector<8xf32>
    %412 = vector.shape_cast %411 : vector<8xf32> to vector<8x1xf32>
    %cst_262 = arith.constant 3.200000e+01 : f32
    %413 = vector.broadcast %cst_262 : f32 to vector<8x1xf32>
    %414 = arith.divf %412, %413 : vector<8x1xf32>
    %415 = vector.broadcast %407 : vector<8x1xf32> to vector<8x32xf32>
    %416 = arith.subf %401, %415 : vector<8x32xf32>
    %cst_263 = arith.constant 9.99999974E-6 : f32
    %417 = vector.broadcast %cst_263 : f32 to vector<8x1xf32>
    %418 = arith.addf %414, %417 : vector<8x1xf32>
    %419 = math.rsqrt %418 : vector<8x1xf32>
    %420 = vector.broadcast %419 : vector<8x1xf32> to vector<8x32xf32>
    %421 = arith.mulf %416, %420 : vector<8x32xf32>
    %422 = vector.broadcast %402 : vector<1x32xf32> to vector<8x32xf32>
    %423 = arith.mulf %421, %422 : vector<8x32xf32>
    %424 = vector.broadcast %403 : vector<1x32xf32> to vector<8x32xf32>
    %425 = arith.addf %423, %424 : vector<8x32xf32>
    %c0_264 = arith.constant 0 : index
    %c0_265 = arith.constant 0 : index
    %426 = vector.load %arg10[%c0_264, %c0_265] : memref<32x128xf32, #tpu.memory_space<vmem>>, vector<32x128xf32>
    %cst_266 = arith.constant dense<0.000000e+00> : vector<8x128xf32>
    %427 = tpu.matmul %425, %426, %cst_266 {dimension_numbers = #tpu.dot_dimension_numbers<[1], [0], [0], [1], [0, 0, 1, 1], [], []>} : vector<8x32xf32>, vector<32x128xf32>, vector<8x128xf32> -> vector<8x128xf32>
    %c0_267 = arith.constant 0 : index
    %c0_268 = arith.constant 0 : index
    %428 = vector.load %arg11[%c0_267, %c0_268] : memref<1x128xf32, #tpu.memory_space<vmem>>, vector<1x128xf32>
    %429 = vector.broadcast %428 : vector<1x128xf32> to vector<8x128xf32>
    %430 = arith.addf %427, %429 : vector<8x128xf32>
    %c0_269 = arith.constant 0 : index
    %c0_270 = arith.constant 0 : index
    %431 = vector.load %arg12[%c0_269, %c0_270] : memref<8x128xf32, #tpu.memory_space<vmem>>, vector<8x128xf32>
    tpu.vector_store %arg12[%c0_269, %c0_270], %430 {strides = array<i32>} : memref<8x128xf32, #tpu.memory_space<vmem>>, vector<8x128xf32>,
    return
  }
}

</mosaic_0001>

<llo_original>
// kernel: tpu_custom_call.1
$region0: #{tpu_custom_call.1}
  #allocation0 [shape = 'u32[]', space=smem, size = 0x4, offset = 0x4, fixed_abs, tag = 'smem constant byte address 0x4 - core index']
  #allocation1 [shape = 'u32[144,128]{1,0:T(1,128)}', space=vmem, size = 0x12000, scoped, tag = 'internal scratch']
  %s0 = inlined_call_operand.vmem [shape: f32[16,12], index: 0, kind: input, shape index: {}]
  %s1 = inlined_call_operand.vmem [shape: f32[16,32], index: 1, kind: input, shape index: {}]
  %s2 = inlined_call_operand.vmem [shape: f32[12,32], index: 2, kind: input, shape index: {}]
  %s3 = inlined_call_operand.vmem [shape: f32[24,32,8], index: 3, kind: input, shape index: {}]
  %s4 = inlined_call_operand.vmem [shape: f32[24,8], index: 4, kind: input, shape index: {}]
  %s5 = inlined_call_operand.vmem [shape: f32[8,8,32], index: 5, kind: input, shape index: {}]
  %s6 = inlined_call_operand.vmem [shape: f32[12,32], index: 6, kind: input, shape index: {}]
  %s7 = inlined_call_operand.vmem [shape: f32[2,32,128], index: 7, kind: input, shape index: {}]
  %s8 = inlined_call_operand.vmem [shape: f32[2,128], index: 8, kind: input, shape index: {}]
  %s9 = inlined_call_operand.vmem [shape: f32[2,128,32], index: 9, kind: input, shape index: {}]
  %s10 = inlined_call_operand.vmem [shape: f32[32,128], index: 10, kind: input, shape index: {}]
  %s11 = inlined_call_operand.vmem [shape: f32[1,128], index: 11, kind: input, shape index: {}]
  %s12 = inlined_call_operand.hbm [shape: f32[8,128], index: 12, kind: output, shape index: {}]
  %s13 = sld [smem:[#allocation0]]
  $region58: #{tpu_custom_call.1} parent=0
    _
  %s15 = ssub.s32 1, %s13
  %s16 = scalar_select 0, %s15, %s13
  $region1: #{tpu_custom_call.1} parent=0
    #allocation2 [shape = 'u8[4096]{0}', space=vmem, size = 0x1000, scoped, tag = 'output window, operand 0, single buffered']
    #allocation3 [shape = 's32[1]{0}', space=sflag, size = 0x4, scoped, tag = 'scoped memory for tpu_custom_call.1']
    %17 = vsyncpa [#allocation3], 0
    // Predicated region
    $region2: #{tpu_custom_call.1} parent=1 // pred_check
      _
    $region3: #{tpu_custom_call.1} parent=1 // pred_check_branch
      %19 = sbr.rel (0) target = $region5
    $region4: #{tpu_custom_call.1} parent=1 // pred_region
      _
    $region5: #{tpu_custom_call.1} parent=1 // pred_fallthru
      _
    // Predicated region
    $region6: #{tpu_custom_call.1} parent=1 // pred_check
      _
    $region7: #{tpu_custom_call.1} parent=1 // pred_check_branch
      %21 = sbr.rel (0) target = $region9
    $region8: #{tpu_custom_call.1} parent=1 // pred_region
      _
    $region9: #{tpu_custom_call.1} parent=1 // pred_fallthru
      _
    // Predicated region
    $region10: #{tpu_custom_call.1} parent=1 // pred_check
      _
    $region11: #{tpu_custom_call.1} parent=1 // pred_check_branch
      %23 = sbr.rel (0) target = $region13
    $region12: #{tpu_custom_call.1} parent=1 // pred_region
      _
    $region13: #{tpu_custom_call.1} parent=1 // pred_fallthru
      _
    // Predicated region
    $region14: #{tpu_custom_call.1} parent=1 // pred_check
      _
    $region15: #{tpu_custom_call.1} parent=1 // pred_check_branch
      %25 = sbr.rel (0) target = $region17
    $region16: #{tpu_custom_call.1} parent=1 // pred_region
      _
    $region17: #{tpu_custom_call.1} parent=1 // pred_fallthru
      _
    // Predicated region
    $region18: #{tpu_custom_call.1} parent=1 // pred_check
      _
    $region19: #{tpu_custom_call.1} parent=1 // pred_check_branch
      %27 = sbr.rel (0) target = $region21
    $region20: #{tpu_custom_call.1} parent=1 // pred_region
      _
    $region21: #{tpu_custom_call.1} parent=1 // pred_fallthru
      _
    // Predicated region
    $region22: #{tpu_custom_call.1} parent=1 // pred_check
      _
    $region23: #{tpu_custom_call.1} parent=1 // pred_check_branch
      %29 = sbr.rel (0) target = $region25
    $region24: #{tpu_custom_call.1} parent=1 // pred_region
      _
    $region25: #{tpu_custom_call.1} parent=1 // pred_fallthru
      _
    // Predicated region
    $region26: #{tpu_custom_call.1} parent=1 // pred_check
      _
    $region27: #{tpu_custom_call.1} parent=1 // pred_check_branch
      %31 = sbr.rel (0) target = $region29
    $region28: #{tpu_custom_call.1} parent=1 // pred_region
      _
    $region29: #{tpu_custom_call.1} parent=1 // pred_fallthru
      _
    // Predicated region
    $region30: #{tpu_custom_call.1} parent=1 // pred_check
      _
    $region31: #{tpu_custom_call.1} parent=1 // pred_check_branch
      %33 = sbr.rel (0) target = $region33
    $region32: #{tpu_custom_call.1} parent=1 // pred_region
      _
    $region33: #{tpu_custom_call.1} parent=1 // pred_fallthru
      _
    // Predicated region
    $region34: #{tpu_custom_call.1} parent=1 // pred_check
      _
    $region35: #{tpu_custom_call.1} parent=1 // pred_check_branch
      %35 = sbr.rel (0) target = $region37
    $region36: #{tpu_custom_call.1} parent=1 // pred_region
      _
    $region37: #{tpu_custom_call.1} parent=1 // pred_fallthru
      _
    // Predicated region
    $region38: #{tpu_custom_call.1} parent=1 // pred_check
      _
    $region39: #{tpu_custom_call.1} parent=1 // pred_check_branch
      %37 = sbr.rel (0) target = $region41
    $region40: #{tpu_custom_call.1} parent=1 // pred_region
      _
    $region41: #{tpu_custom_call.1} parent=1 // pred_fallthru
      _
    // Predicated region
    $region42: #{tpu_custom_call.1} parent=1 // pred_check
      _
    $region43: #{tpu_custom_call.1} parent=1 // pred_check_branch
      %39 = sbr.rel (0) target = $region45
    $region44: #{tpu_custom_call.1} parent=1 // pred_region
      _
    $region45: #{tpu_custom_call.1} parent=1 // pred_fallthru
      _
    // Predicated region
    $region46: #{tpu_custom_call.1} parent=1 // pred_check
      _
    $region47: #{tpu_custom_call.1} parent=1 // pred_check_branch
      %41 = sbr.rel (0) target = $region49
    $region48: #{tpu_custom_call.1} parent=1 // pred_region
      _
    $region49: #{tpu_custom_call.1} parent=1 // pred_fallthru
      _
    %v42 = vld [vmem:[%s0] sm:$0xff]
    %v43 = vld [vmem:[%s0 + $0x8] sm:$0xff]
    %v44 = vld [vmem:[%s2] sm:$0xff]
    %v45 = vld [vmem:[%s2 + $0x8] sm:$0xf]
    %v46 = vld [vmem:[%s1 + $0x8] sm:$0xff]
    %vm47 = vcmask 97280
    %v49 = vsel %vm47, %v42, 0
    %v52 = vsel %vm47, %v43, 0
    %vm54 = vcmask 1043456
    %v56 = vsel %vm54, %v45, 0
    %58 = vmatprep.subr.mxu0 0.0
    %59 = vmatpush1.msra.mxu0 %v44
    %60 = vmatprep.subr.mxu0 0.0
    %61 = vmatpush1.msra.mxu0 %v56
    %62 = vmatprep.subr.mxu0 0.0
    %63 = vmatpush1.msra.mxu0 0.0
    %64 = vmatprep.subr.mxu0 0.0
    %65 = vmatpush1.msra.mxu0 0.0
    %66 = vmatprep.subr.mxu0 0.0
    %67 = vmatpush1.msra.mxu0 0.0
    %68 = vmatprep.subr.mxu0 0.0
    %69 = vmatpush1.msra.mxu0 0.0
    %70 = vmatprep.subr.mxu0 0.0
    %71 = vmatpush1.msra.mxu0 0.0
    %72 = vmatprep.subr.mxu0 0.0
    %73 = vmatpush1.msra.mxu0 0.0
    %74 = vmatprep.subr.mxu0 0.0
    %75 = vmatpush1.msra.mxu0 0.0
    %76 = vmatprep.subr.mxu0 0.0
    %77 = vmatpush1.msra.mxu0 0.0
    %78 = vmatprep.subr.mxu0 0.0
    %79 = vmatpush1.msra.mxu0 0.0
    %80 = vmatprep.subr.mxu0 0.0
    %81 = vmatpush1.msra.mxu0 0.0
    %82 = vmatprep.subr.mxu0 0.0
    %83 = vmatpush1.msra.mxu0 0.0
    %84 = vmatprep.subr.mxu0 0.0
    %85 = vmatpush1.msra.mxu0 0.0
    %86 = vmatprep.subr.mxu0 0.0
    %87 = vmatpush1.msra.mxu0 0.0
    %88 = vmatprep.subr.mxu0 0.0
    %89 = vmatpush1.msra.mxu0 0.0
    %90 = vmatprep.subr.mxu0 0.0
    %91 = vmatpush1.msra.mxu0 0.0
    %92 = vmatprep.subr.mxu0 0.0
    %93 = vmatpush1.msra.mxu0 0.0
    %94 = vmatprep.subr.mxu0 0.0
    %95 = vmatpush1.msra.mxu0 0.0
    %96 = vmatprep.subr.mxu0 0.0
    %97 = vmatpush1.msra.mxu0 0.0
    %98 = vmatprep.subr.mxu0 0.0
    %99 = vmatpush1.msra.mxu0 0.0
    %100 = vmatprep.subr.mxu0 0.0
    %101 = vmatpush1.msra.mxu0 0.0
    %102 = vmatprep.subr.mxu0 0.0
    %103 = vmatpush1.msra.mxu0 0.0
    %104 = vmatprep.subr.mxu0 0.0
    %105 = vmatpush1.msra.mxu0 0.0
    %106 = vmatprep.subr.mxu0 0.0
    %107 = vmatpush1.msra.mxu0 0.0
    %108 = vmatprep.subr.mxu0 0.0
    %109 = vmatpush1.msra.mxu0 0.0
    %110 = vmatprep.subr.mxu0 0.0
    %111 = vmatpush1.msra.mxu0 0.0
    %112 = vmatprep.subr.mxu0 0.0
    %113 = vmatpush1.msra.mxu0 0.0
    %114 = vmatprep.subr.mxu0 0.0
    %115 = vmatpush1.msra.mxu0 0.0
    %116 = vmatprep.subr.mxu0 0.0
    %117 = vmatpush1.msra.mxu0 0.0
    %118 = vmatprep.subr.mxu0 0.0
    %119 = vmatpush1.msra.mxu0 0.0
    %120 = vmatprep.subr.mxu0 0.0
    %121 = vmatpush1.msra.mxu0 0.0
    %122 = vmatprep.mubr.f32.mxu0 0.0
    %123 = vmatmul.mubr.f32.gmra.mrb[0].mxu0 %v49
    %v124 = vpop.f32.mrb[0].mxu0
    %v125 = vpop.f32.mrb[0].mxu0
    %126 = vmatprep.mubr.f32.mxu0 0.0
    %127 = vmatmul.mubr.f32.gmra.mrb[0].mxu0 %v52
    %v128 = vpop.f32.mrb[0].mxu0
    %v129 = vadd.f32 %v46, %v128
    %v130 = vpop.f32.mrb[0].mxu0
    %131 = vdwg.mxu0
    %v132 = vld [vmem:[%s3] sm:$0xff]
    %v133 = vld [vmem:[%s3 + $0x8] sm:$0xff]
    %v134 = vld [vmem:[%s3 + $0x10] sm:$0xff]
    %v135 = vld [vmem:[%s3 + $0x18] sm:$0xff]
    %v136 = vld [vmem:[%s4] sm:$0x1]
    %v137 = vlaneseq
    %v138 = vshrl.u32 %v137, 7
    %v139 = vsub.s32 0, %v138
    %v140 = vrot.slane %v136, %v139
    %vm141 = vcmask 261120
    %v143 = vsel %vm141, %v129, 0
    %145 = vmatprep.subr.mxu0 0.0
    %146 = vmatpush1.msra.mxu0 %v132
    %147 = vmatprep.subr.mxu0 0.0
    %148 = vmatpush1.msra.mxu0 %v133
    %149 = vmatprep.subr.mxu0 0.0
    %150 = vmatpush1.msra.mxu0 %v134
    %151 = vmatprep.subr.mxu0 0.0
    %152 = vmatpush1.msra.mxu0 %v135
    %153 = vmatprep.subr.mxu0 0.0
    %154 = vmatpush1.msra.mxu0 0.0
    %155 = vmatprep.subr.mxu0 0.0
    %156 = vmatpush1.msra.mxu0 0.0
    %157 = vmatprep.subr.mxu0 0.0
    %158 = vmatpush1.msra.mxu0 0.0
    %159 = vmatprep.subr.mxu0 0.0
    %160 = vmatpush1.msra.mxu0 0.0
    %161 = vmatprep.subr.mxu0 0.0
    %162 = vmatpush1.msra.mxu0 0.0
    %163 = vmatprep.subr.mxu0 0.0
    %164 = vmatpush1.msra.mxu0 0.0
    %165 = vmatprep.subr.mxu0 0.0
    %166 = vmatpush1.msra.mxu0 0.0
    %167 = vmatprep.subr.mxu0 0.0
    %168 = vmatpush1.msra.mxu0 0.0
    %169 = vmatprep.subr.mxu0 0.0
    %170 = vmatpush1.msra.mxu0 0.0
    %171 = vmatprep.subr.mxu0 0.0
    %172 = vmatpush1.msra.mxu0 0.0
    %173 = vmatprep.subr.mxu0 0.0
    %174 = vmatpush1.msra.mxu0 0.0
    %175 = vmatprep.subr.mxu0 0.0
    %176 = vmatpush1.msra.mxu0 0.0
    %177 = vmatprep.subr.mxu0 0.0
    %178 = vmatpush1.msra.mxu0 0.0
    %179 = vmatprep.subr.mxu0 0.0
    %180 = vmatpush1.msra.mxu0 0.0
    %181 = vmatprep.subr.mxu0 0.0
    %182 = vmatpush1.msra.mxu0 0.0
    %183 = vmatprep.subr.mxu0 0.0
    %184 = vmatpush1.msra.mxu0 0.0
    %185 = vmatprep.subr.mxu0 0.0
    %186 = vmatpush1.msra.mxu0 0.0
    %187 = vmatprep.subr.mxu0 0.0
    %188 = vmatpush1.msra.mxu0 0.0
    %189 = vmatprep.subr.mxu0 0.0
    %190 = vmatpush1.msra.mxu0 0.0
    %191 = vmatprep.subr.mxu0 0.0
    %192 = vmatpush1.msra.mxu0 0.0
    %193 = vmatprep.subr.mxu0 0.0
    %194 = vmatpush1.msra.mxu0 0.0
    %195 = vmatprep.subr.mxu0 0.0
    %196 = vmatpush1.msra.mxu0 0.0
    %197 = vmatprep.subr.mxu0 0.0
    %198 = vmatpush1.msra.mxu0 0.0
    %199 = vmatprep.subr.mxu0 0.0
    %200 = vmatpush1.msra.mxu0 0.0
    %201 = vmatprep.subr.mxu0 0.0
    %202 = vmatpush1.msra.mxu0 0.0
    %203 = vmatprep.subr.mxu0 0.0
    %204 = vmatpush1.msra.mxu0 0.0
    %205 = vmatprep.subr.mxu0 0.0
    %206 = vmatpush1.msra.mxu0 0.0
    %207 = vmatprep.subr.mxu0 0.0
    %208 = vmatpush1.msra.mxu0 0.0
    %209 = vmatprep.mubr.f32.mxu0 0.0
    %210 = vmatmul.mubr.f32.gmra.mrb[0].mxu0 %v143
    %v211 = vpop.f32.mrb[0].mxu0
    %v212 = vadd.f32 %v140, %v211
    %v213 = vpop.f32.mrb[0].mxu0
    %214 = vdwg.mxu0
    %s215 = scalar_lea.vmem %s3, 128
    %v216 = vld [vmem:[%s215] sm:$0xff]
    %v217 = vld [vmem:[%s215 + $0x8] sm:$0xff]
    %v218 = vld [vmem:[%s215 + $0x10] sm:$0xff]
    %v219 = vld [vmem:[%s215 + $0x18] sm:$0xff]
    %v220 = vld [vmem:[%s4 + $0x4] sm:$0x1]
    %v221 = vlaneseq
    %v222 = vshrl.u32 %v221, 7
    %v223 = vsub.s32 0, %v222
    %v224 = vrot.slane %v220, %v223
    %225 = vmatprep.subr.mxu0 0.0
    %226 = vmatpush1.msra.mxu0 %v216
    %227 = vmatprep.subr.mxu0 0.0
    %228 = vmatpush1.msra.mxu0 %v217
    %229 = vmatprep.subr.mxu0 0.0
    %230 = vmatpush1.msra.mxu0 %v218
    %231 = vmatprep.subr.mxu0 0.0
    %232 = vmatpush1.msra.mxu0 %v219
    %233 = vmatprep.subr.mxu0 0.0
    %234 = vmatpush1.msra.mxu0 0.0
    %235 = vmatprep.subr.mxu0 0.0
    %236 = vmatpush1.msra.mxu0 0.0
    %237 = vmatprep.subr.mxu0 0.0
    %238 = vmatpush1.msra.mxu0 0.0
    %239 = vmatprep.subr.mxu0 0.0
    %240 = vmatpush1.msra.mxu0 0.0
    %241 = vmatprep.subr.mxu0 0.0
    %242 = vmatpush1.msra.mxu0 0.0
    %243 = vmatprep.subr.mxu0 0.0
    %244 = vmatpush1.msra.mxu0 0.0
    %245 = vmatprep.subr.mxu0 0.0
    %246 = vmatpush1.msra.mxu0 0.0
    %247 = vmatprep.subr.mxu0 0.0
    %248 = vmatpush1.msra.mxu0 0.0
    %249 = vmatprep.subr.mxu0 0.0
    %250 = vmatpush1.msra.mxu0 0.0
    %251 = vmatprep.subr.mxu0 0.0
    %252 = vmatpush1.msra.mxu0 0.0
    %253 = vmatprep.subr.mxu0 0.0
    %254 = vmatpush1.msra.mxu0 0.0
    %255 = vmatprep.subr.mxu0 0.0
    %256 = vmatpush1.msra.mxu0 0.0
    %257 = vmatprep.subr.mxu0 0.0
    %258 = vmatpush1.msra.mxu0 0.0
    %259 = vmatprep.subr.mxu0 0.0
    %260 = vmatpush1.msra.mxu0 0.0
    %261 = vmatprep.subr.mxu0 0.0
    %262 = vmatpush1.msra.mxu0 0.0
    %263 = vmatprep.subr.mxu0 0.0
    %264 = vmatpush1.msra.mxu0 0.0
    %265 = vmatprep.subr.mxu0 0.0
    %266 = vmatpush1.msra.mxu0 0.0
    %267 = vmatprep.subr.mxu0 0.0
    %268 = vmatpush1.msra.mxu0 0.0
    %269 = vmatprep.subr.mxu0 0.0
    %270 = vmatpush1.msra.mxu0 0.0
    %271 = vmatprep.subr.mxu0 0.0
    %272 = vmatpush1.msra.mxu0 0.0
    %273 = vmatprep.subr.mxu0 0.0
    %274 = vmatpush1.msra.mxu0 0.0
    %275 = vmatprep.subr.mxu0 0.0
    %276 = vmatpush1.msra.mxu0 0.0
    %277 = vmatprep.subr.mxu0 0.0
    %278 = vmatpush1.msra.mxu0 0.0
    %279 = vmatprep.subr.mxu0 0.0
    %280 = vmatpush1.msra.mxu0 0.0
    %281 = vmatprep.subr.mxu0 0.0
    %282 = vmatpush1.msra.mxu0 0.0
    %283 = vmatprep.subr.mxu0 0.0
    %284 = vmatpush1.msra.mxu0 0.0
    %285 = vmatprep.subr.mxu0 0.0
    %286 = vmatpush1.msra.mxu0 0.0
    %287 = vmatprep.subr.mxu0 0.0
    %288 = vmatpush1.msra.mxu0 0.0
    %289 = vmatprep.mubr.f32.mxu0 0.0
    %290 = vmatmul.mubr.f32.gmra.mrb[0].mxu0 %v143
    %v291 = vpop.f32.mrb[0].mxu0
    %v292 = vadd.f32 %v224, %v291
    %v293 = vpop.f32.mrb[0].mxu0
    %294 = vdwg.mxu0
    %s295 = scalar_lea.vmem %s3, 256
    %v296 = vld [vmem:[%s295] sm:$0xff]
    %v297 = vld [vmem:[%s295 + $0x8] sm:$0xff]
    %v298 = vld [vmem:[%s295 + $0x10] sm:$0xff]
    %v299 = vld [vmem:[%s295 + $0x18] sm:$0xff]
    %v300 = vld [vmem:[%s4 + $0x8] sm:$0x1]
    %v301 = vlaneseq
    %v302 = vshrl.u32 %v301, 7
    %v303 = vsub.s32 0, %v302
    %v304 = vrot.slane %v300, %v303
    %305 = vmatprep.subr.mxu0 0.0
    %306 = vmatpush1.msra.mxu0 %v296
    %307 = vmatprep.subr.mxu0 0.0
    %308 = vmatpush1.msra.mxu0 %v297
    %309 = vmatprep.subr.mxu0 0.0
    %310 = vmatpush1.msra.mxu0 %v298
    %311 = vmatprep.subr.mxu0 0.0
    %312 = vmatpush1.msra.mxu0 %v299
    %313 = vmatprep.subr.mxu0 0.0
    %314 = vmatpush1.msra.mxu0 0.0
    %315 = vmatprep.subr.mxu0 0.0
    %316 = vmatpush1.msra.mxu0 0.0
    %317 = vmatprep.subr.mxu0 0.0
    %318 = vmatpush1.msra.mxu0 0.0
    %319 = vmatprep.subr.mxu0 0.0
    %320 = vmatpush1.msra.mxu0 0.0
    %321 = vmatprep.subr.mxu0 0.0
    %322 = vmatpush1.msra.mxu0 0.0
    %323 = vmatprep.subr.mxu0 0.0
    %324 = vmatpush1.msra.mxu0 0.0
    %325 = vmatprep.subr.mxu0 0.0
    %326 = vmatpush1.msra.mxu0 0.0
    %327 = vmatprep.subr.mxu0 0.0
    %328 = vmatpush1.msra.mxu0 0.0
    %329 = vmatprep.subr.mxu0 0.0
    %330 = vmatpush1.msra.mxu0 0.0
    %331 = vmatprep.subr.mxu0 0.0
    %332 = vmatpush1.msra.mxu0 0.0
    %333 = vmatprep.subr.mxu0 0.0
    %334 = vmatpush1.msra.mxu0 0.0
    %335 = vmatprep.subr.mxu0 0.0
    %336 = vmatpush1.msra.mxu0 0.0
    %337 = vmatprep.subr.mxu0 0.0
    %338 = vmatpush1.msra.mxu0 0.0
    %339 = vmatprep.subr.mxu0 0.0
    %340 = vmatpush1.msra.mxu0 0.0
    %341 = vmatprep.subr.mxu0 0.0
    %342 = vmatpush1.msra.mxu0 0.0
    %343 = vmatprep.subr.mxu0 0.0
    %344 = vmatpush1.msra.mxu0 0.0
    %345 = vmatprep.subr.mxu0 0.0
    %346 = vmatpush1.msra.mxu0 0.0
    %347 = vmatprep.subr.mxu0 0.0
    %348 = vmatpush1.msra.mxu0 0.0
    %349 = vmatprep.subr.mxu0 0.0
    %350 = vmatpush1.msra.mxu0 0.0
    %351 = vmatprep.subr.mxu0 0.0
    %352 = vmatpush1.msra.mxu0 0.0
    %353 = vmatprep.subr.mxu0 0.0
    %354 = vmatpush1.msra.mxu0 0.0
    %355 = vmatprep.subr.mxu0 0.0
    %356 = vmatpush1.msra.mxu0 0.0
    %357 = vmatprep.subr.mxu0 0.0
    %358 = vmatpush1.msra.mxu0 0.0
    %359 = vmatprep.subr.mxu0 0.0
    %360 = vmatpush1.msra.mxu0 0.0
    %361 = vmatprep.subr.mxu0 0.0
    %362 = vmatpush1.msra.mxu0 0.0
    %363 = vmatprep.subr.mxu0 0.0
    %364 = vmatpush1.msra.mxu0 0.0
    %365 = vmatprep.subr.mxu0 0.0
    %366 = vmatpush1.msra.mxu0 0.0
    %367 = vmatprep.subr.mxu0 0.0
    %368 = vmatpush1.msra.mxu0 0.0
    %369 = vmatprep.mubr.f32.mxu0 0.0
    %370 = vmatmul.mubr.f32.gmra.mrb[0].mxu0 %v143
    %v371 = vpop.f32.mrb[0].mxu0
    %v372 = vadd.f32 %v304, %v371
    %v373 = vpop.f32.mrb[0].mxu0
    %374 = vdwg.mxu0
    %vm375 = vcmask 64512
    %v377 = vsel %vm375, %v212, 0
    %v380 = vsel %vm375, %v292, 0
    %382 = vmatprep.subr.mxu0 0.0
    %383 = vmatpush1.xpose.msra.mxu0 %v380
    %384 = vmatprep.subr.mxu0 0.0
    %385 = vmatpush1.xpose.msra.mxu0 0.0
    %386 = vmatprep.subr.mxu0 0.0
    %387 = vmatpush1.xpose.msra.mxu0 0.0
    %388 = vmatprep.subr.mxu0 0.0
    %389 = vmatpush1.xpose.msra.mxu0 0.0
    %390 = vmatprep.subr.mxu0 0.0
    %391 = vmatpush1.xpose.msra.mxu0 0.0
    %392 = vmatprep.subr.mxu0 0.0
    %393 = vmatpush1.xpose.msra.mxu0 0.0
    %394 = vmatprep.subr.mxu0 0.0
    %395 = vmatpush1.xpose.msra.mxu0 0.0
    %396 = vmatprep.subr.mxu0 0.0
    %397 = vmatpush1.xpose.msra.mxu0 0.0
    %398 = vmatprep.subr.mxu0 0.0
    %399 = vmatpush1.xpose.msra.mxu0 0.0
    %400 = vmatprep.subr.mxu0 0.0
    %401 = vmatpush1.xpose.msra.mxu0 0.0
    %402 = vmatprep.subr.mxu0 0.0
    %403 = vmatpush1.xpose.msra.mxu0 0.0
    %404 = vmatprep.subr.mxu0 0.0
    %405 = vmatpush1.xpose.msra.mxu0 0.0
    %406 = vmatprep.subr.mxu0 0.0
    %407 = vmatpush1.xpose.msra.mxu0 0.0
    %408 = vmatprep.subr.mxu0 0.0
    %409 = vmatpush1.xpose.msra.mxu0 0.0
    %410 = vmatprep.subr.mxu0 0.0
    %411 = vmatpush1.xpose.msra.mxu0 0.0
    %412 = vmatprep.subr.mxu0 0.0
    %413 = vmatpush1.xpose.msra.mxu0 0.0
    %414 = vmatprep.subr.mxu0 0.0
    %415 = vmatpush1.xpose.msra.mxu0 0.0
    %416 = vmatprep.subr.mxu0 0.0
    %417 = vmatpush1.xpose.msra.mxu0 0.0
    %418 = vmatprep.subr.mxu0 0.0
    %419 = vmatpush1.xpose.msra.mxu0 0.0
    %420 = vmatprep.subr.mxu0 0.0
    %421 = vmatpush1.xpose.msra.mxu0 0.0
    %422 = vmatprep.subr.mxu0 0.0
    %423 = vmatpush1.xpose.msra.mxu0 0.0
    %424 = vmatprep.subr.mxu0 0.0
    %425 = vmatpush1.xpose.msra.mxu0 0.0
    %426 = vmatprep.subr.mxu0 0.0
    %427 = vmatpush1.xpose.msra.mxu0 0.0
    %428 = vmatprep.subr.mxu0 0.0
    %429 = vmatpush1.xpose.msra.mxu0 0.0
    %430 = vmatprep.subr.mxu0 0.0
    %431 = vmatpush1.xpose.msra.mxu0 0.0
    %432 = vmatprep.subr.mxu0 0.0
    %433 = vmatpush1.xpose.msra.mxu0 0.0
    %434 = vmatprep.subr.mxu0 0.0
    %435 = vmatpush1.xpose.msra.mxu0 0.0
    %436 = vmatprep.subr.mxu0 0.0
    %437 = vmatpush1.xpose.msra.mxu0 0.0
    %438 = vmatprep.subr.mxu0 0.0
    %439 = vmatpush1.xpose.msra.mxu0 0.0
    %440 = vmatprep.subr.mxu0 0.0
    %441 = vmatpush1.xpose.msra.mxu0 0.0
    %442 = vmatprep.subr.mxu0 0.0
    %443 = vmatpush1.xpose.msra.mxu0 0.0
    %444 = vmatprep.subr.mxu0 0.0
    %445 = vmatpush1.xpose.msra.mxu0 0.0
    %446 = vmatprep.mubr.f32.mxu0 0.0
    %447 = vmatmul.mubr.f32.gmra.mrb[0].mxu0 %v377
    %v448 = vpop.f32.mrb[0].mxu0
    %v449 = vadd.f32 0.0, %v448
    %v450 = vpop.f32.mrb[0].mxu0
    %451 = vdwg.mxu0
    %v452 = vmul.f32 %v449, 0.35355338
    %v453 = vsel %vm375, %v452, -inf
    %454 = vmax.xlane.f32.xlu0 %v453
    %v455 = vpop.xlane.xlu0 %454
    %v456 = vsub.f32 %v452, %v455
    %v457 = vmul.f32 %v456, 1.442695
    %v458 = vpow.pop %v457
    %v459 = vsel %vm375, %v458, 0.0
    %460 = vadd.xlane.f32.xlu0 %v459
    %v461 = vpop.xlane.xlu0 %460
    %v462 = vrcp.pop %v461
    %v463 = vmul.f32 %v458, %v462
    %v465 = vsel %vm375, %v463, 0
    %467 = vmatprep.subr.mxu0 0.0
    %468 = vmatpush1.msra.mxu0 %v372
    %469 = vmatprep.subr.mxu0 0.0
    %470 = vmatpush1.msra.mxu0 0.0
    %471 = vmatprep.subr.mxu0 0.0
    %472 = vmatpush1.msra.mxu0 0.0
    %473 = vmatprep.subr.mxu0 0.0
    %474 = vmatpush1.msra.mxu0 0.0
    %475 = vmatprep.subr.mxu0 0.0
    %476 = vmatpush1.msra.mxu0 0.0
    %477 = vmatprep.subr.mxu0 0.0
    %478 = vmatpush1.msra.mxu0 0.0
    %479 = vmatprep.subr.mxu0 0.0
    %480 = vmatpush1.msra.mxu0 0.0
    %481 = vmatprep.subr.mxu0 0.0
    %482 = vmatpush1.msra.mxu0 0.0
    %483 = vmatprep.subr.mxu0 0.0
    %484 = vmatpush1.msra.mxu0 0.0
    %485 = vmatprep.subr.mxu0 0.0
    %486 = vmatpush1.msra.mxu0 0.0
    %487 = vmatprep.subr.mxu0 0.0
    %488 = vmatpush1.msra.mxu0 0.0
    %489 = vmatprep.subr.mxu0 0.0
    %490 = vmatpush1.msra.mxu0 0.0
    %491 = vmatprep.subr.mxu0 0.0
    %492 = vmatpush1.msra.mxu0 0.0
    %493 = vmatprep.subr.mxu0 0.0
    %494 = vmatpush1.msra.mxu0 0.0
    %495 = vmatprep.subr.mxu0 0.0
    %496 = vmatpush1.msra.mxu0 0.0
    %497 = vmatprep.subr.mxu0 0.0
    %498 = vmatpush1.msra.mxu0 0.0
    %499 = vmatprep.subr.mxu0 0.0
    %500 = vmatpush1.msra.mxu0 0.0
    %501 = vmatprep.subr.mxu0 0.0
    %502 = vmatpush1.msra.mxu0 0.0
    %503 = vmatprep.subr.mxu0 0.0
    %504 = vmatpush1.msra.mxu0 0.0
    %505 = vmatprep.subr.mxu0 0.0
    %506 = vmatpush1.msra.mxu0 0.0
    %507 = vmatprep.subr.mxu0 0.0
    %508 = vmatpush1.msra.mxu0 0.0
    %509 = vmatprep.subr.mxu0 0.0
    %510 = vmatpush1.msra.mxu0 0.0
    %511 = vmatprep.subr.mxu0 0.0
    %512 = vmatpush1.msra.mxu0 0.0
    %513 = vmatprep.subr.mxu0 0.0
    %514 = vmatpush1.msra.mxu0 0.0
    %515 = vmatprep.subr.mxu0 0.0
    %516 = vmatpush1.msra.mxu0 0.0
    %517 = vmatprep.subr.mxu0 0.0
    %518 = vmatpush1.msra.mxu0 0.0
    %519 = vmatprep.subr.mxu0 0.0
    %520 = vmatpush1.msra.mxu0 0.0
    %521 = vmatprep.subr.mxu0 0.0
    %522 = vmatpush1.msra.mxu0 0.0
    %523 = vmatprep.subr.mxu0 0.0
    %524 = vmatpush1.msra.mxu0 0.0
    %525 = vmatprep.subr.mxu0 0.0
    %526 = vmatpush1.msra.mxu0 0.0
    %527 = vmatprep.subr.mxu0 0.0
    %528 = vmatpush1.msra.mxu0 0.0
    %529 = vmatprep.subr.mxu0 0.0
    %530 = vmatpush1.msra.mxu0 0.0
    %531 = vmatprep.mubr.f32.mxu0 0.0
    %532 = vmatmul.mubr.f32.gmra.mrb[0].mxu0 %v465
    %v533 = vpop.f32.mrb[0].mxu0
    %v534 = vadd.f32 0.0, %v533
    %v535 = vpop.f32.mrb[0].mxu0
    %536 = vdwg.mxu0
    %v537 = vld [vmem:[%s5] sm:$0xff]
    %s538 = scalar_lea.vmem %s3, 32
    %v539 = vld [vmem:[%s538] sm:$0xff]
    %v540 = vld [vmem:[%s538 + $0x8] sm:$0xff]
    %v541 = vld [vmem:[%s538 + $0x10] sm:$0xff]
    %v542 = vld [vmem:[%s538 + $0x18] sm:$0xff]
    %v543 = vld [vmem:[%s4 + $0x1] sm:$0x1]
    %v544 = vlaneseq
    %v545 = vshrl.u32 %v544, 7
    %v546 = vsub.s32 0, %v545
    %v547 = vrot.slane %v543, %v546
    %548 = vmatprep.subr.mxu0 0.0
    %549 = vmatpush1.msra.mxu0 %v539
    %550 = vmatprep.subr.mxu0 0.0
    %551 = vmatpush1.msra.mxu0 %v540
    %552 = vmatprep.subr.mxu0 0.0
    %553 = vmatpush1.msra.mxu0 %v541
    %554 = vmatprep.subr.mxu0 0.0
    %555 = vmatpush1.msra.mxu0 %v542
    %556 = vmatprep.subr.mxu0 0.0
    %557 = vmatpush1.msra.mxu0 0.0
    %558 = vmatprep.subr.mxu0 0.0
    %559 = vmatpush1.msra.mxu0 0.0
    %560 = vmatprep.subr.mxu0 0.0
    %561 = vmatpush1.msra.mxu0 0.0
    %562 = vmatprep.subr.mxu0 0.0
    %563 = vmatpush1.msra.mxu0 0.0
    %564 = vmatprep.subr.mxu0 0.0
    %565 = vmatpush1.msra.mxu0 0.0
    %566 = vmatprep.subr.mxu0 0.0
    %567 = vmatpush1.msra.mxu0 0.0
    %568 = vmatprep.subr.mxu0 0.0
    %569 = vmatpush1.msra.mxu0 0.0
    %570 = vmatprep.subr.mxu0 0.0
    %571 = vmatpush1.msra.mxu0 0.0
    %572 = vmatprep.subr.mxu0 0.0
    %573 = vmatpush1.msra.mxu0 0.0
    %574 = vmatprep.subr.mxu0 0.0
    %575 = vmatpush1.msra.mxu0 0.0
    %576 = vmatprep.subr.mxu0 0.0
    %577 = vmatpush1.msra.mxu0 0.0
    %578 = vmatprep.subr.mxu0 0.0
    %579 = vmatpush1.msra.mxu0 0.0
    %580 = vmatprep.subr.mxu0 0.0
    %581 = vmatpush1.msra.mxu0 0.0
    %582 = vmatprep.subr.mxu0 0.0
    %583 = vmatpush1.msra.mxu0 0.0
    %584 = vmatprep.subr.mxu0 0.0
    %585 = vmatpush1.msra.mxu0 0.0
    %586 = vmatprep.subr.mxu0 0.0
    %587 = vmatpush1.msra.mxu0 0.0
    %588 = vmatprep.subr.mxu0 0.0
    %589 = vmatpush1.msra.mxu0 0.0
    %590 = vmatprep.subr.mxu0 0.0
    %591 = vmatpush1.msra.mxu0 0.0
    %592 = vmatprep.subr.mxu0 0.0
    %593 = vmatpush1.msra.mxu0 0.0
    %594 = vmatprep.subr.mxu0 0.0
    %595 = vmatpush1.msra.mxu0 0.0
    %596 = vmatprep.subr.mxu0 0.0
    %597 = vmatpush1.msra.mxu0 0.0
    %598 = vmatprep.subr.mxu0 0.0
    %599 = vmatpush1.msra.mxu0 0.0
    %600 = vmatprep.subr.mxu0 0.0
    %601 = vmatpush1.msra.mxu0 0.0
    %602 = vmatprep.subr.mxu0 0.0
    %603 = vmatpush1.msra.mxu0 0.0
    %604 = vmatprep.subr.mxu0 0.0
    %605 = vmatpush1.msra.mxu0 0.0
    %606 = vmatprep.subr.mxu0 0.0
    %607 = vmatpush1.msra.mxu0 0.0
    %608 = vmatprep.subr.mxu0 0.0
    %609 = vmatpush1.msra.mxu0 0.0
    %610 = vmatprep.subr.mxu0 0.0
    %611 = vmatpush1.msra.mxu0 0.0
    %612 = vmatprep.mubr.f32.mxu0 0.0
    %613 = vmatmul.mubr.f32.gmra.mrb[0].mxu0 %v143
    %v614 = vpop.f32.mrb[0].mxu0
    %v615 = vadd.f32 %v547, %v614
    %v616 = vpop.f32.mrb[0].mxu0
    %617 = vdwg.mxu0
    %s618 = scalar_lea.vmem %s3, 160
    %v619 = vld [vmem:[%s618] sm:$0xff]
    %v620 = vld [vmem:[%s618 + $0x8] sm:$0xff]
    %v621 = vld [vmem:[%s618 + $0x10] sm:$0xff]
    %v622 = vld [vmem:[%s618 + $0x18] sm:$0xff]
    %v623 = vld [vmem:[%s4 + $0x5] sm:$0x1]
    %v624 = vlaneseq
    %v625 = vshrl.u32 %v624, 7
    %v626 = vsub.s32 0, %v625
    %v627 = vrot.slane %v623, %v626
    %628 = vmatprep.subr.mxu0 0.0
    %629 = vmatpush1.msra.mxu0 %v619
    %630 = vmatprep.subr.mxu0 0.0
    %631 = vmatpush1.msra.mxu0 %v620
    %632 = vmatprep.subr.mxu0 0.0
    %633 = vmatpush1.msra.mxu0 %v621
    %634 = vmatprep.subr.mxu0 0.0
    %635 = vmatpush1.msra.mxu0 %v622
    %636 = vmatprep.subr.mxu0 0.0
    %637 = vmatpush1.msra.mxu0 0.0
    %638 = vmatprep.subr.mxu0 0.0
    %639 = vmatpush1.msra.mxu0 0.0
    %640 = vmatprep.subr.mxu0 0.0
    %641 = vmatpush1.msra.mxu0 0.0
    %642 = vmatprep.subr.mxu0 0.0
    %643 = vmatpush1.msra.mxu0 0.0
    %644 = vmatprep.subr.mxu0 0.0
    %645 = vmatpush1.msra.mxu0 0.0
    %646 = vmatprep.subr.mxu0 0.0
    %647 = vmatpush1.msra.mxu0 0.0
    %648 = vmatprep.subr.mxu0 0.0
    %649 = vmatpush1.msra.mxu0 0.0
    %650 = vmatprep.subr.mxu0 0.0
    %651 = vmatpush1.msra.mxu0 0.0
    %652 = vmatprep.subr.mxu0 0.0
    %653 = vmatpush1.msra.mxu0 0.0
    %654 = vmatprep.subr.mxu0 0.0
    %655 = vmatpush1.msra.mxu0 0.0
    %656 = vmatprep.subr.mxu0 0.0
    %657 = vmatpush1.msra.mxu0 0.0
    %658 = vmatprep.subr.mxu0 0.0
    %659 = vmatpush1.msra.mxu0 0.0
    %660 = vmatprep.subr.mxu0 0.0
    %661 = vmatpush1.msra.mxu0 0.0
    %662 = vmatprep.subr.mxu0 0.0
    %663 = vmatpush1.msra.mxu0 0.0
    %664 = vmatprep.subr.mxu0 0.0
    %665 = vmatpush1.msra.mxu0 0.0
    %666 = vmatprep.subr.mxu0 0.0
    %667 = vmatpush1.msra.mxu0 0.0
    %668 = vmatprep.subr.mxu0 0.0
    %669 = vmatpush1.msra.mxu0 0.0
    %670 = vmatprep.subr.mxu0 0.0
    %671 = vmatpush1.msra.mxu0 0.0
    %672 = vmatprep.subr.mxu0 0.0
    %673 = vmatpush1.msra.mxu0 0.0
    %674 = vmatprep.subr.mxu0 0.0
    %675 = vmatpush1.msra.mxu0 0.0
    %676 = vmatprep.subr.mxu0 0.0
    %677 = vmatpush1.msra.mxu0 0.0
    %678 = vmatprep.subr.mxu0 0.0
    %679 = vmatpush1.msra.mxu0 0.0
    %680 = vmatprep.subr.mxu0 0.0
    %681 = vmatpush1.msra.mxu0 0.0
    %682 = vmatprep.subr.mxu0 0.0
    %683 = vmatpush1.msra.mxu0 0.0
    %684 = vmatprep.subr.mxu0 0.0
    %685 = vmatpush1.msra.mxu0 0.0
    %686 = vmatprep.subr.mxu0 0.0
    %687 = vmatpush1.msra.mxu0 0.0
    %688 = vmatprep.subr.mxu0 0.0
    %689 = vmatpush1.msra.mxu0 0.0
    %690 = vmatprep.subr.mxu0 0.0
    %691 = vmatpush1.msra.mxu0 0.0
    %692 = vmatprep.mubr.f32.mxu0 0.0
    %693 = vmatmul.mubr.f32.gmra.mrb[0].mxu0 %v143
    %v694 = vpop.f32.mrb[0].mxu0
    %v695 = vadd.f32 %v627, %v694
    %v696 = vpop.f32.mrb[0].mxu0
    %697 = vdwg.mxu0
    %s698 = scalar_lea.vmem %s3, 288
    %v699 = vld [vmem:[%s698] sm:$0xff]
    %v700 = vld [vmem:[%s698 + $0x8] sm:$0xff]
    %v701 = vld [vmem:[%s698 + $0x10] sm:$0xff]
    %v702 = vld [vmem:[%s698 + $0x18] sm:$0xff]
    %v703 = vld [vmem:[%s4 + $0x9] sm:$0x1]
    %v704 = vlaneseq
    %v705 = vshrl.u32 %v704, 7
    %v706 = vsub.s32 0, %v705
    %v707 = vrot.slane %v703, %v706
    %708 = vmatprep.subr.mxu0 0.0
    %709 = vmatpush1.msra.mxu0 %v699
    %710 = vmatprep.subr.mxu0 0.0
    %711 = vmatpush1.msra.mxu0 %v700
    %712 = vmatprep.subr.mxu0 0.0
    %713 = vmatpush1.msra.mxu0 %v701
    %714 = vmatprep.subr.mxu0 0.0
    %715 = vmatpush1.msra.mxu0 %v702
    %716 = vmatprep.subr.mxu0 0.0
    %717 = vmatpush1.msra.mxu0 0.0
    %718 = vmatprep.subr.mxu0 0.0
    %719 = vmatpush1.msra.mxu0 0.0
    %720 = vmatprep.subr.mxu0 0.0
    %721 = vmatpush1.msra.mxu0 0.0
    %722 = vmatprep.subr.mxu0 0.0
    %723 = vmatpush1.msra.mxu0 0.0
    %724 = vmatprep.subr.mxu0 0.0
    %725 = vmatpush1.msra.mxu0 0.0
    %726 = vmatprep.subr.mxu0 0.0
    %727 = vmatpush1.msra.mxu0 0.0
    %728 = vmatprep.subr.mxu0 0.0
    %729 = vmatpush1.msra.mxu0 0.0
    %730 = vmatprep.subr.mxu0 0.0
    %731 = vmatpush1.msra.mxu0 0.0
    %732 = vmatprep.subr.mxu0 0.0
    %733 = vmatpush1.msra.mxu0 0.0
    %734 = vmatprep.subr.mxu0 0.0
    %735 = vmatpush1.msra.mxu0 0.0
    %736 = vmatprep.subr.mxu0 0.0
    %737 = vmatpush1.msra.mxu0 0.0
    %738 = vmatprep.subr.mxu0 0.0
    %739 = vmatpush1.msra.mxu0 0.0
    %740 = vmatprep.subr.mxu0 0.0
    %741 = vmatpush1.msra.mxu0 0.0
    %742 = vmatprep.subr.mxu0 0.0
    %743 = vmatpush1.msra.mxu0 0.0
    %744 = vmatprep.subr.mxu0 0.0
    %745 = vmatpush1.msra.mxu0 0.0
    %746 = vmatprep.subr.mxu0 0.0
    %747 = vmatpush1.msra.mxu0 0.0
    %748 = vmatprep.subr.mxu0 0.0
    %749 = vmatpush1.msra.mxu0 0.0
    %750 = vmatprep.subr.mxu0 0.0
    %751 = vmatpush1.msra.mxu0 0.0
    %752 = vmatprep.subr.mxu0 0.0
    %753 = vmatpush1.msra.mxu0 0.0
    %754 = vmatprep.subr.mxu0 0.0
    %755 = vmatpush1.msra.mxu0 0.0
    %756 = vmatprep.subr.mxu0 0.0
    %757 = vmatpush1.msra.mxu0 0.0
    %758 = vmatprep.subr.mxu0 0.0
    %759 = vmatpush1.msra.mxu0 0.0
    %760 = vmatprep.subr.mxu0 0.0
    %761 = vmatpush1.msra.mxu0 0.0
    %762 = vmatprep.subr.mxu0 0.0
    %763 = vmatpush1.msra.mxu0 0.0
    %764 = vmatprep.subr.mxu0 0.0
    %765 = vmatpush1.msra.mxu0 0.0
    %766 = vmatprep.subr.mxu0 0.0
    %767 = vmatpush1.msra.mxu0 0.0
    %768 = vmatprep.subr.mxu0 0.0
    %769 = vmatpush1.msra.mxu0 0.0
    %770 = vmatprep.subr.mxu0 0.0
    %771 = vmatpush1.msra.mxu0 0.0
    %772 = vmatprep.mubr.f32.mxu0 0.0
    %773 = vmatmul.mubr.f32.gmra.mrb[0].mxu0 %v143
    %v774 = vpop.f32.mrb[0].mxu0
    %v775 = vadd.f32 %v707, %v774
    %v776 = vpop.f32.mrb[0].mxu0
    %777 = vdwg.mxu0
    %v779 = vsel %vm375, %v615, 0
    %v782 = vsel %vm375, %v695, 0
    %784 = vmatprep.subr.mxu0 0.0
    %785 = vmatpush1.xpose.msra.mxu0 %v782
    %786 = vmatprep.subr.mxu0 0.0
    %787 = vmatpush1.xpose.msra.mxu0 0.0
    %788 = vmatprep.subr.mxu0 0.0
    %789 = vmatpush1.xpose.msra.mxu0 0.0
    %790 = vmatprep.subr.mxu0 0.0
    %791 = vmatpush1.xpose.msra.mxu0 0.0
    %792 = vmatprep.subr.mxu0 0.0
    %793 = vmatpush1.xpose.msra.mxu0 0.0
    %794 = vmatprep.subr.mxu0 0.0
    %795 = vmatpush1.xpose.msra.mxu0 0.0
    %796 = vmatprep.subr.mxu0 0.0
    %797 = vmatpush1.xpose.msra.mxu0 0.0
    %798 = vmatprep.subr.mxu0 0.0
    %799 = vmatpush1.xpose.msra.mxu0 0.0
    %800 = vmatprep.subr.mxu0 0.0
    %801 = vmatpush1.xpose.msra.mxu0 0.0
    %802 = vmatprep.subr.mxu0 0.0
    %803 = vmatpush1.xpose.msra.mxu0 0.0
    %804 = vmatprep.subr.mxu0 0.0
    %805 = vmatpush1.xpose.msra.mxu0 0.0
    %806 = vmatprep.subr.mxu0 0.0
    %807 = vmatpush1.xpose.msra.mxu0 0.0
    %808 = vmatprep.subr.mxu0 0.0
    %809 = vmatpush1.xpose.msra.mxu0 0.0
    %810 = vmatprep.subr.mxu0 0.0
    %811 = vmatpush1.xpose.msra.mxu0 0.0
    %812 = vmatprep.subr.mxu0 0.0
    %813 = vmatpush1.xpose.msra.mxu0 0.0
    %814 = vmatprep.subr.mxu0 0.0
    %815 = vmatpush1.xpose.msra.mxu0 0.0
    %816 = vmatprep.subr.mxu0 0.0
    %817 = vmatpush1.xpose.msra.mxu0 0.0
    %818 = vmatprep.subr.mxu0 0.0
    %819 = vmatpush1.xpose.msra.mxu0 0.0
    %820 = vmatprep.subr.mxu0 0.0
    %821 = vmatpush1.xpose.msra.mxu0 0.0
    %822 = vmatprep.subr.mxu0 0.0
    %823 = vmatpush1.xpose.msra.mxu0 0.0
    %824 = vmatprep.subr.mxu0 0.0
    %825 = vmatpush1.xpose.msra.mxu0 0.0
    %826 = vmatprep.subr.mxu0 0.0
    %827 = vmatpush1.xpose.msra.mxu0 0.0
    %828 = vmatprep.subr.mxu0 0.0
    %829 = vmatpush1.xpose.msra.mxu0 0.0
    %830 = vmatprep.subr.mxu0 0.0
    %831 = vmatpush1.xpose.msra.mxu0 0.0
    %832 = vmatprep.subr.mxu0 0.0
    %833 = vmatpush1.xpose.msra.mxu0 0.0
    %834 = vmatprep.subr.mxu0 0.0
    %835 = vmatpush1.xpose.msra.mxu0 0.0
    %836 = vmatprep.subr.mxu0 0.0
    %837 = vmatpush1.xpose.msra.mxu0 0.0
    %838 = vmatprep.subr.mxu0 0.0
    %839 = vmatpush1.xpose.msra.mxu0 0.0
    %840 = vmatprep.subr.mxu0 0.0
    %841 = vmatpush1.xpose.msra.mxu0 0.0
    %842 = vmatprep.subr.mxu0 0.0
    %843 = vmatpush1.xpose.msra.mxu0 0.0
    %844 = vmatprep.subr.mxu0 0.0
    %845 = vmatpush1.xpose.msra.mxu0 0.0
    %846 = vmatprep.subr.mxu0 0.0
    %847 = vmatpush1.xpose.msra.mxu0 0.0
    %848 = vmatprep.mubr.f32.mxu0 0.0
    %849 = vmatmul.mubr.f32.gmra.mrb[0].mxu0 %v779
    %v850 = vpop.f32.mrb[0].mxu0
    %v851 = vadd.f32 0.0, %v850
    %v852 = vpop.f32.mrb[0].mxu0
    %853 = vdwg.mxu0
    %v854 = vmul.f32 %v851, 0.35355338
    %v855 = vsel %vm375, %v854, -inf
    %856 = vmax.xlane.f32.xlu0 %v855
    %v857 = vpop.xlane.xlu0 %856
    %v858 = vsub.f32 %v854, %v857
    %v859 = vmul.f32 %v858, 1.442695
    %v860 = vpow.pop %v859
    %v861 = vsel %vm375, %v860, 0.0
    %862 = vadd.xlane.f32.xlu0 %v861
    %v863 = vpop.xlane.xlu0 %862
    %v864 = vrcp.pop %v863
    %v865 = vmul.f32 %v860, %v864
    %v867 = vsel %vm375, %v865, 0
    %869 = vmatprep.subr.mxu0 0.0
    %870 = vmatpush1.msra.mxu0 %v775
    %871 = vmatprep.subr.mxu0 0.0
    %872 = vmatpush1.msra.mxu0 0.0
    %873 = vmatprep.subr.mxu0 0.0
    %874 = vmatpush1.msra.mxu0 0.0
    %875 = vmatprep.subr.mxu0 0.0
    %876 = vmatpush1.msra.mxu0 0.0
    %877 = vmatprep.subr.mxu0 0.0
    %878 = vmatpush1.msra.mxu0 0.0
    %879 = vmatprep.subr.mxu0 0.0
    %880 = vmatpush1.msra.mxu0 0.0
    %881 = vmatprep.subr.mxu0 0.0
    %882 = vmatpush1.msra.mxu0 0.0
    %883 = vmatprep.subr.mxu0 0.0
    %884 = vmatpush1.msra.mxu0 0.0
    %885 = vmatprep.subr.mxu0 0.0
    %886 = vmatpush1.msra.mxu0 0.0
    %887 = vmatprep.subr.mxu0 0.0
    %888 = vmatpush1.msra.mxu0 0.0
    %889 = vmatprep.subr.mxu0 0.0
    %890 = vmatpush1.msra.mxu0 0.0
    %891 = vmatprep.subr.mxu0 0.0
    %892 = vmatpush1.msra.mxu0 0.0
    %893 = vmatprep.subr.mxu0 0.0
    %894 = vmatpush1.msra.mxu0 0.0
    %895 = vmatprep.subr.mxu0 0.0
    %896 = vmatpush1.msra.mxu0 0.0
    %897 = vmatprep.subr.mxu0 0.0
    %898 = vmatpush1.msra.mxu0 0.0
    %899 = vmatprep.subr.mxu0 0.0
    %900 = vmatpush1.msra.mxu0 0.0
    %901 = vmatprep.subr.mxu0 0.0
    %902 = vmatpush1.msra.mxu0 0.0
    %903 = vmatprep.subr.mxu0 0.0
    %904 = vmatpush1.msra.mxu0 0.0
    %905 = vmatprep.subr.mxu0 0.0
    %906 = vmatpush1.msra.mxu0 0.0
    %907 = vmatprep.subr.mxu0 0.0
    %908 = vmatpush1.msra.mxu0 0.0
    %909 = vmatprep.subr.mxu0 0.0
    %910 = vmatpush1.msra.mxu0 0.0
    %911 = vmatprep.subr.mxu0 0.0
    %912 = vmatpush1.msra.mxu0 0.0
    %913 = vmatprep.subr.mxu0 0.0
    %914 = vmatpush1.msra.mxu0 0.0
    %915 = vmatprep.subr.mxu0 0.0
    %916 = vmatpush1.msra.mxu0 0.0
    %917 = vmatprep.subr.mxu0 0.0
    %918 = vmatpush1.msra.mxu0 0.0
    %919 = vmatprep.subr.mxu0 0.0
    %920 = vmatpush1.msra.mxu0 0.0
    %921 = vmatprep.subr.mxu0 0.0
    %922 = vmatpush1.msra.mxu0 0.0
    %923 = vmatprep.subr.mxu0 0.0
    %924 = vmatpush1.msra.mxu0 0.0
    %925 = vmatprep.subr.mxu0 0.0
    %926 = vmatpush1.msra.mxu0 0.0
    %927 = vmatprep.subr.mxu0 0.0
    %928 = vmatpush1.msra.mxu0 0.0
    %929 = vmatprep.subr.mxu0 0.0
    %930 = vmatpush1.msra.mxu0 0.0
    %931 = vmatprep.subr.mxu0 0.0
    %932 = vmatpush1.msra.mxu0 0.0
    %933 = vmatprep.mubr.f32.mxu0 0.0
    %934 = vmatmul.mubr.f32.gmra.mrb[0].mxu0 %v867
    %v935 = vpop.f32.mrb[0].mxu0
    %v936 = vadd.f32 0.0, %v935
    %v937 = vpop.f32.mrb[0].mxu0
    %938 = vdwg.mxu0
    %s939 = scalar_lea.vmem %s5, 8
    %v940 = vld [vmem:[%s939] sm:$0xff]
    %v942 = vsel %vm375, %v936, 0
    %944 = vmatprep.subr.mxu0 0.0
    %945 = vmatpush1.msra.mxu0 %v940
    %946 = vmatprep.subr.mxu0 0.0
    %947 = vmatpush1.msra.mxu0 0.0
    %948 = vmatprep.subr.mxu0 0.0
    %949 = vmatpush1.msra.mxu0 0.0
    %950 = vmatprep.subr.mxu0 0.0
    %951 = vmatpush1.msra.mxu0 0.0
    %952 = vmatprep.subr.mxu0 0.0
    %953 = vmatpush1.msra.mxu0 0.0
    %954 = vmatprep.subr.mxu0 0.0
    %955 = vmatpush1.msra.mxu0 0.0
    %956 = vmatprep.subr.mxu0 0.0
    %957 = vmatpush1.msra.mxu0 0.0
    %958 = vmatprep.subr.mxu0 0.0
    %959 = vmatpush1.msra.mxu0 0.0
    %960 = vmatprep.subr.mxu0 0.0
    %961 = vmatpush1.msra.mxu0 0.0
    %962 = vmatprep.subr.mxu0 0.0
    %963 = vmatpush1.msra.mxu0 0.0
    %964 = vmatprep.subr.mxu0 0.0
    %965 = vmatpush1.msra.mxu0 0.0
    %966 = vmatprep.subr.mxu0 0.0
    %967 = vmatpush1.msra.mxu0 0.0
    %968 = vmatprep.subr.mxu0 0.0
    %969 = vmatpush1.msra.mxu0 0.0
    %970 = vmatprep.subr.mxu0 0.0
    %971 = vmatpush1.msra.mxu0 0.0
    %972 = vmatprep.subr.mxu0 0.0
    %973 = vmatpush1.msra.mxu0 0.0
    %974 = vmatprep.subr.mxu0 0.0
    %975 = vmatpush1.msra.mxu0 0.0
    %976 = vmatprep.subr.mxu0 0.0
    %977 = vmatpush1.msra.mxu0 0.0
    %978 = vmatprep.subr.mxu0 0.0
    %979 = vmatpush1.msra.mxu0 0.0
    %980 = vmatprep.subr.mxu0 0.0
    %981 = vmatpush1.msra.mxu0 0.0
    %982 = vmatprep.subr.mxu0 0.0
    %983 = vmatpush1.msra.mxu0 0.0
    %984 = vmatprep.subr.mxu0 0.0
    %985 = vmatpush1.msra.mxu0 0.0
    %986 = vmatprep.subr.mxu0 0.0
    %987 = vmatpush1.msra.mxu0 0.0
    %988 = vmatprep.subr.mxu0 0.0
    %989 = vmatpush1.msra.mxu0 0.0
    %990 = vmatprep.subr.mxu0 0.0
    %991 = vmatpush1.msra.mxu0 0.0
    %992 = vmatprep.subr.mxu0 0.0
    %993 = vmatpush1.msra.mxu0 0.0
    %994 = vmatprep.subr.mxu0 0.0
    %995 = vmatpush1.msra.mxu0 0.0
    %996 = vmatprep.subr.mxu0 0.0
    %997 = vmatpush1.msra.mxu0 0.0
    %998 = vmatprep.subr.mxu0 0.0
    %999 = vmatpush1.msra.mxu0 0.0
    %1000 = vmatprep.subr.mxu0 0.0
    %1001 = vmatpush1.msra.mxu0 0.0
    %1002 = vmatprep.subr.mxu0 0.0
    %1003 = vmatpush1.msra.mxu0 0.0
    %1004 = vmatprep.subr.mxu0 0.0
    %1005 = vmatpush1.msra.mxu0 0.0
    %1006 = vmatprep.subr.mxu0 0.0
    %1007 = vmatpush1.msra.mxu0 0.0
    %1008 = vmatprep.mubr.f32.mxu0 0.0
    %1009 = vmatmul.mubr.f32.gmra.mrb[0].mxu0 %v942
    %v1010 = vpop.f32.mrb[0].mxu0
    %v1011 = vadd.f32 0.0, %v1010
    %v1012 = vpop.f32.mrb[0].mxu0
    %1013 = vdwg.mxu0
    %v1015 = vsel %vm375, %v534, 0
    %1017 = vmatprep.subr.mxu0 0.0
    %1018 = vmatpush1.msra.mxu0 %v537
    %1019 = vmatprep.subr.mxu0 0.0
    %1020 = vmatpush1.msra.mxu0 0.0
    %1021 = vmatprep.subr.mxu0 0.0
    %1022 = vmatpush1.msra.mxu0 0.0
    %1023 = vmatprep.subr.mxu0 0.0
    %1024 = vmatpush1.msra.mxu0 0.0
    %1025 = vmatprep.subr.mxu0 0.0
    %1026 = vmatpush1.msra.mxu0 0.0
    %1027 = vmatprep.subr.mxu0 0.0
    %1028 = vmatpush1.msra.mxu0 0.0
    %1029 = vmatprep.subr.mxu0 0.0
    %1030 = vmatpush1.msra.mxu0 0.0
    %1031 = vmatprep.subr.mxu0 0.0
    %1032 = vmatpush1.msra.mxu0 0.0
    %1033 = vmatprep.subr.mxu0 0.0
    %1034 = vmatpush1.msra.mxu0 0.0
    %1035 = vmatprep.subr.mxu0 0.0
    %1036 = vmatpush1.msra.mxu0 0.0
    %1037 = vmatprep.subr.mxu0 0.0
    %1038 = vmatpush1.msra.mxu0 0.0
    %1039 = vmatprep.subr.mxu0 0.0
    %1040 = vmatpush1.msra.mxu0 0.0
    %1041 = vmatprep.subr.mxu0 0.0
    %1042 = vmatpush1.msra.mxu0 0.0
    %1043 = vmatprep.subr.mxu0 0.0
    %1044 = vmatpush1.msra.mxu0 0.0
    %1045 = vmatprep.subr.mxu0 0.0
    %1046 = vmatpush1.msra.mxu0 0.0
    %1047 = vmatprep.subr.mxu0 0.0
    %1048 = vmatpush1.msra.mxu0 0.0
    %1049 = vmatprep.subr.mxu0 0.0
    %1050 = vmatpush1.msra.mxu0 0.0
    %1051 = vmatprep.subr.mxu0 0.0
    %1052 = vmatpush1.msra.mxu0 0.0
    %1053 = vmatprep.subr.mxu0 0.0
    %1054 = vmatpush1.msra.mxu0 0.0
    %1055 = vmatprep.subr.mxu0 0.0
    %1056 = vmatpush1.msra.mxu0 0.0
    %1057 = vmatprep.subr.mxu0 0.0
    %1058 = vmatpush1.msra.mxu0 0.0
    %1059 = vmatprep.subr.mxu0 0.0
    %1060 = vmatpush1.msra.mxu0 0.0
    %1061 = vmatprep.subr.mxu0 0.0
    %1062 = vmatpush1.msra.mxu0 0.0
    %1063 = vmatprep.subr.mxu0 0.0
    %1064 = vmatpush1.msra.mxu0 0.0
    %1065 = vmatprep.subr.mxu0 0.0
    %1066 = vmatpush1.msra.mxu0 0.0
    %1067 = vmatprep.subr.mxu0 0.0
    %1068 = vmatpush1.msra.mxu0 0.0
    %1069 = vmatprep.subr.mxu0 0.0
    %1070 = vmatpush1.msra.mxu0 0.0
    %1071 = vmatprep.subr.mxu0 0.0
    %1072 = vmatpush1.msra.mxu0 0.0
    %1073 = vmatprep.subr.mxu0 0.0
    %1074 = vmatpush1.msra.mxu0 0.0
    %1075 = vmatprep.subr.mxu0 0.0
    %1076 = vmatpush1.msra.mxu0 0.0
    %1077 = vmatprep.subr.mxu0 0.0
    %1078 = vmatpush1.msra.mxu0 0.0
    %1079 = vmatprep.subr.mxu0 0.0
    %1080 = vmatpush1.msra.mxu0 0.0
    %1081 = vmatprep.mubr.f32.mxu0 0.0
    %1082 = vmatmul.mubr.f32.gmra.mrb[0].mxu0 %v1015
    %v1083 = vpop.f32.mrb[0].mxu0
    %v1084 = vadd.f32 %v1011, %v1083
    %v1085 = vpop.f32.mrb[0].mxu0
    %1086 = vdwg.mxu0
    %s1087 = scalar_lea.vmem %s3, 64
    %v1088 = vld [vmem:[%s1087] sm:$0xff]
    %v1089 = vld [vmem:[%s1087 + $0x8] sm:$0xff]
    %v1090 = vld [vmem:[%s1087 + $0x10] sm:$0xff]
    %v1091 = vld [vmem:[%s1087 + $0x18] sm:$0xff]
    %v1092 = vld [vmem:[%s4 + $0x2] sm:$0x1]
    %v1093 = vlaneseq
    %v1094 = vshrl.u32 %v1093, 7
    %v1095 = vsub.s32 0, %v1094
    %v1096 = vrot.slane %v1092, %v1095
    %1097 = vmatprep.subr.mxu0 0.0
    %1098 = vmatpush1.msra.mxu0 %v1088
    %1099 = vmatprep.subr.mxu0 0.0
    %1100 = vmatpush1.msra.mxu0 %v1089
    %1101 = vmatprep.subr.mxu0 0.0
    %1102 = vmatpush1.msra.mxu0 %v1090
    %1103 = vmatprep.subr.mxu0 0.0
    %1104 = vmatpush1.msra.mxu0 %v1091
    %1105 = vmatprep.subr.mxu0 0.0
    %1106 = vmatpush1.msra.mxu0 0.0
    %1107 = vmatprep.subr.mxu0 0.0
    %1108 = vmatpush1.msra.mxu0 0.0
    %1109 = vmatprep.subr.mxu0 0.0
    %1110 = vmatpush1.msra.mxu0 0.0
    %1111 = vmatprep.subr.mxu0 0.0
    %1112 = vmatpush1.msra.mxu0 0.0
    %1113 = vmatprep.subr.mxu0 0.0
    %1114 = vmatpush1.msra.mxu0 0.0
    %1115 = vmatprep.subr.mxu0 0.0
    %1116 = vmatpush1.msra.mxu0 0.0
    %1117 = vmatprep.subr.mxu0 0.0
    %1118 = vmatpush1.msra.mxu0 0.0
    %1119 = vmatprep.subr.mxu0 0.0
    %1120 = vmatpush1.msra.mxu0 0.0
    %1121 = vmatprep.subr.mxu0 0.0
    %1122 = vmatpush1.msra.mxu0 0.0
    %1123 = vmatprep.subr.mxu0 0.0
    %1124 = vmatpush1.msra.mxu0 0.0
    %1125 = vmatprep.subr.mxu0 0.0
    %1126 = vmatpush1.msra.mxu0 0.0
    %1127 = vmatprep.subr.mxu0 0.0
    %1128 = vmatpush1.msra.mxu0 0.0
    %1129 = vmatprep.subr.mxu0 0.0
    %1130 = vmatpush1.msra.mxu0 0.0
    %1131 = vmatprep.subr.mxu0 0.0
    %1132 = vmatpush1.msra.mxu0 0.0
    %1133 = vmatprep.subr.mxu0 0.0
    %1134 = vmatpush1.msra.mxu0 0.0
    %1135 = vmatprep.subr.mxu0 0.0
    %1136 = vmatpush1.msra.mxu0 0.0
    %1137 = vmatprep.subr.mxu0 0.0
    %1138 = vmatpush1.msra.mxu0 0.0
    %1139 = vmatprep.subr.mxu0 0.0
    %1140 = vmatpush1.msra.mxu0 0.0
    %1141 = vmatprep.subr.mxu0 0.0
    %1142 = vmatpush1.msra.mxu0 0.0
    %1143 = vmatprep.subr.mxu0 0.0
    %1144 = vmatpush1.msra.mxu0 0.0
    %1145 = vmatprep.subr.mxu0 0.0
    %1146 = vmatpush1.msra.mxu0 0.0
    %1147 = vmatprep.subr.mxu0 0.0
    %1148 = vmatpush1.msra.mxu0 0.0
    %1149 = vmatprep.subr.mxu0 0.0
    %1150 = vmatpush1.msra.mxu0 0.0
    %1151 = vmatprep.subr.mxu0 0.0
    %1152 = vmatpush1.msra.mxu0 0.0
    %1153 = vmatprep.subr.mxu0 0.0
    %1154 = vmatpush1.msra.mxu0 0.0
    %1155 = vmatprep.subr.mxu0 0.0
    %1156 = vmatpush1.msra.mxu0 0.0
    %1157 = vmatprep.subr.mxu0 0.0
    %1158 = vmatpush1.msra.mxu0 0.0
    %1159 = vmatprep.subr.mxu0 0.0
    %1160 = vmatpush1.msra.mxu0 0.0
    %1161 = vmatprep.mubr.f32.mxu0 0.0
    %1162 = vmatmul.mubr.f32.gmra.mrb[0].mxu0 %v143
    %v1163 = vpop.f32.mrb[0].mxu0
    %v1164 = vadd.f32 %v1096, %v1163
    %v1165 = vpop.f32.mrb[0].mxu0
    %1166 = vdwg.mxu0
    %s1167 = scalar_lea.vmem %s3, 192
    %v1168 = vld [vmem:[%s1167] sm:$0xff]
    %v1169 = vld [vmem:[%s1167 + $0x8] sm:$0xff]
    %v1170 = vld [vmem:[%s1167 + $0x10] sm:$0xff]
    %v1171 = vld [vmem:[%s1167 + $0x18] sm:$0xff]
    %v1172 = vld [vmem:[%s4 + $0x6] sm:$0x1]
    %v1173 = vlaneseq
    %v1174 = vshrl.u32 %v1173, 7
    %v1175 = vsub.s32 0, %v1174
    %v1176 = vrot.slane %v1172, %v1175
    %1177 = vmatprep.subr.mxu0 0.0
    %1178 = vmatpush1.msra.mxu0 %v1168
    %1179 = vmatprep.subr.mxu0 0.0
    %1180 = vmatpush1.msra.mxu0 %v1169
    %1181 = vmatprep.subr.mxu0 0.0
    %1182 = vmatpush1.msra.mxu0 %v1170
    %1183 = vmatprep.subr.mxu0 0.0
    %1184 = vmatpush1.msra.mxu0 %v1171
    %1185 = vmatprep.subr.mxu0 0.0
    %1186 = vmatpush1.msra.mxu0 0.0
    %1187 = vmatprep.subr.mxu0 0.0
    %1188 = vmatpush1.msra.mxu0 0.0
    %1189 = vmatprep.subr.mxu0 0.0
    %1190 = vmatpush1.msra.mxu0 0.0
    %1191 = vmatprep.subr.mxu0 0.0
    %1192 = vmatpush1.msra.mxu0 0.0
    %1193 = vmatprep.subr.mxu0 0.0
    %1194 = vmatpush1.msra.mxu0 0.0
    %1195 = vmatprep.subr.mxu0 0.0
    %1196 = vmatpush1.msra.mxu0 0.0
    %1197 = vmatprep.subr.mxu0 0.0
    %1198 = vmatpush1.msra.mxu0 0.0
    %1199 = vmatprep.subr.mxu0 0.0
    %1200 = vmatpush1.msra.mxu0 0.0
    %1201 = vmatprep.subr.mxu0 0.0
    %1202 = vmatpush1.msra.mxu0 0.0
    %1203 = vmatprep.subr.mxu0 0.0
    %1204 = vmatpush1.msra.mxu0 0.0
    %1205 = vmatprep.subr.mxu0 0.0
    %1206 = vmatpush1.msra.mxu0 0.0
    %1207 = vmatprep.subr.mxu0 0.0
    %1208 = vmatpush1.msra.mxu0 0.0
    %1209 = vmatprep.subr.mxu0 0.0
    %1210 = vmatpush1.msra.mxu0 0.0
    %1211 = vmatprep.subr.mxu0 0.0
    %1212 = vmatpush1.msra.mxu0 0.0
    %1213 = vmatprep.subr.mxu0 0.0
    %1214 = vmatpush1.msra.mxu0 0.0
    %1215 = vmatprep.subr.mxu0 0.0
    %1216 = vmatpush1.msra.mxu0 0.0
    %1217 = vmatprep.subr.mxu0 0.0
    %1218 = vmatpush1.msra.mxu0 0.0
    %1219 = vmatprep.subr.mxu0 0.0
    %1220 = vmatpush1.msra.mxu0 0.0
    %1221 = vmatprep.subr.mxu0 0.0
    %1222 = vmatpush1.msra.mxu0 0.0
    %1223 = vmatprep.subr.mxu0 0.0
    %1224 = vmatpush1.msra.mxu0 0.0
    %1225 = vmatprep.subr.mxu0 0.0
    %1226 = vmatpush1.msra.mxu0 0.0
    %1227 = vmatprep.subr.mxu0 0.0
    %1228 = vmatpush1.msra.mxu0 0.0
    %1229 = vmatprep.subr.mxu0 0.0
    %1230 = vmatpush1.msra.mxu0 0.0
    %1231 = vmatprep.subr.mxu0 0.0
    %1232 = vmatpush1.msra.mxu0 0.0
    %1233 = vmatprep.subr.mxu0 0.0
    %1234 = vmatpush1.msra.mxu0 0.0
    %1235 = vmatprep.subr.mxu0 0.0
    %1236 = vmatpush1.msra.mxu0 0.0
    %1237 = vmatprep.subr.mxu0 0.0
    %1238 = vmatpush1.msra.mxu0 0.0
    %1239 = vmatprep.subr.mxu0 0.0
    %1240 = vmatpush1.msra.mxu0 0.0
    %1241 = vmatprep.mubr.f32.mxu0 0.0
    %1242 = vmatmul.mubr.f32.gmra.mrb[0].mxu0 %v143
    %v1243 = vpop.f32.mrb[0].mxu0
    %v1244 = vadd.f32 %v1176, %v1243
    %v1245 = vpop.f32.mrb[0].mxu0
    %1246 = vdwg.mxu0
    %s1247 = scalar_lea.vmem %s3, 320
    %v1248 = vld [vmem:[%s1247] sm:$0xff]
    %v1249 = vld [vmem:[%s1247 + $0x8] sm:$0xff]
    %v1250 = vld [vmem:[%s1247 + $0x10] sm:$0xff]
    %v1251 = vld [vmem:[%s1247 + $0x18] sm:$0xff]
    %v1252 = vld [vmem:[%s4 + $0xa] sm:$0x1]
    %v1253 = vlaneseq
    %v1254 = vshrl.u32 %v1253, 7
    %v1255 = vsub.s32 0, %v1254
    %v1256 = vrot.slane %v1252, %v1255
    %1257 = vmatprep.subr.mxu0 0.0
    %1258 = vmatpush1.msra.mxu0 %v1248
    %1259 = vmatprep.subr.mxu0 0.0
    %1260 = vmatpush1.msra.mxu0 %v1249
    %1261 = vmatprep.subr.mxu0 0.0
    %1262 = vmatpush1.msra.mxu0 %v1250
    %1263 = vmatprep.subr.mxu0 0.0
    %1264 = vmatpush1.msra.mxu0 %v1251
    %1265 = vmatprep.subr.mxu0 0.0
    %1266 = vmatpush1.msra.mxu0 0.0
    %1267 = vmatprep.subr.mxu0 0.0
    %1268 = vmatpush1.msra.mxu0 0.0
    %1269 = vmatprep.subr.mxu0 0.0
    %1270 = vmatpush1.msra.mxu0 0.0
    %1271 = vmatprep.subr.mxu0 0.0
    %1272 = vmatpush1.msra.mxu0 0.0
    %1273 = vmatprep.subr.mxu0 0.0
    %1274 = vmatpush1.msra.mxu0 0.0
    %1275 = vmatprep.subr.mxu0 0.0
    %1276 = vmatpush1.msra.mxu0 0.0
    %1277 = vmatprep.subr.mxu0 0.0
    %1278 = vmatpush1.msra.mxu0 0.0
    %1279 = vmatprep.subr.mxu0 0.0
    %1280 = vmatpush1.msra.mxu0 0.0
    %1281 = vmatprep.subr.mxu0 0.0
    %1282 = vmatpush1.msra.mxu0 0.0
    %1283 = vmatprep.subr.mxu0 0.0
    %1284 = vmatpush1.msra.mxu0 0.0
    %1285 = vmatprep.subr.mxu0 0.0
    %1286 = vmatpush1.msra.mxu0 0.0
    %1287 = vmatprep.subr.mxu0 0.0
    %1288 = vmatpush1.msra.mxu0 0.0
    %1289 = vmatprep.subr.mxu0 0.0
    %1290 = vmatpush1.msra.mxu0 0.0
    %1291 = vmatprep.subr.mxu0 0.0
    %1292 = vmatpush1.msra.mxu0 0.0
    %1293 = vmatprep.subr.mxu0 0.0
    %1294 = vmatpush1.msra.mxu0 0.0
    %1295 = vmatprep.subr.mxu0 0.0
    %1296 = vmatpush1.msra.mxu0 0.0
    %1297 = vmatprep.subr.mxu0 0.0
    %1298 = vmatpush1.msra.mxu0 0.0
    %1299 = vmatprep.subr.mxu0 0.0
    %1300 = vmatpush1.msra.mxu0 0.0
    %1301 = vmatprep.subr.mxu0 0.0
    %1302 = vmatpush1.msra.mxu0 0.0
    %1303 = vmatprep.subr.mxu0 0.0
    %1304 = vmatpush1.msra.mxu0 0.0
    %1305 = vmatprep.subr.mxu0 0.0
    %1306 = vmatpush1.msra.mxu0 0.0
    %1307 = vmatprep.subr.mxu0 0.0
    %1308 = vmatpush1.msra.mxu0 0.0
    %1309 = vmatprep.subr.mxu0 0.0
    %1310 = vmatpush1.msra.mxu0 0.0
    %1311 = vmatprep.subr.mxu0 0.0
    %1312 = vmatpush1.msra.mxu0 0.0
    %1313 = vmatprep.subr.mxu0 0.0
    %1314 = vmatpush1.msra.mxu0 0.0
    %1315 = vmatprep.subr.mxu0 0.0
    %1316 = vmatpush1.msra.mxu0 0.0
    %1317 = vmatprep.subr.mxu0 0.0
    %1318 = vmatpush1.msra.mxu0 0.0
    %1319 = vmatprep.subr.mxu0 0.0
    %1320 = vmatpush1.msra.mxu0 0.0
    %1321 = vmatprep.mubr.f32.mxu0 0.0
    %1322 = vmatmul.mubr.f32.gmra.mrb[0].mxu0 %v143
    %v1323 = vpop.f32.mrb[0].mxu0
    %v1324 = vadd.f32 %v1256, %v1323
    %v1325 = vpop.f32.mrb[0].mxu0
    %1326 = vdwg.mxu0
    %v1328 = vsel %vm375, %v1164, 0
    %v1331 = vsel %vm375, %v1244, 0
    %1333 = vmatprep.subr.mxu0 0.0
    %1334 = vmatpush1.xpose.msra.mxu0 %v1331
    %1335 = vmatprep.subr.mxu0 0.0
    %1336 = vmatpush1.xpose.msra.mxu0 0.0
    %1337 = vmatprep.subr.mxu0 0.0
    %1338 = vmatpush1.xpose.msra.mxu0 0.0
    %1339 = vmatprep.subr.mxu0 0.0
    %1340 = vmatpush1.xpose.msra.mxu0 0.0
    %1341 = vmatprep.subr.mxu0 0.0
    %1342 = vmatpush1.xpose.msra.mxu0 0.0
    %1343 = vmatprep.subr.mxu0 0.0
    %1344 = vmatpush1.xpose.msra.mxu0 0.0
    %1345 = vmatprep.subr.mxu0 0.0
    %1346 = vmatpush1.xpose.msra.mxu0 0.0
    %1347 = vmatprep.subr.mxu0 0.0
    %1348 = vmatpush1.xpose.msra.mxu0 0.0
    %1349 = vmatprep.subr.mxu0 0.0
    %1350 = vmatpush1.xpose.msra.mxu0 0.0
    %1351 = vmatprep.subr.mxu0 0.0
    %1352 = vmatpush1.xpose.msra.mxu0 0.0
    %1353 = vmatprep.subr.mxu0 0.0
    %1354 = vmatpush1.xpose.msra.mxu0 0.0
    %1355 = vmatprep.subr.mxu0 0.0
    %1356 = vmatpush1.xpose.msra.mxu0 0.0
    %1357 = vmatprep.subr.mxu0 0.0
    %1358 = vmatpush1.xpose.msra.mxu0 0.0
    %1359 = vmatprep.subr.mxu0 0.0
    %1360 = vmatpush1.xpose.msra.mxu0 0.0
    %1361 = vmatprep.subr.mxu0 0.0
    %1362 = vmatpush1.xpose.msra.mxu0 0.0
    %1363 = vmatprep.subr.mxu0 0.0
    %1364 = vmatpush1.xpose.msra.mxu0 0.0
    %1365 = vmatprep.subr.mxu0 0.0
    %1366 = vmatpush1.xpose.msra.mxu0 0.0
    %1367 = vmatprep.subr.mxu0 0.0
    %1368 = vmatpush1.xpose.msra.mxu0 0.0
    %1369 = vmatprep.subr.mxu0 0.0
    %1370 = vmatpush1.xpose.msra.mxu0 0.0
    %1371 = vmatprep.subr.mxu0 0.0
    %1372 = vmatpush1.xpose.msra.mxu0 0.0
    %1373 = vmatprep.subr.mxu0 0.0
    %1374 = vmatpush1.xpose.msra.mxu0 0.0
    %1375 = vmatprep.subr.mxu0 0.0
    %1376 = vmatpush1.xpose.msra.mxu0 0.0
    %1377 = vmatprep.subr.mxu0 0.0
    %1378 = vmatpush1.xpose.msra.mxu0 0.0
    %1379 = vmatprep.subr.mxu0 0.0
    %1380 = vmatpush1.xpose.msra.mxu0 0.0
    %1381 = vmatprep.subr.mxu0 0.0
    %1382 = vmatpush1.xpose.msra.mxu0 0.0
    %1383 = vmatprep.subr.mxu0 0.0
    %1384 = vmatpush1.xpose.msra.mxu0 0.0
    %1385 = vmatprep.subr.mxu0 0.0
    %1386 = vmatpush1.xpose.msra.mxu0 0.0
    %1387 = vmatprep.subr.mxu0 0.0
    %1388 = vmatpush1.xpose.msra.mxu0 0.0
    %1389 = vmatprep.subr.mxu0 0.0
    %1390 = vmatpush1.xpose.msra.mxu0 0.0
    %1391 = vmatprep.subr.mxu0 0.0
    %1392 = vmatpush1.xpose.msra.mxu0 0.0
    %1393 = vmatprep.subr.mxu0 0.0
    %1394 = vmatpush1.xpose.msra.mxu0 0.0
    %1395 = vmatprep.subr.mxu0 0.0
    %1396 = vmatpush1.xpose.msra.mxu0 0.0
    %1397 = vmatprep.mubr.f32.mxu0 0.0
    %1398 = vmatmul.mubr.f32.gmra.mrb[0].mxu0 %v1328
    %v1399 = vpop.f32.mrb[0].mxu0
    %v1400 = vadd.f32 0.0, %v1399
    %v1401 = vpop.f32.mrb[0].mxu0
    %1402 = vdwg.mxu0
    %v1403 = vmul.f32 %v1400, 0.35355338
    %v1404 = vsel %vm375, %v1403, -inf
    %1405 = vmax.xlane.f32.xlu0 %v1404
    %v1406 = vpop.xlane.xlu0 %1405
    %v1407 = vsub.f32 %v1403, %v1406
    %v1408 = vmul.f32 %v1407, 1.442695
    %v1409 = vpow.pop %v1408
    %v1410 = vsel %vm375, %v1409, 0.0
    %1411 = vadd.xlane.f32.xlu0 %v1410
    %v1412 = vpop.xlane.xlu0 %1411
    %v1413 = vrcp.pop %v1412
    %v1414 = vmul.f32 %v1409, %v1413
    %v1416 = vsel %vm375, %v1414, 0
    %1418 = vmatprep.subr.mxu0 0.0
    %1419 = vmatpush1.msra.mxu0 %v1324
    %1420 = vmatprep.subr.mxu0 0.0
    %1421 = vmatpush1.msra.mxu0 0.0
    %1422 = vmatprep.subr.mxu0 0.0
    %1423 = vmatpush1.msra.mxu0 0.0
    %1424 = vmatprep.subr.mxu0 0.0
    %1425 = vmatpush1.msra.mxu0 0.0
    %1426 = vmatprep.subr.mxu0 0.0
    %1427 = vmatpush1.msra.mxu0 0.0
    %1428 = vmatprep.subr.mxu0 0.0
    %1429 = vmatpush1.msra.mxu0 0.0
    %1430 = vmatprep.subr.mxu0 0.0
    %1431 = vmatpush1.msra.mxu0 0.0
    %1432 = vmatprep.subr.mxu0 0.0
    %1433 = vmatpush1.msra.mxu0 0.0
    %1434 = vmatprep.subr.mxu0 0.0
    %1435 = vmatpush1.msra.mxu0 0.0
    %1436 = vmatprep.subr.mxu0 0.0
    %1437 = vmatpush1.msra.mxu0 0.0
    %1438 = vmatprep.subr.mxu0 0.0
    %1439 = vmatpush1.msra.mxu0 0.0
    %1440 = vmatprep.subr.mxu0 0.0
    %1441 = vmatpush1.msra.mxu0 0.0
    %1442 = vmatprep.subr.mxu0 0.0
    %1443 = vmatpush1.msra.mxu0 0.0
    %1444 = vmatprep.subr.mxu0 0.0
    %1445 = vmatpush1.msra.mxu0 0.0
    %1446 = vmatprep.subr.mxu0 0.0
    %1447 = vmatpush1.msra.mxu0 0.0
    %1448 = vmatprep.subr.mxu0 0.0
    %1449 = vmatpush1.msra.mxu0 0.0
    %1450 = vmatprep.subr.mxu0 0.0
    %1451 = vmatpush1.msra.mxu0 0.0
    %1452 = vmatprep.subr.mxu0 0.0
    %1453 = vmatpush1.msra.mxu0 0.0
    %1454 = vmatprep.subr.mxu0 0.0
    %1455 = vmatpush1.msra.mxu0 0.0
    %1456 = vmatprep.subr.mxu0 0.0
    %1457 = vmatpush1.msra.mxu0 0.0
    %1458 = vmatprep.subr.mxu0 0.0
    %1459 = vmatpush1.msra.mxu0 0.0
    %1460 = vmatprep.subr.mxu0 0.0
    %1461 = vmatpush1.msra.mxu0 0.0
    %1462 = vmatprep.subr.mxu0 0.0
    %1463 = vmatpush1.msra.mxu0 0.0
    %1464 = vmatprep.subr.mxu0 0.0
    %1465 = vmatpush1.msra.mxu0 0.0
    %1466 = vmatprep.subr.mxu0 0.0
    %1467 = vmatpush1.msra.mxu0 0.0
    %1468 = vmatprep.subr.mxu0 0.0
    %1469 = vmatpush1.msra.mxu0 0.0
    %1470 = vmatprep.subr.mxu0 0.0
    %1471 = vmatpush1.msra.mxu0 0.0
    %1472 = vmatprep.subr.mxu0 0.0
    %1473 = vmatpush1.msra.mxu0 0.0
    %1474 = vmatprep.subr.mxu0 0.0
    %1475 = vmatpush1.msra.mxu0 0.0
    %1476 = vmatprep.subr.mxu0 0.0
    %1477 = vmatpush1.msra.mxu0 0.0
    %1478 = vmatprep.subr.mxu0 0.0
    %1479 = vmatpush1.msra.mxu0 0.0
    %1480 = vmatprep.subr.mxu0 0.0
    %1481 = vmatpush1.msra.mxu0 0.0
    %1482 = vmatprep.mubr.f32.mxu0 0.0
    %1483 = vmatmul.mubr.f32.gmra.mrb[0].mxu0 %v1416
    %v1484 = vpop.f32.mrb[0].mxu0
    %v1485 = vadd.f32 0.0, %v1484
    %v1486 = vpop.f32.mrb[0].mxu0
    %1487 = vdwg.mxu0
    %s1488 = scalar_lea.vmem %s5, 16
    %v1489 = vld [vmem:[%s1488] sm:$0xff]
    %v1491 = vsel %vm375, %v1485, 0
    %1493 = vmatprep.subr.mxu0 0.0
    %1494 = vmatpush1.msra.mxu0 %v1489
    %1495 = vmatprep.subr.mxu0 0.0
    %1496 = vmatpush1.msra.mxu0 0.0
    %1497 = vmatprep.subr.mxu0 0.0
    %1498 = vmatpush1.msra.mxu0 0.0
    %1499 = vmatprep.subr.mxu0 0.0
    %1500 = vmatpush1.msra.mxu0 0.0
    %1501 = vmatprep.subr.mxu0 0.0
    %1502 = vmatpush1.msra.mxu0 0.0
    %1503 = vmatprep.subr.mxu0 0.0
    %1504 = vmatpush1.msra.mxu0 0.0
    %1505 = vmatprep.subr.mxu0 0.0
    %1506 = vmatpush1.msra.mxu0 0.0
    %1507 = vmatprep.subr.mxu0 0.0
    %1508 = vmatpush1.msra.mxu0 0.0
    %1509 = vmatprep.subr.mxu0 0.0
    %1510 = vmatpush1.msra.mxu0 0.0
    %1511 = vmatprep.subr.mxu0 0.0
    %1512 = vmatpush1.msra.mxu0 0.0
    %1513 = vmatprep.subr.mxu0 0.0
    %1514 = vmatpush1.msra.mxu0 0.0
    %1515 = vmatprep.subr.mxu0 0.0
    %1516 = vmatpush1.msra.mxu0 0.0
    %1517 = vmatprep.subr.mxu0 0.0
    %1518 = vmatpush1.msra.mxu0 0.0
    %1519 = vmatprep.subr.mxu0 0.0
    %1520 = vmatpush1.msra.mxu0 0.0
    %1521 = vmatprep.subr.mxu0 0.0
    %1522 = vmatpush1.msra.mxu0 0.0
    %1523 = vmatprep.subr.mxu0 0.0
    %1524 = vmatpush1.msra.mxu0 0.0
    %1525 = vmatprep.subr.mxu0 0.0
    %1526 = vmatpush1.msra.mxu0 0.0
    %1527 = vmatprep.subr.mxu0 0.0
    %1528 = vmatpush1.msra.mxu0 0.0
    %1529 = vmatprep.subr.mxu0 0.0
    %1530 = vmatpush1.msra.mxu0 0.0
    %1531 = vmatprep.subr.mxu0 0.0
    %1532 = vmatpush1.msra.mxu0 0.0
    %1533 = vmatprep.subr.mxu0 0.0
    %1534 = vmatpush1.msra.mxu0 0.0
    %1535 = vmatprep.subr.mxu0 0.0
    %1536 = vmatpush1.msra.mxu0 0.0
    %1537 = vmatprep.subr.mxu0 0.0
    %1538 = vmatpush1.msra.mxu0 0.0
    %1539 = vmatprep.subr.mxu0 0.0
    %1540 = vmatpush1.msra.mxu0 0.0
    %1541 = vmatprep.subr.mxu0 0.0
    %1542 = vmatpush1.msra.mxu0 0.0
    %1543 = vmatprep.subr.mxu0 0.0
    %1544 = vmatpush1.msra.mxu0 0.0
    %1545 = vmatprep.subr.mxu0 0.0
    %1546 = vmatpush1.msra.mxu0 0.0
    %1547 = vmatprep.subr.mxu0 0.0
    %1548 = vmatpush1.msra.mxu0 0.0
    %1549 = vmatprep.subr.mxu0 0.0
    %1550 = vmatpush1.msra.mxu0 0.0
    %1551 = vmatprep.subr.mxu0 0.0
    %1552 = vmatpush1.msra.mxu0 0.0
    %1553 = vmatprep.subr.mxu0 0.0
    %1554 = vmatpush1.msra.mxu0 0.0
    %1555 = vmatprep.subr.mxu0 0.0
    %1556 = vmatpush1.msra.mxu0 0.0
    %1557 = vmatprep.mubr.f32.mxu0 0.0
    %1558 = vmatmul.mubr.f32.gmra.mrb[0].mxu0 %v1491
    %v1559 = vpop.f32.mrb[0].mxu0
    %v1560 = vadd.f32 0.0, %v1559
    %v1561 = vpop.f32.mrb[0].mxu0
    %1562 = vdwg.mxu0
    %v1563 = vadd.f32 %v1084, %v1560
    %s1564 = scalar_lea.vmem %s3, 96
    %v1565 = vld [vmem:[%s1564] sm:$0xff]
    %v1566 = vld [vmem:[%s1564 + $0x8] sm:$0xff]
    %v1567 = vld [vmem:[%s1564 + $0x10] sm:$0xff]
    %v1568 = vld [vmem:[%s1564 + $0x18] sm:$0xff]
    %v1569 = vld [vmem:[%s4 + $0x3] sm:$0x1]
    %v1570 = vlaneseq
    %v1571 = vshrl.u32 %v1570, 7
    %v1572 = vsub.s32 0, %v1571
    %v1573 = vrot.slane %v1569, %v1572
    %1574 = vmatprep.subr.mxu0 0.0
    %1575 = vmatpush1.msra.mxu0 %v1565
    %1576 = vmatprep.subr.mxu0 0.0
    %1577 = vmatpush1.msra.mxu0 %v1566
    %1578 = vmatprep.subr.mxu0 0.0
    %1579 = vmatpush1.msra.mxu0 %v1567
    %1580 = vmatprep.subr.mxu0 0.0
    %1581 = vmatpush1.msra.mxu0 %v1568
    %1582 = vmatprep.subr.mxu0 0.0
    %1583 = vmatpush1.msra.mxu0 0.0
    %1584 = vmatprep.subr.mxu0 0.0
    %1585 = vmatpush1.msra.mxu0 0.0
    %1586 = vmatprep.subr.mxu0 0.0
    %1587 = vmatpush1.msra.mxu0 0.0
    %1588 = vmatprep.subr.mxu0 0.0
    %1589 = vmatpush1.msra.mxu0 0.0
    %1590 = vmatprep.subr.mxu0 0.0
    %1591 = vmatpush1.msra.mxu0 0.0
    %1592 = vmatprep.subr.mxu0 0.0
    %1593 = vmatpush1.msra.mxu0 0.0
    %1594 = vmatprep.subr.mxu0 0.0
    %1595 = vmatpush1.msra.mxu0 0.0
    %1596 = vmatprep.subr.mxu0 0.0
    %1597 = vmatpush1.msra.mxu0 0.0
    %1598 = vmatprep.subr.mxu0 0.0
    %1599 = vmatpush1.msra.mxu0 0.0
    %1600 = vmatprep.subr.mxu0 0.0
    %1601 = vmatpush1.msra.mxu0 0.0
    %1602 = vmatprep.subr.mxu0 0.0
    %1603 = vmatpush1.msra.mxu0 0.0
    %1604 = vmatprep.subr.mxu0 0.0
    %1605 = vmatpush1.msra.mxu0 0.0
    %1606 = vmatprep.subr.mxu0 0.0
    %1607 = vmatpush1.msra.mxu0 0.0
    %1608 = vmatprep.subr.mxu0 0.0
    %1609 = vmatpush1.msra.mxu0 0.0
    %1610 = vmatprep.subr.mxu0 0.0
    %1611 = vmatpush1.msra.mxu0 0.0
    %1612 = vmatprep.subr.mxu0 0.0
    %1613 = vmatpush1.msra.mxu0 0.0
    %1614 = vmatprep.subr.mxu0 0.0
    %1615 = vmatpush1.msra.mxu0 0.0
    %1616 = vmatprep.subr.mxu0 0.0
    %1617 = vmatpush1.msra.mxu0 0.0
    %1618 = vmatprep.subr.mxu0 0.0
    %1619 = vmatpush1.msra.mxu0 0.0
    %1620 = vmatprep.subr.mxu0 0.0
    %1621 = vmatpush1.msra.mxu0 0.0
    %1622 = vmatprep.subr.mxu0 0.0
    %1623 = vmatpush1.msra.mxu0 0.0
    %1624 = vmatprep.subr.mxu0 0.0
    %1625 = vmatpush1.msra.mxu0 0.0
    %1626 = vmatprep.subr.mxu0 0.0
    %1627 = vmatpush1.msra.mxu0 0.0
    %1628 = vmatprep.subr.mxu0 0.0
    %1629 = vmatpush1.msra.mxu0 0.0
    %1630 = vmatprep.subr.mxu0 0.0
    %1631 = vmatpush1.msra.mxu0 0.0
    %1632 = vmatprep.subr.mxu0 0.0
    %1633 = vmatpush1.msra.mxu0 0.0
    %1634 = vmatprep.subr.mxu0 0.0
    %1635 = vmatpush1.msra.mxu0 0.0
    %1636 = vmatprep.subr.mxu0 0.0
    %1637 = vmatpush1.msra.mxu0 0.0
    %1638 = vmatprep.mubr.f32.mxu0 0.0
    %1639 = vmatmul.mubr.f32.gmra.mrb[0].mxu0 %v143
    %v1640 = vpop.f32.mrb[0].mxu0
    %v1641 = vadd.f32 %v1573, %v1640
    %v1642 = vpop.f32.mrb[0].mxu0
    %1643 = vdwg.mxu0
    %s1644 = scalar_lea.vmem %s3, 224
    %v1645 = vld [vmem:[%s1644] sm:$0xff]
    %v1646 = vld [vmem:[%s1644 + $0x8] sm:$0xff]
    %v1647 = vld [vmem:[%s1644 + $0x10] sm:$0xff]
    %v1648 = vld [vmem:[%s1644 + $0x18] sm:$0xff]
    %v1649 = vld [vmem:[%s4 + $0x7] sm:$0x1]
    %v1650 = vlaneseq
    %v1651 = vshrl.u32 %v1650, 7
    %v1652 = vsub.s32 0, %v1651
    %v1653 = vrot.slane %v1649, %v1652
    %1654 = vmatprep.subr.mxu0 0.0
    %1655 = vmatpush1.msra.mxu0 %v1645
    %1656 = vmatprep.subr.mxu0 0.0
    %1657 = vmatpush1.msra.mxu0 %v1646
    %1658 = vmatprep.subr.mxu0 0.0
    %1659 = vmatpush1.msra.mxu0 %v1647
    %1660 = vmatprep.subr.mxu0 0.0
    %1661 = vmatpush1.msra.mxu0 %v1648
    %1662 = vmatprep.subr.mxu0 0.0
    %1663 = vmatpush1.msra.mxu0 0.0
    %1664 = vmatprep.subr.mxu0 0.0
    %1665 = vmatpush1.msra.mxu0 0.0
    %1666 = vmatprep.subr.mxu0 0.0
    %1667 = vmatpush1.msra.mxu0 0.0
    %1668 = vmatprep.subr.mxu0 0.0
    %1669 = vmatpush1.msra.mxu0 0.0
    %1670 = vmatprep.subr.mxu0 0.0
    %1671 = vmatpush1.msra.mxu0 0.0
    %1672 = vmatprep.subr.mxu0 0.0
    %1673 = vmatpush1.msra.mxu0 0.0
    %1674 = vmatprep.subr.mxu0 0.0
    %1675 = vmatpush1.msra.mxu0 0.0
    %1676 = vmatprep.subr.mxu0 0.0
    %1677 = vmatpush1.msra.mxu0 0.0
    %1678 = vmatprep.subr.mxu0 0.0
    %1679 = vmatpush1.msra.mxu0 0.0
    %1680 = vmatprep.subr.mxu0 0.0
    %1681 = vmatpush1.msra.mxu0 0.0
    %1682 = vmatprep.subr.mxu0 0.0
    %1683 = vmatpush1.msra.mxu0 0.0
    %1684 = vmatprep.subr.mxu0 0.0
    %1685 = vmatpush1.msra.mxu0 0.0
    %1686 = vmatprep.subr.mxu0 0.0
    %1687 = vmatpush1.msra.mxu0 0.0
    %1688 = vmatprep.subr.mxu0 0.0
    %1689 = vmatpush1.msra.mxu0 0.0
    %1690 = vmatprep.subr.mxu0 0.0
    %1691 = vmatpush1.msra.mxu0 0.0
    %1692 = vmatprep.subr.mxu0 0.0
    %1693 = vmatpush1.msra.mxu0 0.0
    %1694 = vmatprep.subr.mxu0 0.0
    %1695 = vmatpush1.msra.mxu0 0.0
    %1696 = vmatprep.subr.mxu0 0.0
    %1697 = vmatpush1.msra.mxu0 0.0
    %1698 = vmatprep.subr.mxu0 0.0
    %1699 = vmatpush1.msra.mxu0 0.0
    %1700 = vmatprep.subr.mxu0 0.0
    %1701 = vmatpush1.msra.mxu0 0.0
    %1702 = vmatprep.subr.mxu0 0.0
    %1703 = vmatpush1.msra.mxu0 0.0
    %1704 = vmatprep.subr.mxu0 0.0
    %1705 = vmatpush1.msra.mxu0 0.0
    %1706 = vmatprep.subr.mxu0 0.0
    %1707 = vmatpush1.msra.mxu0 0.0
    %1708 = vmatprep.subr.mxu0 0.0
    %1709 = vmatpush1.msra.mxu0 0.0
    %1710 = vmatprep.subr.mxu0 0.0
    %1711 = vmatpush1.msra.mxu0 0.0
    %1712 = vmatprep.subr.mxu0 0.0
    %1713 = vmatpush1.msra.mxu0 0.0
    %1714 = vmatprep.subr.mxu0 0.0
    %1715 = vmatpush1.msra.mxu0 0.0
    %1716 = vmatprep.subr.mxu0 0.0
    %1717 = vmatpush1.msra.mxu0 0.0
    %1718 = vmatprep.mubr.f32.mxu0 0.0
    %1719 = vmatmul.mubr.f32.gmra.mrb[0].mxu0 %v143
    %v1720 = vpop.f32.mrb[0].mxu0
    %v1721 = vadd.f32 %v1653, %v1720
    %v1722 = vpop.f32.mrb[0].mxu0
    %1723 = vdwg.mxu0
    %s1724 = scalar_lea.vmem %s3, 352
    %v1725 = vld [vmem:[%s1724] sm:$0xff]
    %v1726 = vld [vmem:[%s1724 + $0x8] sm:$0xff]
    %v1727 = vld [vmem:[%s1724 + $0x10] sm:$0xff]
    %v1728 = vld [vmem:[%s1724 + $0x18] sm:$0xff]
    %v1729 = vld [vmem:[%s4 + $0xb] sm:$0x1]
    %v1730 = vlaneseq
    %v1731 = vshrl.u32 %v1730, 7
    %v1732 = vsub.s32 0, %v1731
    %v1733 = vrot.slane %v1729, %v1732
    %1734 = vmatprep.subr.mxu0 0.0
    %1735 = vmatpush1.msra.mxu0 %v1725
    %1736 = vmatprep.subr.mxu0 0.0
    %1737 = vmatpush1.msra.mxu0 %v1726
    %1738 = vmatprep.subr.mxu0 0.0
    %1739 = vmatpush1.msra.mxu0 %v1727
    %1740 = vmatprep.subr.mxu0 0.0
    %1741 = vmatpush1.msra.mxu0 %v1728
    %1742 = vmatprep.subr.mxu0 0.0
    %1743 = vmatpush1.msra.mxu0 0.0
    %1744 = vmatprep.subr.mxu0 0.0
    %1745 = vmatpush1.msra.mxu0 0.0
    %1746 = vmatprep.subr.mxu0 0.0
    %1747 = vmatpush1.msra.mxu0 0.0
    %1748 = vmatprep.subr.mxu0 0.0
    %1749 = vmatpush1.msra.mxu0 0.0
    %1750 = vmatprep.subr.mxu0 0.0
    %1751 = vmatpush1.msra.mxu0 0.0
    %1752 = vmatprep.subr.mxu0 0.0
    %1753 = vmatpush1.msra.mxu0 0.0
    %1754 = vmatprep.subr.mxu0 0.0
    %1755 = vmatpush1.msra.mxu0 0.0
    %1756 = vmatprep.subr.mxu0 0.0
    %1757 = vmatpush1.msra.mxu0 0.0
    %1758 = vmatprep.subr.mxu0 0.0
    %1759 = vmatpush1.msra.mxu0 0.0
    %1760 = vmatprep.subr.mxu0 0.0
    %1761 = vmatpush1.msra.mxu0 0.0
    %1762 = vmatprep.subr.mxu0 0.0
    %1763 = vmatpush1.msra.mxu0 0.0
    %1764 = vmatprep.subr.mxu0 0.0
    %1765 = vmatpush1.msra.mxu0 0.0
    %1766 = vmatprep.subr.mxu0 0.0
    %1767 = vmatpush1.msra.mxu0 0.0
    %1768 = vmatprep.subr.mxu0 0.0
    %1769 = vmatpush1.msra.mxu0 0.0
    %1770 = vmatprep.subr.mxu0 0.0
    %1771 = vmatpush1.msra.mxu0 0.0
    %1772 = vmatprep.subr.mxu0 0.0
    %1773 = vmatpush1.msra.mxu0 0.0
    %1774 = vmatprep.subr.mxu0 0.0
    %1775 = vmatpush1.msra.mxu0 0.0
    %1776 = vmatprep.subr.mxu0 0.0
    %1777 = vmatpush1.msra.mxu0 0.0
    %1778 = vmatprep.subr.mxu0 0.0
    %1779 = vmatpush1.msra.mxu0 0.0
    %1780 = vmatprep.subr.mxu0 0.0
    %1781 = vmatpush1.msra.mxu0 0.0
    %1782 = vmatprep.subr.mxu0 0.0
    %1783 = vmatpush1.msra.mxu0 0.0
    %1784 = vmatprep.subr.mxu0 0.0
    %1785 = vmatpush1.msra.mxu0 0.0
    %1786 = vmatprep.subr.mxu0 0.0
    %1787 = vmatpush1.msra.mxu0 0.0
    %1788 = vmatprep.subr.mxu0 0.0
    %1789 = vmatpush1.msra.mxu0 0.0
    %1790 = vmatprep.subr.mxu0 0.0
    %1791 = vmatpush1.msra.mxu0 0.0
    %1792 = vmatprep.subr.mxu0 0.0
    %1793 = vmatpush1.msra.mxu0 0.0
    %1794 = vmatprep.subr.mxu0 0.0
    %1795 = vmatpush1.msra.mxu0 0.0
    %1796 = vmatprep.subr.mxu0 0.0
    %1797 = vmatpush1.msra.mxu0 0.0
    %1798 = vmatprep.mubr.f32.mxu0 0.0
    %1799 = vmatmul.mubr.f32.gmra.mrb[0].mxu0 %v143
    %v1800 = vpop.f32.mrb[0].mxu0
    %v1801 = vadd.f32 %v1733, %v1800
    %v1802 = vpop.f32.mrb[0].mxu0
    %1803 = vdwg.mxu0
    %v1805 = vsel %vm375, %v1641, 0
    %v1808 = vsel %vm375, %v1721, 0
    %1810 = vmatprep.subr.mxu0 0.0
    %1811 = vmatpush1.xpose.msra.mxu0 %v1808
    %1812 = vmatprep.subr.mxu0 0.0
    %1813 = vmatpush1.xpose.msra.mxu0 0.0
    %1814 = vmatprep.subr.mxu0 0.0
    %1815 = vmatpush1.xpose.msra.mxu0 0.0
    %1816 = vmatprep.subr.mxu0 0.0
    %1817 = vmatpush1.xpose.msra.mxu0 0.0
    %1818 = vmatprep.subr.mxu0 0.0
    %1819 = vmatpush1.xpose.msra.mxu0 0.0
    %1820 = vmatprep.subr.mxu0 0.0
    %1821 = vmatpush1.xpose.msra.mxu0 0.0
    %1822 = vmatprep.subr.mxu0 0.0
    %1823 = vmatpush1.xpose.msra.mxu0 0.0
    %1824 = vmatprep.subr.mxu0 0.0
    %1825 = vmatpush1.xpose.msra.mxu0 0.0
    %1826 = vmatprep.subr.mxu0 0.0
    %1827 = vmatpush1.xpose.msra.mxu0 0.0
    %1828 = vmatprep.subr.mxu0 0.0
    %1829 = vmatpush1.xpose.msra.mxu0 0.0
    %1830 = vmatprep.subr.mxu0 0.0
    %1831 = vmatpush1.xpose.msra.mxu0 0.0
    %1832 = vmatprep.subr.mxu0 0.0
    %1833 = vmatpush1.xpose.msra.mxu0 0.0
    %1834 = vmatprep.subr.mxu0 0.0
    %1835 = vmatpush1.xpose.msra.mxu0 0.0
    %1836 = vmatprep.subr.mxu0 0.0
    %1837 = vmatpush1.xpose.msra.mxu0 0.0
    %1838 = vmatprep.subr.mxu0 0.0
    %1839 = vmatpush1.xpose.msra.mxu0 0.0
    %1840 = vmatprep.subr.mxu0 0.0
    %1841 = vmatpush1.xpose.msra.mxu0 0.0
    %1842 = vmatprep.subr.mxu0 0.0
    %1843 = vmatpush1.xpose.msra.mxu0 0.0
    %1844 = vmatprep.subr.mxu0 0.0
    %1845 = vmatpush1.xpose.msra.mxu0 0.0
    %1846 = vmatprep.subr.mxu0 0.0
    %1847 = vmatpush1.xpose.msra.mxu0 0.0
    %1848 = vmatprep.subr.mxu0 0.0
    %1849 = vmatpush1.xpose.msra.mxu0 0.0
    %1850 = vmatprep.subr.mxu0 0.0
    %1851 = vmatpush1.xpose.msra.mxu0 0.0
    %1852 = vmatprep.subr.mxu0 0.0
    %1853 = vmatpush1.xpose.msra.mxu0 0.0
    %1854 = vmatprep.subr.mxu0 0.0
    %1855 = vmatpush1.xpose.msra.mxu0 0.0
    %1856 = vmatprep.subr.mxu0 0.0
    %1857 = vmatpush1.xpose.msra.mxu0 0.0
    %1858 = vmatprep.subr.mxu0 0.0
    %1859 = vmatpush1.xpose.msra.mxu0 0.0
    %1860 = vmatprep.subr.mxu0 0.0
    %1861 = vmatpush1.xpose.msra.mxu0 0.0
    %1862 = vmatprep.subr.mxu0 0.0
    %1863 = vmatpush1.xpose.msra.mxu0 0.0
    %1864 = vmatprep.subr.mxu0 0.0
    %1865 = vmatpush1.xpose.msra.mxu0 0.0
    %1866 = vmatprep.subr.mxu0 0.0
    %1867 = vmatpush1.xpose.msra.mxu0 0.0
    %1868 = vmatprep.subr.mxu0 0.0
    %1869 = vmatpush1.xpose.msra.mxu0 0.0
    %1870 = vmatprep.subr.mxu0 0.0
    %1871 = vmatpush1.xpose.msra.mxu0 0.0
    %1872 = vmatprep.subr.mxu0 0.0
    %1873 = vmatpush1.xpose.msra.mxu0 0.0
    %1874 = vmatprep.mubr.f32.mxu0 0.0
    %1875 = vmatmul.mubr.f32.gmra.mrb[0].mxu0 %v1805
    %v1876 = vpop.f32.mrb[0].mxu0
    %v1877 = vadd.f32 0.0, %v1876
    %v1878 = vpop.f32.mrb[0].mxu0
    %1879 = vdwg.mxu0
    %v1880 = vmul.f32 %v1877, 0.35355338
    %v1881 = vsel %vm375, %v1880, -inf
    %1882 = vmax.xlane.f32.xlu0 %v1881
    %v1883 = vpop.xlane.xlu0 %1882
    %v1884 = vsub.f32 %v1880, %v1883
    %v1885 = vmul.f32 %v1884, 1.442695
    %v1886 = vpow.pop %v1885
    %v1887 = vsel %vm375, %v1886, 0.0
    %1888 = vadd.xlane.f32.xlu0 %v1887
    %v1889 = vpop.xlane.xlu0 %1888
    %v1890 = vrcp.pop %v1889
    %v1891 = vmul.f32 %v1886, %v1890
    %v1893 = vsel %vm375, %v1891, 0
    %1895 = vmatprep.subr.mxu0 0.0
    %1896 = vmatpush1.msra.mxu0 %v1801
    %1897 = vmatprep.subr.mxu0 0.0
    %1898 = vmatpush1.msra.mxu0 0.0
    %1899 = vmatprep.subr.mxu0 0.0
    %1900 = vmatpush1.msra.mxu0 0.0
    %1901 = vmatprep.subr.mxu0 0.0
    %1902 = vmatpush1.msra.mxu0 0.0
    %1903 = vmatprep.subr.mxu0 0.0
    %1904 = vmatpush1.msra.mxu0 0.0
    %1905 = vmatprep.subr.mxu0 0.0
    %1906 = vmatpush1.msra.mxu0 0.0
    %1907 = vmatprep.subr.mxu0 0.0
    %1908 = vmatpush1.msra.mxu0 0.0
    %1909 = vmatprep.subr.mxu0 0.0
    %1910 = vmatpush1.msra.mxu0 0.0
    %1911 = vmatprep.subr.mxu0 0.0
    %1912 = vmatpush1.msra.mxu0 0.0
    %1913 = vmatprep.subr.mxu0 0.0
    %1914 = vmatpush1.msra.mxu0 0.0
    %1915 = vmatprep.subr.mxu0 0.0
    %1916 = vmatpush1.msra.mxu0 0.0
    %1917 = vmatprep.subr.mxu0 0.0
    %1918 = vmatpush1.msra.mxu0 0.0
    %1919 = vmatprep.subr.mxu0 0.0
    %1920 = vmatpush1.msra.mxu0 0.0
    %1921 = vmatprep.subr.mxu0 0.0
    %1922 = vmatpush1.msra.mxu0 0.0
    %1923 = vmatprep.subr.mxu0 0.0
    %1924 = vmatpush1.msra.mxu0 0.0
    %1925 = vmatprep.subr.mxu0 0.0
    %1926 = vmatpush1.msra.mxu0 0.0
    %1927 = vmatprep.subr.mxu0 0.0
    %1928 = vmatpush1.msra.mxu0 0.0
    %1929 = vmatprep.subr.mxu0 0.0
    %1930 = vmatpush1.msra.mxu0 0.0
    %1931 = vmatprep.subr.mxu0 0.0
    %1932 = vmatpush1.msra.mxu0 0.0
    %1933 = vmatprep.subr.mxu0 0.0
    %1934 = vmatpush1.msra.mxu0 0.0
    %1935 = vmatprep.subr.mxu0 0.0
    %1936 = vmatpush1.msra.mxu0 0.0
    %1937 = vmatprep.subr.mxu0 0.0
    %1938 = vmatpush1.msra.mxu0 0.0
    %1939 = vmatprep.subr.mxu0 0.0
    %1940 = vmatpush1.msra.mxu0 0.0
    %1941 = vmatprep.subr.mxu0 0.0
    %1942 = vmatpush1.msra.mxu0 0.0
    %1943 = vmatprep.subr.mxu0 0.0
    %1944 = vmatpush1.msra.mxu0 0.0
    %1945 = vmatprep.subr.mxu0 0.0
    %1946 = vmatpush1.msra.mxu0 0.0
    %1947 = vmatprep.subr.mxu0 0.0
    %1948 = vmatpush1.msra.mxu0 0.0
    %1949 = vmatprep.subr.mxu0 0.0
    %1950 = vmatpush1.msra.mxu0 0.0
    %1951 = vmatprep.subr.mxu0 0.0
    %1952 = vmatpush1.msra.mxu0 0.0
    %1953 = vmatprep.subr.mxu0 0.0
    %1954 = vmatpush1.msra.mxu0 0.0
    %1955 = vmatprep.subr.mxu0 0.0
    %1956 = vmatpush1.msra.mxu0 0.0
    %1957 = vmatprep.subr.mxu0 0.0
    %1958 = vmatpush1.msra.mxu0 0.0
    %1959 = vmatprep.mubr.f32.mxu0 0.0
    %1960 = vmatmul.mubr.f32.gmra.mrb[0].mxu0 %v1893
    %v1961 = vpop.f32.mrb[0].mxu0
    %v1962 = vadd.f32 0.0, %v1961
    %v1963 = vpop.f32.mrb[0].mxu0
    %1964 = vdwg.mxu0
    %s1965 = scalar_lea.vmem %s5, 24
    %v1966 = vld [vmem:[%s1965] sm:$0xff]
    %v1968 = vsel %vm375, %v1962, 0
    %1970 = vmatprep.subr.mxu0 0.0
    %1971 = vmatpush1.msra.mxu0 %v1966
    %1972 = vmatprep.subr.mxu0 0.0
    %1973 = vmatpush1.msra.mxu0 0.0
    %1974 = vmatprep.subr.mxu0 0.0
    %1975 = vmatpush1.msra.mxu0 0.0
    %1976 = vmatprep.subr.mxu0 0.0
    %1977 = vmatpush1.msra.mxu0 0.0
    %1978 = vmatprep.subr.mxu0 0.0
    %1979 = vmatpush1.msra.mxu0 0.0
    %1980 = vmatprep.subr.mxu0 0.0
    %1981 = vmatpush1.msra.mxu0 0.0
    %1982 = vmatprep.subr.mxu0 0.0
    %1983 = vmatpush1.msra.mxu0 0.0
    %1984 = vmatprep.subr.mxu0 0.0
    %1985 = vmatpush1.msra.mxu0 0.0
    %1986 = vmatprep.subr.mxu0 0.0
    %1987 = vmatpush1.msra.mxu0 0.0
    %1988 = vmatprep.subr.mxu0 0.0
    %1989 = vmatpush1.msra.mxu0 0.0
    %1990 = vmatprep.subr.mxu0 0.0
    %1991 = vmatpush1.msra.mxu0 0.0
    %1992 = vmatprep.subr.mxu0 0.0
    %1993 = vmatpush1.msra.mxu0 0.0
    %1994 = vmatprep.subr.mxu0 0.0
    %1995 = vmatpush1.msra.mxu0 0.0
    %1996 = vmatprep.subr.mxu0 0.0
    %1997 = vmatpush1.msra.mxu0 0.0
    %1998 = vmatprep.subr.mxu0 0.0
    %1999 = vmatpush1.msra.mxu0 0.0
    %2000 = vmatprep.subr.mxu0 0.0
    %2001 = vmatpush1.msra.mxu0 0.0
    %2002 = vmatprep.subr.mxu0 0.0
    %2003 = vmatpush1.msra.mxu0 0.0
    %2004 = vmatprep.subr.mxu0 0.0
    %2005 = vmatpush1.msra.mxu0 0.0
    %2006 = vmatprep.subr.mxu0 0.0
    %2007 = vmatpush1.msra.mxu0 0.0
    %2008 = vmatprep.subr.mxu0 0.0
    %2009 = vmatpush1.msra.mxu0 0.0
    %2010 = vmatprep.subr.mxu0 0.0
    %2011 = vmatpush1.msra.mxu0 0.0
    %2012 = vmatprep.subr.mxu0 0.0
    %2013 = vmatpush1.msra.mxu0 0.0
    %2014 = vmatprep.subr.mxu0 0.0
    %2015 = vmatpush1.msra.mxu0 0.0
    %2016 = vmatprep.subr.mxu0 0.0
    %2017 = vmatpush1.msra.mxu0 0.0
    %2018 = vmatprep.subr.mxu0 0.0
    %2019 = vmatpush1.msra.mxu0 0.0
    %2020 = vmatprep.subr.mxu0 0.0
    %2021 = vmatpush1.msra.mxu0 0.0
    %2022 = vmatprep.subr.mxu0 0.0
    %2023 = vmatpush1.msra.mxu0 0.0
    %2024 = vmatprep.subr.mxu0 0.0
    %2025 = vmatpush1.msra.mxu0 0.0
    %2026 = vmatprep.subr.mxu0 0.0
    %2027 = vmatpush1.msra.mxu0 0.0
    %2028 = vmatprep.subr.mxu0 0.0
    %2029 = vmatpush1.msra.mxu0 0.0
    %2030 = vmatprep.subr.mxu0 0.0
    %2031 = vmatpush1.msra.mxu0 0.0
    %2032 = vmatprep.subr.mxu0 0.0
    %2033 = vmatpush1.msra.mxu0 0.0
    %2034 = vmatprep.mubr.f32.mxu0 0.0
    %2035 = vmatmul.mubr.f32.gmra.mrb[0].mxu0 %v1968
    %v2036 = vpop.f32.mrb[0].mxu0
    %v2037 = vadd.f32 0.0, %v2036
    %v2038 = vpop.f32.mrb[0].mxu0
    %2039 = vdwg.mxu0
    %v2040 = vadd.f32 %v1563, %v2037
    %v2041 = vld [vmem:[%s6] sm:$0x1]
    %v2042 = vlaneseq
    %v2043 = vshrl.u32 %v2042, 7
    %v2044 = vsub.s32 0, %v2043
    %v2045 = vrot.slane %v2041, %v2044
    %v2046 = vadd.f32 %v2040, %v2045
    %v2047 = vadd.f32 %v129, %v2046
    %v2048 = vld [vmem:[%s6 + $0x1] sm:$0x1]
    %v2049 = vld [vmem:[%s6 + $0x2] sm:$0x1]
    %v2050 = vsel %vm141, %v2047, 0.0
    %2051 = vadd.xlane.f32.xlu0 %v2050
    %v2052 = vpop.xlane.xlu0 %2051
    %v2053 = vrcp.pop 32.0
    %v2054 = vmul.f32 %v2052, %v2053
    %v2055 = vsub.f32 %v2047, %v2054
    %v2056 = vmul.f32 %v2055, %v2055
    %v2057 = vsel %vm141, %v2056, 0.0
    %2058 = vadd.xlane.f32.xlu0 %v2057
    %v2059 = vpop.xlane.xlu0 %2058
    %v2060 = vmul.f32 %v2059, %v2053
    %v2061 = vadd.f32 %v2060, 1e-05
    %v2062 = vrsqrt.pop %v2061
    %v2063 = vmul.f32 %v2055, %v2062
    %v2064 = vlaneseq
    %v2065 = vshrl.u32 %v2064, 7
    %v2066 = vsub.s32 0, %v2065
    %v2067 = vrot.slane %v2048, %v2066
    %v2068 = vmul.f32 %v2063, %v2067
    %v2069 = vlaneseq
    %v2070 = vshrl.u32 %v2069, 7
    %v2071 = vsub.s32 0, %v2070
    %v2072 = vrot.slane %v2049, %v2071
    %v2073 = vadd.f32 %v2068, %v2072
    %v2074 = vld [vmem:[%s7] sm:$0xff]
    %v2075 = vld [vmem:[%s7 + $0x8] sm:$0xff]
    %v2076 = vld [vmem:[%s7 + $0x10] sm:$0xff]
    %v2077 = vld [vmem:[%s7 + $0x18] sm:$0xff]
    %v2078 = vld [vmem:[%s8] sm:$0x1]
    %v2079 = vlaneseq
    %v2080 = vshrl.u32 %v2079, 7
    %v2081 = vsub.s32 0, %v2080
    %v2082 = vrot.slane %v2078, %v2081
    %v2084 = vsel %vm141, %v2073, 0
    %2086 = vmatprep.subr.mxu0 0.0
    %2087 = vmatpush1.msra.mxu0 %v2074
    %2088 = vmatprep.subr.mxu0 0.0
    %2089 = vmatpush1.msra.mxu0 %v2075
    %2090 = vmatprep.subr.mxu0 0.0
    %2091 = vmatpush1.msra.mxu0 %v2076
    %2092 = vmatprep.subr.mxu0 0.0
    %2093 = vmatpush1.msra.mxu0 %v2077
    %2094 = vmatprep.subr.mxu0 0.0
    %2095 = vmatpush1.msra.mxu0 0.0
    %2096 = vmatprep.subr.mxu0 0.0
    %2097 = vmatpush1.msra.mxu0 0.0
    %2098 = vmatprep.subr.mxu0 0.0
    %2099 = vmatpush1.msra.mxu0 0.0
    %2100 = vmatprep.subr.mxu0 0.0
    %2101 = vmatpush1.msra.mxu0 0.0
    %2102 = vmatprep.subr.mxu0 0.0
    %2103 = vmatpush1.msra.mxu0 0.0
    %2104 = vmatprep.subr.mxu0 0.0
    %2105 = vmatpush1.msra.mxu0 0.0
    %2106 = vmatprep.subr.mxu0 0.0
    %2107 = vmatpush1.msra.mxu0 0.0
    %2108 = vmatprep.subr.mxu0 0.0
    %2109 = vmatpush1.msra.mxu0 0.0
    %2110 = vmatprep.subr.mxu0 0.0
    %2111 = vmatpush1.msra.mxu0 0.0
    %2112 = vmatprep.subr.mxu0 0.0
    %2113 = vmatpush1.msra.mxu0 0.0
    %2114 = vmatprep.subr.mxu0 0.0
    %2115 = vmatpush1.msra.mxu0 0.0
    %2116 = vmatprep.subr.mxu0 0.0
    %2117 = vmatpush1.msra.mxu0 0.0
    %2118 = vmatprep.subr.mxu0 0.0
    %2119 = vmatpush1.msra.mxu0 0.0
    %2120 = vmatprep.subr.mxu0 0.0
    %2121 = vmatpush1.msra.mxu0 0.0
    %2122 = vmatprep.subr.mxu0 0.0
    %2123 = vmatpush1.msra.mxu0 0.0
    %2124 = vmatprep.subr.mxu0 0.0
    %2125 = vmatpush1.msra.mxu0 0.0
    %2126 = vmatprep.subr.mxu0 0.0
    %2127 = vmatpush1.msra.mxu0 0.0
    %2128 = vmatprep.subr.mxu0 0.0
    %2129 = vmatpush1.msra.mxu0 0.0
    %2130 = vmatprep.subr.mxu0 0.0
    %2131 = vmatpush1.msra.mxu0 0.0
    %2132 = vmatprep.subr.mxu0 0.0
    %2133 = vmatpush1.msra.mxu0 0.0
    %2134 = vmatprep.subr.mxu0 0.0
    %2135 = vmatpush1.msra.mxu0 0.0
    %2136 = vmatprep.subr.mxu0 0.0
    %2137 = vmatpush1.msra.mxu0 0.0
    %2138 = vmatprep.subr.mxu0 0.0
    %2139 = vmatpush1.msra.mxu0 0.0
    %2140 = vmatprep.subr.mxu0 0.0
    %2141 = vmatpush1.msra.mxu0 0.0
    %2142 = vmatprep.subr.mxu0 0.0
    %2143 = vmatpush1.msra.mxu0 0.0
    %2144 = vmatprep.subr.mxu0 0.0
    %2145 = vmatpush1.msra.mxu0 0.0
    %2146 = vmatprep.subr.mxu0 0.0
    %2147 = vmatpush1.msra.mxu0 0.0
    %2148 = vmatprep.subr.mxu0 0.0
    %2149 = vmatpush1.msra.mxu0 0.0
    %2150 = vmatprep.mubr.f32.mxu0 0.0
    %2151 = vmatmul.mubr.f32.gmra.mrb[0].mxu0 %v2084
    %v2152 = vpop.f32.mrb[0].mxu0
    %v2153 = vadd.f32 %v2082, %v2152
    %v2154 = vpop.f32.mrb[0].mxu0
    %2155 = vdwg.mxu0
    %v2156 = vmax.f32 %v2153, 0.0
    %v2157 = vld [vmem:[%s9] sm:$0xff]
    %v2158 = vld [vmem:[%s9 + $0x8] sm:$0xff]
    %v2159 = vld [vmem:[%s9 + $0x10] sm:$0xff]
    %v2160 = vld [vmem:[%s9 + $0x18] sm:$0xff]
    %v2161 = vld [vmem:[%s9 + $0x20] sm:$0xff]
    %v2162 = vld [vmem:[%s9 + $0x28] sm:$0xff]
    %v2163 = vld [vmem:[%s9 + $0x30] sm:$0xff]
    %v2164 = vld [vmem:[%s9 + $0x38] sm:$0xff]
    %v2165 = vld [vmem:[%s9 + $0x40] sm:$0xff]
    %v2166 = vld [vmem:[%s9 + $0x48] sm:$0xff]
    %v2167 = vld [vmem:[%s9 + $0x50] sm:$0xff]
    %v2168 = vld [vmem:[%s9 + $0x58] sm:$0xff]
    %v2169 = vld [vmem:[%s9 + $0x60] sm:$0xff]
    %v2170 = vld [vmem:[%s9 + $0x68] sm:$0xff]
    %v2171 = vld [vmem:[%s9 + $0x70] sm:$0xff]
    %v2172 = vld [vmem:[%s9 + $0x78] sm:$0xff]
    %v2173 = vld [vmem:[%s6 + $0x3] sm:$0x1]
    %v2174 = vlaneseq
    %v2175 = vshrl.u32 %v2174, 7
    %v2176 = vsub.s32 0, %v2175
    %v2177 = vrot.slane %v2173, %v2176
    %2178 = vmatprep.subr.mxu0 0.0
    %2179 = vmatpush1.msra.mxu0 %v2157
    %2180 = vmatprep.subr.mxu0 0.0
    %2181 = vmatpush1.msra.mxu0 %v2158
    %2182 = vmatprep.subr.mxu0 0.0
    %2183 = vmatpush1.msra.mxu0 %v2159
    %2184 = vmatprep.subr.mxu0 0.0
    %2185 = vmatpush1.msra.mxu0 %v2160
    %2186 = vmatprep.subr.mxu0 0.0
    %2187 = vmatpush1.msra.mxu0 %v2161
    %2188 = vmatprep.subr.mxu0 0.0
    %2189 = vmatpush1.msra.mxu0 %v2162
    %2190 = vmatprep.subr.mxu0 0.0
    %2191 = vmatpush1.msra.mxu0 %v2163
    %2192 = vmatprep.subr.mxu0 0.0
    %2193 = vmatpush1.msra.mxu0 %v2164
    %2194 = vmatprep.subr.mxu0 0.0
    %2195 = vmatpush1.msra.mxu0 %v2165
    %2196 = vmatprep.subr.mxu0 0.0
    %2197 = vmatpush1.msra.mxu0 %v2166
    %2198 = vmatprep.subr.mxu0 0.0
    %2199 = vmatpush1.msra.mxu0 %v2167
    %2200 = vmatprep.subr.mxu0 0.0
    %2201 = vmatpush1.msra.mxu0 %v2168
    %2202 = vmatprep.subr.mxu0 0.0
    %2203 = vmatpush1.msra.mxu0 %v2169
    %2204 = vmatprep.subr.mxu0 0.0
    %2205 = vmatpush1.msra.mxu0 %v2170
    %2206 = vmatprep.subr.mxu0 0.0
    %2207 = vmatpush1.msra.mxu0 %v2171
    %2208 = vmatprep.subr.mxu0 0.0
    %2209 = vmatpush1.msra.mxu0 %v2172
    %2210 = vmatprep.subr.mxu0 0.0
    %2211 = vmatpush1.msra.mxu0 0.0
    %2212 = vmatprep.subr.mxu0 0.0
    %2213 = vmatpush1.msra.mxu0 0.0
    %2214 = vmatprep.subr.mxu0 0.0
    %2215 = vmatpush1.msra.mxu0 0.0
    %2216 = vmatprep.subr.mxu0 0.0
    %2217 = vmatpush1.msra.mxu0 0.0
    %2218 = vmatprep.subr.mxu0 0.0
    %2219 = vmatpush1.msra.mxu0 0.0
    %2220 = vmatprep.subr.mxu0 0.0
    %2221 = vmatpush1.msra.mxu0 0.0
    %2222 = vmatprep.subr.mxu0 0.0
    %2223 = vmatpush1.msra.mxu0 0.0
    %2224 = vmatprep.subr.mxu0 0.0
    %2225 = vmatpush1.msra.mxu0 0.0
    %2226 = vmatprep.subr.mxu0 0.0
    %2227 = vmatpush1.msra.mxu0 0.0
    %2228 = vmatprep.subr.mxu0 0.0
    %2229 = vmatpush1.msra.mxu0 0.0
    %2230 = vmatprep.subr.mxu0 0.0
    %2231 = vmatpush1.msra.mxu0 0.0
    %2232 = vmatprep.subr.mxu0 0.0
    %2233 = vmatpush1.msra.mxu0 0.0
    %2234 = vmatprep.subr.mxu0 0.0
    %2235 = vmatpush1.msra.mxu0 0.0
    %2236 = vmatprep.subr.mxu0 0.0
    %2237 = vmatpush1.msra.mxu0 0.0
    %2238 = vmatprep.subr.mxu0 0.0
    %2239 = vmatpush1.msra.mxu0 0.0
    %2240 = vmatprep.subr.mxu0 0.0
    %2241 = vmatpush1.msra.mxu0 0.0
    %2242 = vmatprep.mubr.f32.mxu0 0.0
    %2243 = vmatmul.mubr.f32.gmra.mrb[0].mxu0 %v2156
    %v2244 = vpop.f32.mrb[0].mxu0
    %v2245 = vadd.f32 %v2177, %v2244
    %v2246 = vpop.f32.mrb[0].mxu0
    %2247 = vdwg.mxu0
    %v2248 = vadd.f32 %v2073, %v2245
    %v2249 = vld [vmem:[%s6 + $0x4] sm:$0x1]
    %v2250 = vld [vmem:[%s6 + $0x5] sm:$0x1]
    %v2251 = vsel %vm141, %v2248, 0.0
    %2252 = vadd.xlane.f32.xlu0 %v2251
    %v2253 = vpop.xlane.xlu0 %2252
    %v2254 = vmul.f32 %v2253, %v2053
    %v2255 = vsub.f32 %v2248, %v2254
    %v2256 = vmul.f32 %v2255, %v2255
    %v2257 = vsel %vm141, %v2256, 0.0
    %2258 = vadd.xlane.f32.xlu0 %v2257
    %v2259 = vpop.xlane.xlu0 %2258
    %v2260 = vmul.f32 %v2259, %v2053
    %v2261 = vadd.f32 %v2260, 1e-05
    %v2262 = vrsqrt.pop %v2261
    %v2263 = vmul.f32 %v2255, %v2262
    %v2264 = vlaneseq
    %v2265 = vshrl.u32 %v2264, 7
    %v2266 = vsub.s32 0, %v2265
    %v2267 = vrot.slane %v2249, %v2266
    %v2268 = vmul.f32 %v2263, %v2267
    %v2269 = vlaneseq
    %v2270 = vshrl.u32 %v2269, 7
    %v2271 = vsub.s32 0, %v2270
    %v2272 = vrot.slane %v2250, %v2271
    %v2273 = vadd.f32 %v2268, %v2272
    %s2274 = scalar_lea.vmem %s3, 384
    %v2275 = vld [vmem:[%s2274] sm:$0xff]
    %v2276 = vld [vmem:[%s2274 + $0x8] sm:$0xff]
    %v2277 = vld [vmem:[%s2274 + $0x10] sm:$0xff]
    %v2278 = vld [vmem:[%s2274 + $0x18] sm:$0xff]
    %v2279 = vld [vmem:[%s4 + $0xc] sm:$0x1]
    %v2280 = vlaneseq
    %v2281 = vshrl.u32 %v2280, 7
    %v2282 = vsub.s32 0, %v2281
    %v2283 = vrot.slane %v2279, %v2282
    %v2285 = vsel %vm141, %v2273, 0
    %2287 = vmatprep.subr.mxu0 0.0
    %2288 = vmatpush1.msra.mxu0 %v2275
    %2289 = vmatprep.subr.mxu0 0.0
    %2290 = vmatpush1.msra.mxu0 %v2276
    %2291 = vmatprep.subr.mxu0 0.0
    %2292 = vmatpush1.msra.mxu0 %v2277
    %2293 = vmatprep.subr.mxu0 0.0
    %2294 = vmatpush1.msra.mxu0 %v2278
    %2295 = vmatprep.subr.mxu0 0.0
    %2296 = vmatpush1.msra.mxu0 0.0
    %2297 = vmatprep.subr.mxu0 0.0
    %2298 = vmatpush1.msra.mxu0 0.0
    %2299 = vmatprep.subr.mxu0 0.0
    %2300 = vmatpush1.msra.mxu0 0.0
    %2301 = vmatprep.subr.mxu0 0.0
    %2302 = vmatpush1.msra.mxu0 0.0
    %2303 = vmatprep.subr.mxu0 0.0
    %2304 = vmatpush1.msra.mxu0 0.0
    %2305 = vmatprep.subr.mxu0 0.0
    %2306 = vmatpush1.msra.mxu0 0.0
    %2307 = vmatprep.subr.mxu0 0.0
    %2308 = vmatpush1.msra.mxu0 0.0
    %2309 = vmatprep.subr.mxu0 0.0
    %2310 = vmatpush1.msra.mxu0 0.0
    %2311 = vmatprep.subr.mxu0 0.0
    %2312 = vmatpush1.msra.mxu0 0.0
    %2313 = vmatprep.subr.mxu0 0.0
    %2314 = vmatpush1.msra.mxu0 0.0
    %2315 = vmatprep.subr.mxu0 0.0
    %2316 = vmatpush1.msra.mxu0 0.0
    %2317 = vmatprep.subr.mxu0 0.0
    %2318 = vmatpush1.msra.mxu0 0.0
    %2319 = vmatprep.subr.mxu0 0.0
    %2320 = vmatpush1.msra.mxu0 0.0
    %2321 = vmatprep.subr.mxu0 0.0
    %2322 = vmatpush1.msra.mxu0 0.0
    %2323 = vmatprep.subr.mxu0 0.0
    %2324 = vmatpush1.msra.mxu0 0.0
    %2325 = vmatprep.subr.mxu0 0.0
    %2326 = vmatpush1.msra.mxu0 0.0
    %2327 = vmatprep.subr.mxu0 0.0
    %2328 = vmatpush1.msra.mxu0 0.0
    %2329 = vmatprep.subr.mxu0 0.0
    %2330 = vmatpush1.msra.mxu0 0.0
    %2331 = vmatprep.subr.mxu0 0.0
    %2332 = vmatpush1.msra.mxu0 0.0
    %2333 = vmatprep.subr.mxu0 0.0
    %2334 = vmatpush1.msra.mxu0 0.0
    %2335 = vmatprep.subr.mxu0 0.0
    %2336 = vmatpush1.msra.mxu0 0.0
    %2337 = vmatprep.subr.mxu0 0.0
    %2338 = vmatpush1.msra.mxu0 0.0
    %2339 = vmatprep.subr.mxu0 0.0
    %2340 = vmatpush1.msra.mxu0 0.0
    %2341 = vmatprep.subr.mxu0 0.0
    %2342 = vmatpush1.msra.mxu0 0.0
    %2343 = vmatprep.subr.mxu0 0.0
    %2344 = vmatpush1.msra.mxu0 0.0
    %2345 = vmatprep.subr.mxu0 0.0
    %2346 = vmatpush1.msra.mxu0 0.0
    %2347 = vmatprep.subr.mxu0 0.0
    %2348 = vmatpush1.msra.mxu0 0.0
    %2349 = vmatprep.subr.mxu0 0.0
    %2350 = vmatpush1.msra.mxu0 0.0
    %2351 = vmatprep.mubr.f32.mxu0 0.0
    %2352 = vmatmul.mubr.f32.gmra.mrb[0].mxu0 %v2285
    %v2353 = vpop.f32.mrb[0].mxu0
    %v2354 = vadd.f32 %v2283, %v2353
    %v2355 = vpop.f32.mrb[0].mxu0
    %2356 = vdwg.mxu0
    %s2357 = scalar_lea.vmem %s3, 512
    %v2358 = vld [vmem:[%s2357] sm:$0xff]
    %v2359 = vld [vmem:[%s2357 + $0x8] sm:$0xff]
    %v2360 = vld [vmem:[%s2357 + $0x10] sm:$0xff]
    %v2361 = vld [vmem:[%s2357 + $0x18] sm:$0xff]
    %v2362 = vld [vmem:[%s4 + $0x10] sm:$0x1]
    %v2363 = vlaneseq
    %v2364 = vshrl.u32 %v2363, 7
    %v2365 = vsub.s32 0, %v2364
    %v2366 = vrot.slane %v2362, %v2365
    %2367 = vmatprep.subr.mxu0 0.0
    %2368 = vmatpush1.msra.mxu0 %v2358
    %2369 = vmatprep.subr.mxu0 0.0
    %2370 = vmatpush1.msra.mxu0 %v2359
    %2371 = vmatprep.subr.mxu0 0.0
    %2372 = vmatpush1.msra.mxu0 %v2360
    %2373 = vmatprep.subr.mxu0 0.0
    %2374 = vmatpush1.msra.mxu0 %v2361
    %2375 = vmatprep.subr.mxu0 0.0
    %2376 = vmatpush1.msra.mxu0 0.0
    %2377 = vmatprep.subr.mxu0 0.0
    %2378 = vmatpush1.msra.mxu0 0.0
    %2379 = vmatprep.subr.mxu0 0.0
    %2380 = vmatpush1.msra.mxu0 0.0
    %2381 = vmatprep.subr.mxu0 0.0
    %2382 = vmatpush1.msra.mxu0 0.0
    %2383 = vmatprep.subr.mxu0 0.0
    %2384 = vmatpush1.msra.mxu0 0.0
    %2385 = vmatprep.subr.mxu0 0.0
    %2386 = vmatpush1.msra.mxu0 0.0
    %2387 = vmatprep.subr.mxu0 0.0
    %2388 = vmatpush1.msra.mxu0 0.0
    %2389 = vmatprep.subr.mxu0 0.0
    %2390 = vmatpush1.msra.mxu0 0.0
    %2391 = vmatprep.subr.mxu0 0.0
    %2392 = vmatpush1.msra.mxu0 0.0
    %2393 = vmatprep.subr.mxu0 0.0
    %2394 = vmatpush1.msra.mxu0 0.0
    %2395 = vmatprep.subr.mxu0 0.0
    %2396 = vmatpush1.msra.mxu0 0.0
    %2397 = vmatprep.subr.mxu0 0.0
    %2398 = vmatpush1.msra.mxu0 0.0
    %2399 = vmatprep.subr.mxu0 0.0
    %2400 = vmatpush1.msra.mxu0 0.0
    %2401 = vmatprep.subr.mxu0 0.0
    %2402 = vmatpush1.msra.mxu0 0.0
    %2403 = vmatprep.subr.mxu0 0.0
    %2404 = vmatpush1.msra.mxu0 0.0
    %2405 = vmatprep.subr.mxu0 0.0
    %2406 = vmatpush1.msra.mxu0 0.0
    %2407 = vmatprep.subr.mxu0 0.0
    %2408 = vmatpush1.msra.mxu0 0.0
    %2409 = vmatprep.subr.mxu0 0.0
    %2410 = vmatpush1.msra.mxu0 0.0
    %2411 = vmatprep.subr.mxu0 0.0
    %2412 = vmatpush1.msra.mxu0 0.0
    %2413 = vmatprep.subr.mxu0 0.0
    %2414 = vmatpush1.msra.mxu0 0.0
    %2415 = vmatprep.subr.mxu0 0.0
    %2416 = vmatpush1.msra.mxu0 0.0
    %2417 = vmatprep.subr.mxu0 0.0
    %2418 = vmatpush1.msra.mxu0 0.0
    %2419 = vmatprep.subr.mxu0 0.0
    %2420 = vmatpush1.msra.mxu0 0.0
    %2421 = vmatprep.subr.mxu0 0.0
    %2422 = vmatpush1.msra.mxu0 0.0
    %2423 = vmatprep.subr.mxu0 0.0
    %2424 = vmatpush1.msra.mxu0 0.0
    %2425 = vmatprep.subr.mxu0 0.0
    %2426 = vmatpush1.msra.mxu0 0.0
    %2427 = vmatprep.subr.mxu0 0.0
    %2428 = vmatpush1.msra.mxu0 0.0
    %2429 = vmatprep.subr.mxu0 0.0
    %2430 = vmatpush1.msra.mxu0 0.0
    %2431 = vmatprep.mubr.f32.mxu0 0.0
    %2432 = vmatmul.mubr.f32.gmra.mrb[0].mxu0 %v2285
    %v2433 = vpop.f32.mrb[0].mxu0
    %v2434 = vadd.f32 %v2366, %v2433
    %v2435 = vpop.f32.mrb[0].mxu0
    %2436 = vdwg.mxu0
    %s2437 = scalar_lea.vmem %s3, 640
    %v2438 = vld [vmem:[%s2437] sm:$0xff]
    %v2439 = vld [vmem:[%s2437 + $0x8] sm:$0xff]
    %v2440 = vld [vmem:[%s2437 + $0x10] sm:$0xff]
    %v2441 = vld [vmem:[%s2437 + $0x18] sm:$0xff]
    %v2442 = vld [vmem:[%s4 + $0x14] sm:$0x1]
    %v2443 = vlaneseq
    %v2444 = vshrl.u32 %v2443, 7
    %v2445 = vsub.s32 0, %v2444
    %v2446 = vrot.slane %v2442, %v2445
    %2447 = vmatprep.subr.mxu0 0.0
    %2448 = vmatpush1.msra.mxu0 %v2438
    %2449 = vmatprep.subr.mxu0 0.0
    %2450 = vmatpush1.msra.mxu0 %v2439
    %2451 = vmatprep.subr.mxu0 0.0
    %2452 = vmatpush1.msra.mxu0 %v2440
    %2453 = vmatprep.subr.mxu0 0.0
    %2454 = vmatpush1.msra.mxu0 %v2441
    %2455 = vmatprep.subr.mxu0 0.0
    %2456 = vmatpush1.msra.mxu0 0.0
    %2457 = vmatprep.subr.mxu0 0.0
    %2458 = vmatpush1.msra.mxu0 0.0
    %2459 = vmatprep.subr.mxu0 0.0
    %2460 = vmatpush1.msra.mxu0 0.0
    %2461 = vmatprep.subr.mxu0 0.0
    %2462 = vmatpush1.msra.mxu0 0.0
    %2463 = vmatprep.subr.mxu0 0.0
    %2464 = vmatpush1.msra.mxu0 0.0
    %2465 = vmatprep.subr.mxu0 0.0
    %2466 = vmatpush1.msra.mxu0 0.0
    %2467 = vmatprep.subr.mxu0 0.0
    %2468 = vmatpush1.msra.mxu0 0.0
    %2469 = vmatprep.subr.mxu0 0.0
    %2470 = vmatpush1.msra.mxu0 0.0
    %2471 = vmatprep.subr.mxu0 0.0
    %2472 = vmatpush1.msra.mxu0 0.0
    %2473 = vmatprep.subr.mxu0 0.0
    %2474 = vmatpush1.msra.mxu0 0.0
    %2475 = vmatprep.subr.mxu0 0.0
    %2476 = vmatpush1.msra.mxu0 0.0
    %2477 = vmatprep.subr.mxu0 0.0
    %2478 = vmatpush1.msra.mxu0 0.0
    %2479 = vmatprep.subr.mxu0 0.0
    %2480 = vmatpush1.msra.mxu0 0.0
    %2481 = vmatprep.subr.mxu0 0.0
    %2482 = vmatpush1.msra.mxu0 0.0
    %2483 = vmatprep.subr.mxu0 0.0
    %2484 = vmatpush1.msra.mxu0 0.0
    %2485 = vmatprep.subr.mxu0 0.0
    %2486 = vmatpush1.msra.mxu0 0.0
    %2487 = vmatprep.subr.mxu0 0.0
    %2488 = vmatpush1.msra.mxu0 0.0
    %2489 = vmatprep.subr.mxu0 0.0
    %2490 = vmatpush1.msra.mxu0 0.0
    %2491 = vmatprep.subr.mxu0 0.0
    %2492 = vmatpush1.msra.mxu0 0.0
    %2493 = vmatprep.subr.mxu0 0.0
    %2494 = vmatpush1.msra.mxu0 0.0
    %2495 = vmatprep.subr.mxu0 0.0
    %2496 = vmatpush1.msra.mxu0 0.0
    %2497 = vmatprep.subr.mxu0 0.0
    %2498 = vmatpush1.msra.mxu0 0.0
    %2499 = vmatprep.subr.mxu0 0.0
    %2500 = vmatpush1.msra.mxu0 0.0
    %2501 = vmatprep.subr.mxu0 0.0
    %2502 = vmatpush1.msra.mxu0 0.0
    %2503 = vmatprep.subr.mxu0 0.0
    %2504 = vmatpush1.msra.mxu0 0.0
    %2505 = vmatprep.subr.mxu0 0.0
    %2506 = vmatpush1.msra.mxu0 0.0
    %2507 = vmatprep.subr.mxu0 0.0
    %2508 = vmatpush1.msra.mxu0 0.0
    %2509 = vmatprep.subr.mxu0 0.0
    %2510 = vmatpush1.msra.mxu0 0.0
    %2511 = vmatprep.mubr.f32.mxu0 0.0
    %2512 = vmatmul.mubr.f32.gmra.mrb[0].mxu0 %v2285
    %v2513 = vpop.f32.mrb[0].mxu0
    %v2514 = vadd.f32 %v2446, %v2513
    %v2515 = vpop.f32.mrb[0].mxu0
    %2516 = vdwg.mxu0
    %v2518 = vsel %vm375, %v2354, 0
    %v2521 = vsel %vm375, %v2434, 0
    %2523 = vmatprep.subr.mxu0 0.0
    %2524 = vmatpush1.xpose.msra.mxu0 %v2521
    %2525 = vmatprep.subr.mxu0 0.0
    %2526 = vmatpush1.xpose.msra.mxu0 0.0
    %2527 = vmatprep.subr.mxu0 0.0
    %2528 = vmatpush1.xpose.msra.mxu0 0.0
    %2529 = vmatprep.subr.mxu0 0.0
    %2530 = vmatpush1.xpose.msra.mxu0 0.0
    %2531 = vmatprep.subr.mxu0 0.0
    %2532 = vmatpush1.xpose.msra.mxu0 0.0
    %2533 = vmatprep.subr.mxu0 0.0
    %2534 = vmatpush1.xpose.msra.mxu0 0.0
    %2535 = vmatprep.subr.mxu0 0.0
    %2536 = vmatpush1.xpose.msra.mxu0 0.0
    %2537 = vmatprep.subr.mxu0 0.0
    %2538 = vmatpush1.xpose.msra.mxu0 0.0
    %2539 = vmatprep.subr.mxu0 0.0
    %2540 = vmatpush1.xpose.msra.mxu0 0.0
    %2541 = vmatprep.subr.mxu0 0.0
    %2542 = vmatpush1.xpose.msra.mxu0 0.0
    %2543 = vmatprep.subr.mxu0 0.0
    %2544 = vmatpush1.xpose.msra.mxu0 0.0
    %2545 = vmatprep.subr.mxu0 0.0
    %2546 = vmatpush1.xpose.msra.mxu0 0.0
    %2547 = vmatprep.subr.mxu0 0.0
    %2548 = vmatpush1.xpose.msra.mxu0 0.0
    %2549 = vmatprep.subr.mxu0 0.0
    %2550 = vmatpush1.xpose.msra.mxu0 0.0
    %2551 = vmatprep.subr.mxu0 0.0
    %2552 = vmatpush1.xpose.msra.mxu0 0.0
    %2553 = vmatprep.subr.mxu0 0.0
    %2554 = vmatpush1.xpose.msra.mxu0 0.0
    %2555 = vmatprep.subr.mxu0 0.0
    %2556 = vmatpush1.xpose.msra.mxu0 0.0
    %2557 = vmatprep.subr.mxu0 0.0
    %2558 = vmatpush1.xpose.msra.mxu0 0.0
    %2559 = vmatprep.subr.mxu0 0.0
    %2560 = vmatpush1.xpose.msra.mxu0 0.0
    %2561 = vmatprep.subr.mxu0 0.0
    %2562 = vmatpush1.xpose.msra.mxu0 0.0
    %2563 = vmatprep.subr.mxu0 0.0
    %2564 = vmatpush1.xpose.msra.mxu0 0.0
    %2565 = vmatprep.subr.mxu0 0.0
    %2566 = vmatpush1.xpose.msra.mxu0 0.0
    %2567 = vmatprep.subr.mxu0 0.0
    %2568 = vmatpush1.xpose.msra.mxu0 0.0
    %2569 = vmatprep.subr.mxu0 0.0
    %2570 = vmatpush1.xpose.msra.mxu0 0.0
    %2571 = vmatprep.subr.mxu0 0.0
    %2572 = vmatpush1.xpose.msra.mxu0 0.0
    %2573 = vmatprep.subr.mxu0 0.0
    %2574 = vmatpush1.xpose.msra.mxu0 0.0
    %2575 = vmatprep.subr.mxu0 0.0
    %2576 = vmatpush1.xpose.msra.mxu0 0.0
    %2577 = vmatprep.subr.mxu0 0.0
    %2578 = vmatpush1.xpose.msra.mxu0 0.0
    %2579 = vmatprep.subr.mxu0 0.0
    %2580 = vmatpush1.xpose.msra.mxu0 0.0
    %2581 = vmatprep.subr.mxu0 0.0
    %2582 = vmatpush1.xpose.msra.mxu0 0.0
    %2583 = vmatprep.subr.mxu0 0.0
    %2584 = vmatpush1.xpose.msra.mxu0 0.0
    %2585 = vmatprep.subr.mxu0 0.0
    %2586 = vmatpush1.xpose.msra.mxu0 0.0
    %2587 = vmatprep.mubr.f32.mxu0 0.0
    %2588 = vmatmul.mubr.f32.gmra.mrb[0].mxu0 %v2518
    %v2589 = vpop.f32.mrb[0].mxu0
    %v2590 = vadd.f32 0.0, %v2589
    %v2591 = vpop.f32.mrb[0].mxu0
    %2592 = vdwg.mxu0
    %v2593 = vmul.f32 %v2590, 0.35355338
    %v2594 = vsel %vm375, %v2593, -inf
    %2595 = vmax.xlane.f32.xlu0 %v2594
    %v2596 = vpop.xlane.xlu0 %2595
    %v2597 = vsub.f32 %v2593, %v2596
    %v2598 = vmul.f32 %v2597, 1.442695
    %v2599 = vpow.pop %v2598
    %v2600 = vsel %vm375, %v2599, 0.0
    %2601 = vadd.xlane.f32.xlu0 %v2600
    %v2602 = vpop.xlane.xlu0 %2601
    %v2603 = vrcp.pop %v2602
    %v2604 = vmul.f32 %v2599, %v2603
    %v2606 = vsel %vm375, %v2604, 0
    %2608 = vmatprep.subr.mxu0 0.0
    %2609 = vmatpush1.msra.mxu0 %v2514
    %2610 = vmatprep.subr.mxu0 0.0
    %2611 = vmatpush1.msra.mxu0 0.0
    %2612 = vmatprep.subr.mxu0 0.0
    %2613 = vmatpush1.msra.mxu0 0.0
    %2614 = vmatprep.subr.mxu0 0.0
    %2615 = vmatpush1.msra.mxu0 0.0
    %2616 = vmatprep.subr.mxu0 0.0
    %2617 = vmatpush1.msra.mxu0 0.0
    %2618 = vmatprep.subr.mxu0 0.0
    %2619 = vmatpush1.msra.mxu0 0.0
    %2620 = vmatprep.subr.mxu0 0.0
    %2621 = vmatpush1.msra.mxu0 0.0
    %2622 = vmatprep.subr.mxu0 0.0
    %2623 = vmatpush1.msra.mxu0 0.0
    %2624 = vmatprep.subr.mxu0 0.0
    %2625 = vmatpush1.msra.mxu0 0.0
    %2626 = vmatprep.subr.mxu0 0.0
    %2627 = vmatpush1.msra.mxu0 0.0
    %2628 = vmatprep.subr.mxu0 0.0
    %2629 = vmatpush1.msra.mxu0 0.0
    %2630 = vmatprep.subr.mxu0 0.0
    %2631 = vmatpush1.msra.mxu0 0.0
    %2632 = vmatprep.subr.mxu0 0.0
    %2633 = vmatpush1.msra.mxu0 0.0
    %2634 = vmatprep.subr.mxu0 0.0
    %2635 = vmatpush1.msra.mxu0 0.0
    %2636 = vmatprep.subr.mxu0 0.0
    %2637 = vmatpush1.msra.mxu0 0.0
    %2638 = vmatprep.subr.mxu0 0.0
    %2639 = vmatpush1.msra.mxu0 0.0
    %2640 = vmatprep.subr.mxu0 0.0
    %2641 = vmatpush1.msra.mxu0 0.0
    %2642 = vmatprep.subr.mxu0 0.0
    %2643 = vmatpush1.msra.mxu0 0.0
    %2644 = vmatprep.subr.mxu0 0.0
    %2645 = vmatpush1.msra.mxu0 0.0
    %2646 = vmatprep.subr.mxu0 0.0
    %2647 = vmatpush1.msra.mxu0 0.0
    %2648 = vmatprep.subr.mxu0 0.0
    %2649 = vmatpush1.msra.mxu0 0.0
    %2650 = vmatprep.subr.mxu0 0.0
    %2651 = vmatpush1.msra.mxu0 0.0
    %2652 = vmatprep.subr.mxu0 0.0
    %2653 = vmatpush1.msra.mxu0 0.0
    %2654 = vmatprep.subr.mxu0 0.0
    %2655 = vmatpush1.msra.mxu0 0.0
    %2656 = vmatprep.subr.mxu0 0.0
    %2657 = vmatpush1.msra.mxu0 0.0
    %2658 = vmatprep.subr.mxu0 0.0
    %2659 = vmatpush1.msra.mxu0 0.0
    %2660 = vmatprep.subr.mxu0 0.0
    %2661 = vmatpush1.msra.mxu0 0.0
    %2662 = vmatprep.subr.mxu0 0.0
    %2663 = vmatpush1.msra.mxu0 0.0
    %2664 = vmatprep.subr.mxu0 0.0
    %2665 = vmatpush1.msra.mxu0 0.0
    %2666 = vmatprep.subr.mxu0 0.0
    %2667 = vmatpush1.msra.mxu0 0.0
    %2668 = vmatprep.subr.mxu0 0.0
    %2669 = vmatpush1.msra.mxu0 0.0
    %2670 = vmatprep.subr.mxu0 0.0
    %2671 = vmatpush1.msra.mxu0 0.0
    %2672 = vmatprep.mubr.f32.mxu0 0.0
    %2673 = vmatmul.mubr.f32.gmra.mrb[0].mxu0 %v2606
    %v2674 = vpop.f32.mrb[0].mxu0
    %v2675 = vadd.f32 0.0, %v2674
    %v2676 = vpop.f32.mrb[0].mxu0
    %2677 = vdwg.mxu0
    %s2678 = scalar_lea.vmem %s5, 32
    %v2679 = vld [vmem:[%s2678] sm:$0xff]
    %s2680 = scalar_lea.vmem %s3, 416
    %v2681 = vld [vmem:[%s2680] sm:$0xff]
    %v2682 = vld [vmem:[%s2680 + $0x8] sm:$0xff]
    %v2683 = vld [vmem:[%s2680 + $0x10] sm:$0xff]
    %v2684 = vld [vmem:[%s2680 + $0x18] sm:$0xff]
    %v2685 = vld [vmem:[%s4 + $0xd] sm:$0x1]
    %v2686 = vlaneseq
    %v2687 = vshrl.u32 %v2686, 7
    %v2688 = vsub.s32 0, %v2687
    %v2689 = vrot.slane %v2685, %v2688
    %2690 = vmatprep.subr.mxu0 0.0
    %2691 = vmatpush1.msra.mxu0 %v2681
    %2692 = vmatprep.subr.mxu0 0.0
    %2693 = vmatpush1.msra.mxu0 %v2682
    %2694 = vmatprep.subr.mxu0 0.0
    %2695 = vmatpush1.msra.mxu0 %v2683
    %2696 = vmatprep.subr.mxu0 0.0
    %2697 = vmatpush1.msra.mxu0 %v2684
    %2698 = vmatprep.subr.mxu0 0.0
    %2699 = vmatpush1.msra.mxu0 0.0
    %2700 = vmatprep.subr.mxu0 0.0
    %2701 = vmatpush1.msra.mxu0 0.0
    %2702 = vmatprep.subr.mxu0 0.0
    %2703 = vmatpush1.msra.mxu0 0.0
    %2704 = vmatprep.subr.mxu0 0.0
    %2705 = vmatpush1.msra.mxu0 0.0
    %2706 = vmatprep.subr.mxu0 0.0
    %2707 = vmatpush1.msra.mxu0 0.0
    %2708 = vmatprep.subr.mxu0 0.0
    %2709 = vmatpush1.msra.mxu0 0.0
    %2710 = vmatprep.subr.mxu0 0.0
    %2711 = vmatpush1.msra.mxu0 0.0
    %2712 = vmatprep.subr.mxu0 0.0
    %2713 = vmatpush1.msra.mxu0 0.0
    %2714 = vmatprep.subr.mxu0 0.0
    %2715 = vmatpush1.msra.mxu0 0.0
    %2716 = vmatprep.subr.mxu0 0.0
    %2717 = vmatpush1.msra.mxu0 0.0
    %2718 = vmatprep.subr.mxu0 0.0
    %2719 = vmatpush1.msra.mxu0 0.0
    %2720 = vmatprep.subr.mxu0 0.0
    %2721 = vmatpush1.msra.mxu0 0.0
    %2722 = vmatprep.subr.mxu0 0.0
    %2723 = vmatpush1.msra.mxu0 0.0
    %2724 = vmatprep.subr.mxu0 0.0
    %2725 = vmatpush1.msra.mxu0 0.0
    %2726 = vmatprep.subr.mxu0 0.0
    %2727 = vmatpush1.msra.mxu0 0.0
    %2728 = vmatprep.subr.mxu0 0.0
    %2729 = vmatpush1.msra.mxu0 0.0
    %2730 = vmatprep.subr.mxu0 0.0
    %2731 = vmatpush1.msra.mxu0 0.0
    %2732 = vmatprep.subr.mxu0 0.0
    %2733 = vmatpush1.msra.mxu0 0.0
    %2734 = vmatprep.subr.mxu0 0.0
    %2735 = vmatpush1.msra.mxu0 0.0
    %2736 = vmatprep.subr.mxu0 0.0
    %2737 = vmatpush1.msra.mxu0 0.0
    %2738 = vmatprep.subr.mxu0 0.0
    %2739 = vmatpush1.msra.mxu0 0.0
    %2740 = vmatprep.subr.mxu0 0.0
    %2741 = vmatpush1.msra.mxu0 0.0
    %2742 = vmatprep.subr.mxu0 0.0
    %2743 = vmatpush1.msra.mxu0 0.0
    %2744 = vmatprep.subr.mxu0 0.0
    %2745 = vmatpush1.msra.mxu0 0.0
    %2746 = vmatprep.subr.mxu0 0.0
    %2747 = vmatpush1.msra.mxu0 0.0
    %2748 = vmatprep.subr.mxu0 0.0
    %2749 = vmatpush1.msra.mxu0 0.0
    %2750 = vmatprep.subr.mxu0 0.0
    %2751 = vmatpush1.msra.mxu0 0.0
    %2752 = vmatprep.subr.mxu0 0.0
    %2753 = vmatpush1.msra.mxu0 0.0
    %2754 = vmatprep.mubr.f32.mxu0 0.0
    %2755 = vmatmul.mubr.f32.gmra.mrb[0].mxu0 %v2285
    %v2756 = vpop.f32.mrb[0].mxu0
    %v2757 = vadd.f32 %v2689, %v2756
    %v2758 = vpop.f32.mrb[0].mxu0
    %2759 = vdwg.mxu0
    %s2760 = scalar_lea.vmem %s3, 544
    %v2761 = vld [vmem:[%s2760] sm:$0xff]
    %v2762 = vld [vmem:[%s2760 + $0x8] sm:$0xff]
    %v2763 = vld [vmem:[%s2760 + $0x10] sm:$0xff]
    %v2764 = vld [vmem:[%s2760 + $0x18] sm:$0xff]
    %v2765 = vld [vmem:[%s4 + $0x11] sm:$0x1]
    %v2766 = vlaneseq
    %v2767 = vshrl.u32 %v2766, 7
    %v2768 = vsub.s32 0, %v2767
    %v2769 = vrot.slane %v2765, %v2768
    %2770 = vmatprep.subr.mxu0 0.0
    %2771 = vmatpush1.msra.mxu0 %v2761
    %2772 = vmatprep.subr.mxu0 0.0
    %2773 = vmatpush1.msra.mxu0 %v2762
    %2774 = vmatprep.subr.mxu0 0.0
    %2775 = vmatpush1.msra.mxu0 %v2763
    %2776 = vmatprep.subr.mxu0 0.0
    %2777 = vmatpush1.msra.mxu0 %v2764
    %2778 = vmatprep.subr.mxu0 0.0
    %2779 = vmatpush1.msra.mxu0 0.0
    %2780 = vmatprep.subr.mxu0 0.0
    %2781 = vmatpush1.msra.mxu0 0.0
    %2782 = vmatprep.subr.mxu0 0.0
    %2783 = vmatpush1.msra.mxu0 0.0
    %2784 = vmatprep.subr.mxu0 0.0
    %2785 = vmatpush1.msra.mxu0 0.0
    %2786 = vmatprep.subr.mxu0 0.0
    %2787 = vmatpush1.msra.mxu0 0.0
    %2788 = vmatprep.subr.mxu0 0.0
    %2789 = vmatpush1.msra.mxu0 0.0
    %2790 = vmatprep.subr.mxu0 0.0
    %2791 = vmatpush1.msra.mxu0 0.0
    %2792 = vmatprep.subr.mxu0 0.0
    %2793 = vmatpush1.msra.mxu0 0.0
    %2794 = vmatprep.subr.mxu0 0.0
    %2795 = vmatpush1.msra.mxu0 0.0
    %2796 = vmatprep.subr.mxu0 0.0
    %2797 = vmatpush1.msra.mxu0 0.0
    %2798 = vmatprep.subr.mxu0 0.0
    %2799 = vmatpush1.msra.mxu0 0.0
    %2800 = vmatprep.subr.mxu0 0.0
    %2801 = vmatpush1.msra.mxu0 0.0
    %2802 = vmatprep.subr.mxu0 0.0
    %2803 = vmatpush1.msra.mxu0 0.0
    %2804 = vmatprep.subr.mxu0 0.0
    %2805 = vmatpush1.msra.mxu0 0.0
    %2806 = vmatprep.subr.mxu0 0.0
    %2807 = vmatpush1.msra.mxu0 0.0
    %2808 = vmatprep.subr.mxu0 0.0
    %2809 = vmatpush1.msra.mxu0 0.0
    %2810 = vmatprep.subr.mxu0 0.0
    %2811 = vmatpush1.msra.mxu0 0.0
    %2812 = vmatprep.subr.mxu0 0.0
    %2813 = vmatpush1.msra.mxu0 0.0
    %2814 = vmatprep.subr.mxu0 0.0
    %2815 = vmatpush1.msra.mxu0 0.0
    %2816 = vmatprep.subr.mxu0 0.0
    %2817 = vmatpush1.msra.mxu0 0.0
    %2818 = vmatprep.subr.mxu0 0.0
    %2819 = vmatpush1.msra.mxu0 0.0
    %2820 = vmatprep.subr.mxu0 0.0
    %2821 = vmatpush1.msra.mxu0 0.0
    %2822 = vmatprep.subr.mxu0 0.0
    %2823 = vmatpush1.msra.mxu0 0.0
    %2824 = vmatprep.subr.mxu0 0.0
    %2825 = vmatpush1.msra.mxu0 0.0
    %2826 = vmatprep.subr.mxu0 0.0
    %2827 = vmatpush1.msra.mxu0 0.0
    %2828 = vmatprep.subr.mxu0 0.0
    %2829 = vmatpush1.msra.mxu0 0.0
    %2830 = vmatprep.subr.mxu0 0.0
    %2831 = vmatpush1.msra.mxu0 0.0
    %2832 = vmatprep.subr.mxu0 0.0
    %2833 = vmatpush1.msra.mxu0 0.0
    %2834 = vmatprep.mubr.f32.mxu0 0.0
    %2835 = vmatmul.mubr.f32.gmra.mrb[0].mxu0 %v2285
    %v2836 = vpop.f32.mrb[0].mxu0
    %v2837 = vadd.f32 %v2769, %v2836
    %v2838 = vpop.f32.mrb[0].mxu0
    %2839 = vdwg.mxu0
    %s2840 = scalar_lea.vmem %s3, 672
    %v2841 = vld [vmem:[%s2840] sm:$0xff]
    %v2842 = vld [vmem:[%s2840 + $0x8] sm:$0xff]
    %v2843 = vld [vmem:[%s2840 + $0x10] sm:$0xff]
    %v2844 = vld [vmem:[%s2840 + $0x18] sm:$0xff]
    %v2845 = vld [vmem:[%s4 + $0x15] sm:$0x1]
    %v2846 = vlaneseq
    %v2847 = vshrl.u32 %v2846, 7
    %v2848 = vsub.s32 0, %v2847
    %v2849 = vrot.slane %v2845, %v2848
    %2850 = vmatprep.subr.mxu0 0.0
    %2851 = vmatpush1.msra.mxu0 %v2841
    %2852 = vmatprep.subr.mxu0 0.0
    %2853 = vmatpush1.msra.mxu0 %v2842
    %2854 = vmatprep.subr.mxu0 0.0
    %2855 = vmatpush1.msra.mxu0 %v2843
    %2856 = vmatprep.subr.mxu0 0.0
    %2857 = vmatpush1.msra.mxu0 %v2844
    %2858 = vmatprep.subr.mxu0 0.0
    %2859 = vmatpush1.msra.mxu0 0.0
    %2860 = vmatprep.subr.mxu0 0.0
    %2861 = vmatpush1.msra.mxu0 0.0
    %2862 = vmatprep.subr.mxu0 0.0
    %2863 = vmatpush1.msra.mxu0 0.0
    %2864 = vmatprep.subr.mxu0 0.0
    %2865 = vmatpush1.msra.mxu0 0.0
    %2866 = vmatprep.subr.mxu0 0.0
    %2867 = vmatpush1.msra.mxu0 0.0
    %2868 = vmatprep.subr.mxu0 0.0
    %2869 = vmatpush1.msra.mxu0 0.0
    %2870 = vmatprep.subr.mxu0 0.0
    %2871 = vmatpush1.msra.mxu0 0.0
    %2872 = vmatprep.subr.mxu0 0.0
    %2873 = vmatpush1.msra.mxu0 0.0
    %2874 = vmatprep.subr.mxu0 0.0
    %2875 = vmatpush1.msra.mxu0 0.0
    %2876 = vmatprep.subr.mxu0 0.0
    %2877 = vmatpush1.msra.mxu0 0.0
    %2878 = vmatprep.subr.mxu0 0.0
    %2879 = vmatpush1.msra.mxu0 0.0
    %2880 = vmatprep.subr.mxu0 0.0
    %2881 = vmatpush1.msra.mxu0 0.0
    %2882 = vmatprep.subr.mxu0 0.0
    %2883 = vmatpush1.msra.mxu0 0.0
    %2884 = vmatprep.subr.mxu0 0.0
    %2885 = vmatpush1.msra.mxu0 0.0
    %2886 = vmatprep.subr.mxu0 0.0
    %2887 = vmatpush1.msra.mxu0 0.0
    %2888 = vmatprep.subr.mxu0 0.0
    %2889 = vmatpush1.msra.mxu0 0.0
    %2890 = vmatprep.subr.mxu0 0.0
    %2891 = vmatpush1.msra.mxu0 0.0
    %2892 = vmatprep.subr.mxu0 0.0
    %2893 = vmatpush1.msra.mxu0 0.0
    %2894 = vmatprep.subr.mxu0 0.0
    %2895 = vmatpush1.msra.mxu0 0.0
    %2896 = vmatprep.subr.mxu0 0.0
    %2897 = vmatpush1.msra.mxu0 0.0
    %2898 = vmatprep.subr.mxu0 0.0
    %2899 = vmatpush1.msra.mxu0 0.0
    %2900 = vmatprep.subr.mxu0 0.0
    %2901 = vmatpush1.msra.mxu0 0.0
    %2902 = vmatprep.subr.mxu0 0.0
    %2903 = vmatpush1.msra.mxu0 0.0
    %2904 = vmatprep.subr.mxu0 0.0
    %2905 = vmatpush1.msra.mxu0 0.0
    %2906 = vmatprep.subr.mxu0 0.0
    %2907 = vmatpush1.msra.mxu0 0.0
    %2908 = vmatprep.subr.mxu0 0.0
    %2909 = vmatpush1.msra.mxu0 0.0
    %2910 = vmatprep.subr.mxu0 0.0
    %2911 = vmatpush1.msra.mxu0 0.0
    %2912 = vmatprep.subr.mxu0 0.0
    %2913 = vmatpush1.msra.mxu0 0.0
    %2914 = vmatprep.mubr.f32.mxu0 0.0
    %2915 = vmatmul.mubr.f32.gmra.mrb[0].mxu0 %v2285
    %v2916 = vpop.f32.mrb[0].mxu0
    %v2917 = vadd.f32 %v2849, %v2916
    %v2918 = vpop.f32.mrb[0].mxu0
    %2919 = vdwg.mxu0
    %v2921 = vsel %vm375, %v2757, 0
    %v2924 = vsel %vm375, %v2837, 0
    %2926 = vmatprep.subr.mxu0 0.0
    %2927 = vmatpush1.xpose.msra.mxu0 %v2924
    %2928 = vmatprep.subr.mxu0 0.0
    %2929 = vmatpush1.xpose.msra.mxu0 0.0
    %2930 = vmatprep.subr.mxu0 0.0
    %2931 = vmatpush1.xpose.msra.mxu0 0.0
    %2932 = vmatprep.subr.mxu0 0.0
    %2933 = vmatpush1.xpose.msra.mxu0 0.0
    %2934 = vmatprep.subr.mxu0 0.0
    %2935 = vmatpush1.xpose.msra.mxu0 0.0
    %2936 = vmatprep.subr.mxu0 0.0
    %2937 = vmatpush1.xpose.msra.mxu0 0.0
    %2938 = vmatprep.subr.mxu0 0.0
    %2939 = vmatpush1.xpose.msra.mxu0 0.0
    %2940 = vmatprep.subr.mxu0 0.0
    %2941 = vmatpush1.xpose.msra.mxu0 0.0
    %2942 = vmatprep.subr.mxu0 0.0
    %2943 = vmatpush1.xpose.msra.mxu0 0.0
    %2944 = vmatprep.subr.mxu0 0.0
    %2945 = vmatpush1.xpose.msra.mxu0 0.0
    %2946 = vmatprep.subr.mxu0 0.0
    %2947 = vmatpush1.xpose.msra.mxu0 0.0
    %2948 = vmatprep.subr.mxu0 0.0
    %2949 = vmatpush1.xpose.msra.mxu0 0.0
    %2950 = vmatprep.subr.mxu0 0.0
    %2951 = vmatpush1.xpose.msra.mxu0 0.0
    %2952 = vmatprep.subr.mxu0 0.0
    %2953 = vmatpush1.xpose.msra.mxu0 0.0
    %2954 = vmatprep.subr.mxu0 0.0
    %2955 = vmatpush1.xpose.msra.mxu0 0.0
    %2956 = vmatprep.subr.mxu0 0.0
    %2957 = vmatpush1.xpose.msra.mxu0 0.0
    %2958 = vmatprep.subr.mxu0 0.0
    %2959 = vmatpush1.xpose.msra.mxu0 0.0
    %2960 = vmatprep.subr.mxu0 0.0
    %2961 = vmatpush1.xpose.msra.mxu0 0.0
    %2962 = vmatprep.subr.mxu0 0.0
    %2963 = vmatpush1.xpose.msra.mxu0 0.0
    %2964 = vmatprep.subr.mxu0 0.0
    %2965 = vmatpush1.xpose.msra.mxu0 0.0
    %2966 = vmatprep.subr.mxu0 0.0
    %2967 = vmatpush1.xpose.msra.mxu0 0.0
    %2968 = vmatprep.subr.mxu0 0.0
    %2969 = vmatpush1.xpose.msra.mxu0 0.0
    %2970 = vmatprep.subr.mxu0 0.0
    %2971 = vmatpush1.xpose.msra.mxu0 0.0
    %2972 = vmatprep.subr.mxu0 0.0
    %2973 = vmatpush1.xpose.msra.mxu0 0.0
    %2974 = vmatprep.subr.mxu0 0.0
    %2975 = vmatpush1.xpose.msra.mxu0 0.0
    %2976 = vmatprep.subr.mxu0 0.0
    %2977 = vmatpush1.xpose.msra.mxu0 0.0
    %2978 = vmatprep.subr.mxu0 0.0
    %2979 = vmatpush1.xpose.msra.mxu0 0.0
    %2980 = vmatprep.subr.mxu0 0.0
    %2981 = vmatpush1.xpose.msra.mxu0 0.0
    %2982 = vmatprep.subr.mxu0 0.0
    %2983 = vmatpush1.xpose.msra.mxu0 0.0
    %2984 = vmatprep.subr.mxu0 0.0
    %2985 = vmatpush1.xpose.msra.mxu0 0.0
    %2986 = vmatprep.subr.mxu0 0.0
    %2987 = vmatpush1.xpose.msra.mxu0 0.0
    %2988 = vmatprep.subr.mxu0 0.0
    %2989 = vmatpush1.xpose.msra.mxu0 0.0
    %2990 = vmatprep.mubr.f32.mxu0 0.0
    %2991 = vmatmul.mubr.f32.gmra.mrb[0].mxu0 %v2921
    %v2992 = vpop.f32.mrb[0].mxu0
    %v2993 = vadd.f32 0.0, %v2992
    %v2994 = vpop.f32.mrb[0].mxu0
    %2995 = vdwg.mxu0
    %v2996 = vmul.f32 %v2993, 0.35355338
    %v2997 = vsel %vm375, %v2996, -inf
    %2998 = vmax.xlane.f32.xlu0 %v2997
    %v2999 = vpop.xlane.xlu0 %2998
    %v3000 = vsub.f32 %v2996, %v2999
    %v3001 = vmul.f32 %v3000, 1.442695
    %v3002 = vpow.pop %v3001
    %v3003 = vsel %vm375, %v3002, 0.0
    %3004 = vadd.xlane.f32.xlu0 %v3003
    %v3005 = vpop.xlane.xlu0 %3004
    %v3006 = vrcp.pop %v3005
    %v3007 = vmul.f32 %v3002, %v3006
    %v3009 = vsel %vm375, %v3007, 0
    %3011 = vmatprep.subr.mxu0 0.0
    %3012 = vmatpush1.msra.mxu0 %v2917
    %3013 = vmatprep.subr.mxu0 0.0
    %3014 = vmatpush1.msra.mxu0 0.0
    %3015 = vmatprep.subr.mxu0 0.0
    %3016 = vmatpush1.msra.mxu0 0.0
    %3017 = vmatprep.subr.mxu0 0.0
    %3018 = vmatpush1.msra.mxu0 0.0
    %3019 = vmatprep.subr.mxu0 0.0
    %3020 = vmatpush1.msra.mxu0 0.0
    %3021 = vmatprep.subr.mxu0 0.0
    %3022 = vmatpush1.msra.mxu0 0.0
    %3023 = vmatprep.subr.mxu0 0.0
    %3024 = vmatpush1.msra.mxu0 0.0
    %3025 = vmatprep.subr.mxu0 0.0
    %3026 = vmatpush1.msra.mxu0 0.0
    %3027 = vmatprep.subr.mxu0 0.0
    %3028 = vmatpush1.msra.mxu0 0.0
    %3029 = vmatprep.subr.mxu0 0.0
    %3030 = vmatpush1.msra.mxu0 0.0
    %3031 = vmatprep.subr.mxu0 0.0
    %3032 = vmatpush1.msra.mxu0 0.0
    %3033 = vmatprep.subr.mxu0 0.0
    %3034 = vmatpush1.msra.mxu0 0.0
    %3035 = vmatprep.subr.mxu0 0.0
    %3036 = vmatpush1.msra.mxu0 0.0
    %3037 = vmatprep.subr.mxu0 0.0
    %3038 = vmatpush1.msra.mxu0 0.0
    %3039 = vmatprep.subr.mxu0 0.0
    %3040 = vmatpush1.msra.mxu0 0.0
    %3041 = vmatprep.subr.mxu0 0.0
    %3042 = vmatpush1.msra.mxu0 0.0
    %3043 = vmatprep.subr.mxu0 0.0
    %3044 = vmatpush1.msra.mxu0 0.0
    %3045 = vmatprep.subr.mxu0 0.0
    %3046 = vmatpush1.msra.mxu0 0.0
    %3047 = vmatprep.subr.mxu0 0.0
    %3048 = vmatpush1.msra.mxu0 0.0
    %3049 = vmatprep.subr.mxu0 0.0
    %3050 = vmatpush1.msra.mxu0 0.0
    %3051 = vmatprep.subr.mxu0 0.0
    %3052 = vmatpush1.msra.mxu0 0.0
    %3053 = vmatprep.subr.mxu0 0.0
    %3054 = vmatpush1.msra.mxu0 0.0
    %3055 = vmatprep.subr.mxu0 0.0
    %3056 = vmatpush1.msra.mxu0 0.0
    %3057 = vmatprep.subr.mxu0 0.0
    %3058 = vmatpush1.msra.mxu0 0.0
    %3059 = vmatprep.subr.mxu0 0.0
    %3060 = vmatpush1.msra.mxu0 0.0
    %3061 = vmatprep.subr.mxu0 0.0
    %3062 = vmatpush1.msra.mxu0 0.0
    %3063 = vmatprep.subr.mxu0 0.0
    %3064 = vmatpush1.msra.mxu0 0.0
    %3065 = vmatprep.subr.mxu0 0.0
    %3066 = vmatpush1.msra.mxu0 0.0
    %3067 = vmatprep.subr.mxu0 0.0
    %3068 = vmatpush1.msra.mxu0 0.0
    %3069 = vmatprep.subr.mxu0 0.0
    %3070 = vmatpush1.msra.mxu0 0.0
    %3071 = vmatprep.subr.mxu0 0.0
    %3072 = vmatpush1.msra.mxu0 0.0
    %3073 = vmatprep.subr.mxu0 0.0
    %3074 = vmatpush1.msra.mxu0 0.0
    %3075 = vmatprep.mubr.f32.mxu0 0.0
    %3076 = vmatmul.mubr.f32.gmra.mrb[0].mxu0 %v3009
    %v3077 = vpop.f32.mrb[0].mxu0
    %v3078 = vadd.f32 0.0, %v3077
    %v3079 = vpop.f32.mrb[0].mxu0
    %3080 = vdwg.mxu0
    %s3081 = scalar_lea.vmem %s5, 40
    %v3082 = vld [vmem:[%s3081] sm:$0xff]
    %v3084 = vsel %vm375, %v3078, 0
    %3086 = vmatprep.subr.mxu0 0.0
    %3087 = vmatpush1.msra.mxu0 %v3082
    %3088 = vmatprep.subr.mxu0 0.0
    %3089 = vmatpush1.msra.mxu0 0.0
    %3090 = vmatprep.subr.mxu0 0.0
    %3091 = vmatpush1.msra.mxu0 0.0
    %3092 = vmatprep.subr.mxu0 0.0
    %3093 = vmatpush1.msra.mxu0 0.0
    %3094 = vmatprep.subr.mxu0 0.0
    %3095 = vmatpush1.msra.mxu0 0.0
    %3096 = vmatprep.subr.mxu0 0.0
    %3097 = vmatpush1.msra.mxu0 0.0
    %3098 = vmatprep.subr.mxu0 0.0
    %3099 = vmatpush1.msra.mxu0 0.0
    %3100 = vmatprep.subr.mxu0 0.0
    %3101 = vmatpush1.msra.mxu0 0.0
    %3102 = vmatprep.subr.mxu0 0.0
    %3103 = vmatpush1.msra.mxu0 0.0
    %3104 = vmatprep.subr.mxu0 0.0
    %3105 = vmatpush1.msra.mxu0 0.0
    %3106 = vmatprep.subr.mxu0 0.0
    %3107 = vmatpush1.msra.mxu0 0.0
    %3108 = vmatprep.subr.mxu0 0.0
    %3109 = vmatpush1.msra.mxu0 0.0
    %3110 = vmatprep.subr.mxu0 0.0
    %3111 = vmatpush1.msra.mxu0 0.0
    %3112 = vmatprep.subr.mxu0 0.0
    %3113 = vmatpush1.msra.mxu0 0.0
    %3114 = vmatprep.subr.mxu0 0.0
    %3115 = vmatpush1.msra.mxu0 0.0
    %3116 = vmatprep.subr.mxu0 0.0
    %3117 = vmatpush1.msra.mxu0 0.0
    %3118 = vmatprep.subr.mxu0 0.0
    %3119 = vmatpush1.msra.mxu0 0.0
    %3120 = vmatprep.subr.mxu0 0.0
    %3121 = vmatpush1.msra.mxu0 0.0
    %3122 = vmatprep.subr.mxu0 0.0
    %3123 = vmatpush1.msra.mxu0 0.0
    %3124 = vmatprep.subr.mxu0 0.0
    %3125 = vmatpush1.msra.mxu0 0.0
    %3126 = vmatprep.subr.mxu0 0.0
    %3127 = vmatpush1.msra.mxu0 0.0
    %3128 = vmatprep.subr.mxu0 0.0
    %3129 = vmatpush1.msra.mxu0 0.0
    %3130 = vmatprep.subr.mxu0 0.0
    %3131 = vmatpush1.msra.mxu0 0.0
    %3132 = vmatprep.subr.mxu0 0.0
    %3133 = vmatpush1.msra.mxu0 0.0
    %3134 = vmatprep.subr.mxu0 0.0
    %3135 = vmatpush1.msra.mxu0 0.0
    %3136 = vmatprep.subr.mxu0 0.0
    %3137 = vmatpush1.msra.mxu0 0.0
    %3138 = vmatprep.subr.mxu0 0.0
    %3139 = vmatpush1.msra.mxu0 0.0
    %3140 = vmatprep.subr.mxu0 0.0
    %3141 = vmatpush1.msra.mxu0 0.0
    %3142 = vmatprep.subr.mxu0 0.0
    %3143 = vmatpush1.msra.mxu0 0.0
    %3144 = vmatprep.subr.mxu0 0.0
    %3145 = vmatpush1.msra.mxu0 0.0
    %3146 = vmatprep.subr.mxu0 0.0
    %3147 = vmatpush1.msra.mxu0 0.0
    %3148 = vmatprep.subr.mxu0 0.0
    %3149 = vmatpush1.msra.mxu0 0.0
    %3150 = vmatprep.mubr.f32.mxu0 0.0
    %3151 = vmatmul.mubr.f32.gmra.mrb[0].mxu0 %v3084
    %v3152 = vpop.f32.mrb[0].mxu0
    %v3153 = vadd.f32 0.0, %v3152
    %v3154 = vpop.f32.mrb[0].mxu0
    %3155 = vdwg.mxu0
    %v3157 = vsel %vm375, %v2675, 0
    %3159 = vmatprep.subr.mxu0 0.0
    %3160 = vmatpush1.msra.mxu0 %v2679
    %3161 = vmatprep.subr.mxu0 0.0
    %3162 = vmatpush1.msra.mxu0 0.0
    %3163 = vmatprep.subr.mxu0 0.0
    %3164 = vmatpush1.msra.mxu0 0.0
    %3165 = vmatprep.subr.mxu0 0.0
    %3166 = vmatpush1.msra.mxu0 0.0
    %3167 = vmatprep.subr.mxu0 0.0
    %3168 = vmatpush1.msra.mxu0 0.0
    %3169 = vmatprep.subr.mxu0 0.0
    %3170 = vmatpush1.msra.mxu0 0.0
    %3171 = vmatprep.subr.mxu0 0.0
    %3172 = vmatpush1.msra.mxu0 0.0
    %3173 = vmatprep.subr.mxu0 0.0
    %3174 = vmatpush1.msra.mxu0 0.0
    %3175 = vmatprep.subr.mxu0 0.0
    %3176 = vmatpush1.msra.mxu0 0.0
    %3177 = vmatprep.subr.mxu0 0.0
    %3178 = vmatpush1.msra.mxu0 0.0
    %3179 = vmatprep.subr.mxu0 0.0
    %3180 = vmatpush1.msra.mxu0 0.0
    %3181 = vmatprep.subr.mxu0 0.0
    %3182 = vmatpush1.msra.mxu0 0.0
    %3183 = vmatprep.subr.mxu0 0.0
    %3184 = vmatpush1.msra.mxu0 0.0
    %3185 = vmatprep.subr.mxu0 0.0
    %3186 = vmatpush1.msra.mxu0 0.0
    %3187 = vmatprep.subr.mxu0 0.0
    %3188 = vmatpush1.msra.mxu0 0.0
    %3189 = vmatprep.subr.mxu0 0.0
    %3190 = vmatpush1.msra.mxu0 0.0
    %3191 = vmatprep.subr.mxu0 0.0
    %3192 = vmatpush1.msra.mxu0 0.0
    %3193 = vmatprep.subr.mxu0 0.0
    %3194 = vmatpush1.msra.mxu0 0.0
    %3195 = vmatprep.subr.mxu0 0.0
    %3196 = vmatpush1.msra.mxu0 0.0
    %3197 = vmatprep.subr.mxu0 0.0
    %3198 = vmatpush1.msra.mxu0 0.0
    %3199 = vmatprep.subr.mxu0 0.0
    %3200 = vmatpush1.msra.mxu0 0.0
    %3201 = vmatprep.subr.mxu0 0.0
    %3202 = vmatpush1.msra.mxu0 0.0
    %3203 = vmatprep.subr.mxu0 0.0
    %3204 = vmatpush1.msra.mxu0 0.0
    %3205 = vmatprep.subr.mxu0 0.0
    %3206 = vmatpush1.msra.mxu0 0.0
    %3207 = vmatprep.subr.mxu0 0.0
    %3208 = vmatpush1.msra.mxu0 0.0
    %3209 = vmatprep.subr.mxu0 0.0
    %3210 = vmatpush1.msra.mxu0 0.0
    %3211 = vmatprep.subr.mxu0 0.0
    %3212 = vmatpush1.msra.mxu0 0.0
    %3213 = vmatprep.subr.mxu0 0.0
    %3214 = vmatpush1.msra.mxu0 0.0
    %3215 = vmatprep.subr.mxu0 0.0
    %3216 = vmatpush1.msra.mxu0 0.0
    %3217 = vmatprep.subr.mxu0 0.0
    %3218 = vmatpush1.msra.mxu0 0.0
    %3219 = vmatprep.subr.mxu0 0.0
    %3220 = vmatpush1.msra.mxu0 0.0
    %3221 = vmatprep.subr.mxu0 0.0
    %3222 = vmatpush1.msra.mxu0 0.0
    %3223 = vmatprep.mubr.f32.mxu0 0.0
    %3224 = vmatmul.mubr.f32.gmra.mrb[0].mxu0 %v3157
    %v3225 = vpop.f32.mrb[0].mxu0
    %v3226 = vadd.f32 %v3153, %v3225
    %v3227 = vpop.f32.mrb[0].mxu0
    %3228 = vdwg.mxu0
    %s3229 = scalar_lea.vmem %s3, 448
    %v3230 = vld [vmem:[%s3229] sm:$0xff]
    %v3231 = vld [vmem:[%s3229 + $0x8] sm:$0xff]
    %v3232 = vld [vmem:[%s3229 + $0x10] sm:$0xff]
    %v3233 = vld [vmem:[%s3229 + $0x18] sm:$0xff]
    %v3234 = vld [vmem:[%s4 + $0xe] sm:$0x1]
    %v3235 = vlaneseq
    %v3236 = vshrl.u32 %v3235, 7
    %v3237 = vsub.s32 0, %v3236
    %v3238 = vrot.slane %v3234, %v3237
    %3239 = vmatprep.subr.mxu0 0.0
    %3240 = vmatpush1.msra.mxu0 %v3230
    %3241 = vmatprep.subr.mxu0 0.0
    %3242 = vmatpush1.msra.mxu0 %v3231
    %3243 = vmatprep.subr.mxu0 0.0
    %3244 = vmatpush1.msra.mxu0 %v3232
    %3245 = vmatprep.subr.mxu0 0.0
    %3246 = vmatpush1.msra.mxu0 %v3233
    %3247 = vmatprep.subr.mxu0 0.0
    %3248 = vmatpush1.msra.mxu0 0.0
    %3249 = vmatprep.subr.mxu0 0.0
    %3250 = vmatpush1.msra.mxu0 0.0
    %3251 = vmatprep.subr.mxu0 0.0
    %3252 = vmatpush1.msra.mxu0 0.0
    %3253 = vmatprep.subr.mxu0 0.0
    %3254 = vmatpush1.msra.mxu0 0.0
    %3255 = vmatprep.subr.mxu0 0.0
    %3256 = vmatpush1.msra.mxu0 0.0
    %3257 = vmatprep.subr.mxu0 0.0
    %3258 = vmatpush1.msra.mxu0 0.0
    %3259 = vmatprep.subr.mxu0 0.0
    %3260 = vmatpush1.msra.mxu0 0.0
    %3261 = vmatprep.subr.mxu0 0.0
    %3262 = vmatpush1.msra.mxu0 0.0
    %3263 = vmatprep.subr.mxu0 0.0
    %3264 = vmatpush1.msra.mxu0 0.0
    %3265 = vmatprep.subr.mxu0 0.0
    %3266 = vmatpush1.msra.mxu0 0.0
    %3267 = vmatprep.subr.mxu0 0.0
    %3268 = vmatpush1.msra.mxu0 0.0
    %3269 = vmatprep.subr.mxu0 0.0
    %3270 = vmatpush1.msra.mxu0 0.0
    %3271 = vmatprep.subr.mxu0 0.0
    %3272 = vmatpush1.msra.mxu0 0.0
    %3273 = vmatprep.subr.mxu0 0.0
    %3274 = vmatpush1.msra.mxu0 0.0
    %3275 = vmatprep.subr.mxu0 0.0
    %3276 = vmatpush1.msra.mxu0 0.0
    %3277 = vmatprep.subr.mxu0 0.0
    %3278 = vmatpush1.msra.mxu0 0.0
    %3279 = vmatprep.subr.mxu0 0.0
    %3280 = vmatpush1.msra.mxu0 0.0
    %3281 = vmatprep.subr.mxu0 0.0
    %3282 = vmatpush1.msra.mxu0 0.0
    %3283 = vmatprep.subr.mxu0 0.0
    %3284 = vmatpush1.msra.mxu0 0.0
    %3285 = vmatprep.subr.mxu0 0.0
    %3286 = vmatpush1.msra.mxu0 0.0
    %3287 = vmatprep.subr.mxu0 0.0
    %3288 = vmatpush1.msra.mxu0 0.0
    %3289 = vmatprep.subr.mxu0 0.0
    %3290 = vmatpush1.msra.mxu0 0.0
    %3291 = vmatprep.subr.mxu0 0.0
    %3292 = vmatpush1.msra.mxu0 0.0
    %3293 = vmatprep.subr.mxu0 0.0
    %3294 = vmatpush1.msra.mxu0 0.0
    %3295 = vmatprep.subr.mxu0 0.0
    %3296 = vmatpush1.msra.mxu0 0.0
    %3297 = vmatprep.subr.mxu0 0.0
    %3298 = vmatpush1.msra.mxu0 0.0
    %3299 = vmatprep.subr.mxu0 0.0
    %3300 = vmatpush1.msra.mxu0 0.0
    %3301 = vmatprep.subr.mxu0 0.0
    %3302 = vmatpush1.msra.mxu0 0.0
    %3303 = vmatprep.mubr.f32.mxu0 0.0
    %3304 = vmatmul.mubr.f32.gmra.mrb[0].mxu0 %v2285
    %v3305 = vpop.f32.mrb[0].mxu0
    %v3306 = vadd.f32 %v3238, %v3305
    %v3307 = vpop.f32.mrb[0].mxu0
    %3308 = vdwg.mxu0
    %s3309 = scalar_lea.vmem %s3, 576
    %v3310 = vld [vmem:[%s3309] sm:$0xff]
    %v3311 = vld [vmem:[%s3309 + $0x8] sm:$0xff]
    %v3312 = vld [vmem:[%s3309 + $0x10] sm:$0xff]
    %v3313 = vld [vmem:[%s3309 + $0x18] sm:$0xff]
    %v3314 = vld [vmem:[%s4 + $0x12] sm:$0x1]
    %v3315 = vlaneseq
    %v3316 = vshrl.u32 %v3315, 7
    %v3317 = vsub.s32 0, %v3316
    %v3318 = vrot.slane %v3314, %v3317
    %3319 = vmatprep.subr.mxu0 0.0
    %3320 = vmatpush1.msra.mxu0 %v3310
    %3321 = vmatprep.subr.mxu0 0.0
    %3322 = vmatpush1.msra.mxu0 %v3311
    %3323 = vmatprep.subr.mxu0 0.0
    %3324 = vmatpush1.msra.mxu0 %v3312
    %3325 = vmatprep.subr.mxu0 0.0
    %3326 = vmatpush1.msra.mxu0 %v3313
    %3327 = vmatprep.subr.mxu0 0.0
    %3328 = vmatpush1.msra.mxu0 0.0
    %3329 = vmatprep.subr.mxu0 0.0
    %3330 = vmatpush1.msra.mxu0 0.0
    %3331 = vmatprep.subr.mxu0 0.0
    %3332 = vmatpush1.msra.mxu0 0.0
    %3333 = vmatprep.subr.mxu0 0.0
    %3334 = vmatpush1.msra.mxu0 0.0
    %3335 = vmatprep.subr.mxu0 0.0
    %3336 = vmatpush1.msra.mxu0 0.0
    %3337 = vmatprep.subr.mxu0 0.0
    %3338 = vmatpush1.msra.mxu0 0.0
    %3339 = vmatprep.subr.mxu0 0.0
    %3340 = vmatpush1.msra.mxu0 0.0
    %3341 = vmatprep.subr.mxu0 0.0
    %3342 = vmatpush1.msra.mxu0 0.0
    %3343 = vmatprep.subr.mxu0 0.0
    %3344 = vmatpush1.msra.mxu0 0.0
    %3345 = vmatprep.subr.mxu0 0.0
    %3346 = vmatpush1.msra.mxu0 0.0
    %3347 = vmatprep.subr.mxu0 0.0
    %3348 = vmatpush1.msra.mxu0 0.0
    %3349 = vmatprep.subr.mxu0 0.0
    %3350 = vmatpush1.msra.mxu0 0.0
    %3351 = vmatprep.subr.mxu0 0.0
    %3352 = vmatpush1.msra.mxu0 0.0
    %3353 = vmatprep.subr.mxu0 0.0
    %3354 = vmatpush1.msra.mxu0 0.0
    %3355 = vmatprep.subr.mxu0 0.0
    %3356 = vmatpush1.msra.mxu0 0.0
    %3357 = vmatprep.subr.mxu0 0.0
    %3358 = vmatpush1.msra.mxu0 0.0
    %3359 = vmatprep.subr.mxu0 0.0
    %3360 = vmatpush1.msra.mxu0 0.0
    %3361 = vmatprep.subr.mxu0 0.0
    %3362 = vmatpush1.msra.mxu0 0.0
    %3363 = vmatprep.subr.mxu0 0.0
    %3364 = vmatpush1.msra.mxu0 0.0
    %3365 = vmatprep.subr.mxu0 0.0
    %3366 = vmatpush1.msra.mxu0 0.0
    %3367 = vmatprep.subr.mxu0 0.0
    %3368 = vmatpush1.msra.mxu0 0.0
    %3369 = vmatprep.subr.mxu0 0.0
    %3370 = vmatpush1.msra.mxu0 0.0
    %3371 = vmatprep.subr.mxu0 0.0
    %3372 = vmatpush1.msra.mxu0 0.0
    %3373 = vmatprep.subr.mxu0 0.0
    %3374 = vmatpush1.msra.mxu0 0.0
    %3375 = vmatprep.subr.mxu0 0.0
    %3376 = vmatpush1.msra.mxu0 0.0
    %3377 = vmatprep.subr.mxu0 0.0
    %3378 = vmatpush1.msra.mxu0 0.0
    %3379 = vmatprep.subr.mxu0 0.0
    %3380 = vmatpush1.msra.mxu0 0.0
    %3381 = vmatprep.subr.mxu0 0.0
    %3382 = vmatpush1.msra.mxu0 0.0
    %3383 = vmatprep.mubr.f32.mxu0 0.0
    %3384 = vmatmul.mubr.f32.gmra.mrb[0].mxu0 %v2285
    %v3385 = vpop.f32.mrb[0].mxu0
    %v3386 = vadd.f32 %v3318, %v3385
    %v3387 = vpop.f32.mrb[0].mxu0
    %3388 = vdwg.mxu0
    %s3389 = scalar_lea.vmem %s3, 704
    %v3390 = vld [vmem:[%s3389] sm:$0xff]
    %v3391 = vld [vmem:[%s3389 + $0x8] sm:$0xff]
    %v3392 = vld [vmem:[%s3389 + $0x10] sm:$0xff]
    %v3393 = vld [vmem:[%s3389 + $0x18] sm:$0xff]
    %v3394 = vld [vmem:[%s4 + $0x16] sm:$0x1]
    %v3395 = vlaneseq
    %v3396 = vshrl.u32 %v3395, 7
    %v3397 = vsub.s32 0, %v3396
    %v3398 = vrot.slane %v3394, %v3397
    %3399 = vmatprep.subr.mxu0 0.0
    %3400 = vmatpush1.msra.mxu0 %v3390
    %3401 = vmatprep.subr.mxu0 0.0
    %3402 = vmatpush1.msra.mxu0 %v3391
    %3403 = vmatprep.subr.mxu0 0.0
    %3404 = vmatpush1.msra.mxu0 %v3392
    %3405 = vmatprep.subr.mxu0 0.0
    %3406 = vmatpush1.msra.mxu0 %v3393
    %3407 = vmatprep.subr.mxu0 0.0
    %3408 = vmatpush1.msra.mxu0 0.0
    %3409 = vmatprep.subr.mxu0 0.0
    %3410 = vmatpush1.msra.mxu0 0.0
    %3411 = vmatprep.subr.mxu0 0.0
    %3412 = vmatpush1.msra.mxu0 0.0
    %3413 = vmatprep.subr.mxu0 0.0
    %3414 = vmatpush1.msra.mxu0 0.0
    %3415 = vmatprep.subr.mxu0 0.0
    %3416 = vmatpush1.msra.mxu0 0.0
    %3417 = vmatprep.subr.mxu0 0.0
    %3418 = vmatpush1.msra.mxu0 0.0
    %3419 = vmatprep.subr.mxu0 0.0
    %3420 = vmatpush1.msra.mxu0 0.0
    %3421 = vmatprep.subr.mxu0 0.0
    %3422 = vmatpush1.msra.mxu0 0.0
    %3423 = vmatprep.subr.mxu0 0.0
    %3424 = vmatpush1.msra.mxu0 0.0
    %3425 = vmatprep.subr.mxu0 0.0
    %3426 = vmatpush1.msra.mxu0 0.0
    %3427 = vmatprep.subr.mxu0 0.0
    %3428 = vmatpush1.msra.mxu0 0.0
    %3429 = vmatprep.subr.mxu0 0.0
    %3430 = vmatpush1.msra.mxu0 0.0
    %3431 = vmatprep.subr.mxu0 0.0
    %3432 = vmatpush1.msra.mxu0 0.0
    %3433 = vmatprep.subr.mxu0 0.0
    %3434 = vmatpush1.msra.mxu0 0.0
    %3435 = vmatprep.subr.mxu0 0.0
    %3436 = vmatpush1.msra.mxu0 0.0
    %3437 = vmatprep.subr.mxu0 0.0
    %3438 = vmatpush1.msra.mxu0 0.0
    %3439 = vmatprep.subr.mxu0 0.0
    %3440 = vmatpush1.msra.mxu0 0.0
    %3441 = vmatprep.subr.mxu0 0.0
    %3442 = vmatpush1.msra.mxu0 0.0
    %3443 = vmatprep.subr.mxu0 0.0
    %3444 = vmatpush1.msra.mxu0 0.0
    %3445 = vmatprep.subr.mxu0 0.0
    %3446 = vmatpush1.msra.mxu0 0.0
    %3447 = vmatprep.subr.mxu0 0.0
    %3448 = vmatpush1.msra.mxu0 0.0
    %3449 = vmatprep.subr.mxu0 0.0
    %3450 = vmatpush1.msra.mxu0 0.0
    %3451 = vmatprep.subr.mxu0 0.0
    %3452 = vmatpush1.msra.mxu0 0.0
    %3453 = vmatprep.subr.mxu0 0.0
    %3454 = vmatpush1.msra.mxu0 0.0
    %3455 = vmatprep.subr.mxu0 0.0
    %3456 = vmatpush1.msra.mxu0 0.0
    %3457 = vmatprep.subr.mxu0 0.0
    %3458 = vmatpush1.msra.mxu0 0.0
    %3459 = vmatprep.subr.mxu0 0.0
    %3460 = vmatpush1.msra.mxu0 0.0
    %3461 = vmatprep.subr.mxu0 0.0
    %3462 = vmatpush1.msra.mxu0 0.0
    %3463 = vmatprep.mubr.f32.mxu0 0.0
    %3464 = vmatmul.mubr.f32.gmra.mrb[0].mxu0 %v2285
    %v3465 = vpop.f32.mrb[0].mxu0
    %v3466 = vadd.f32 %v3398, %v3465
    %v3467 = vpop.f32.mrb[0].mxu0
    %3468 = vdwg.mxu0
    %v3470 = vsel %vm375, %v3306, 0
    %v3473 = vsel %vm375, %v3386, 0
    %3475 = vmatprep.subr.mxu0 0.0
    %3476 = vmatpush1.xpose.msra.mxu0 %v3473
    %3477 = vmatprep.subr.mxu0 0.0
    %3478 = vmatpush1.xpose.msra.mxu0 0.0
    %3479 = vmatprep.subr.mxu0 0.0
    %3480 = vmatpush1.xpose.msra.mxu0 0.0
    %3481 = vmatprep.subr.mxu0 0.0
    %3482 = vmatpush1.xpose.msra.mxu0 0.0
    %3483 = vmatprep.subr.mxu0 0.0
    %3484 = vmatpush1.xpose.msra.mxu0 0.0
    %3485 = vmatprep.subr.mxu0 0.0
    %3486 = vmatpush1.xpose.msra.mxu0 0.0
    %3487 = vmatprep.subr.mxu0 0.0
    %3488 = vmatpush1.xpose.msra.mxu0 0.0
    %3489 = vmatprep.subr.mxu0 0.0
    %3490 = vmatpush1.xpose.msra.mxu0 0.0
    %3491 = vmatprep.subr.mxu0 0.0
    %3492 = vmatpush1.xpose.msra.mxu0 0.0
    %3493 = vmatprep.subr.mxu0 0.0
    %3494 = vmatpush1.xpose.msra.mxu0 0.0
    %3495 = vmatprep.subr.mxu0 0.0
    %3496 = vmatpush1.xpose.msra.mxu0 0.0
    %3497 = vmatprep.subr.mxu0 0.0
    %3498 = vmatpush1.xpose.msra.mxu0 0.0
    %3499 = vmatprep.subr.mxu0 0.0
    %3500 = vmatpush1.xpose.msra.mxu0 0.0
    %3501 = vmatprep.subr.mxu0 0.0
    %3502 = vmatpush1.xpose.msra.mxu0 0.0
    %3503 = vmatprep.subr.mxu0 0.0
    %3504 = vmatpush1.xpose.msra.mxu0 0.0
    %3505 = vmatprep.subr.mxu0 0.0
    %3506 = vmatpush1.xpose.msra.mxu0 0.0
    %3507 = vmatprep.subr.mxu0 0.0
    %3508 = vmatpush1.xpose.msra.mxu0 0.0
    %3509 = vmatprep.subr.mxu0 0.0
    %3510 = vmatpush1.xpose.msra.mxu0 0.0
    %3511 = vmatprep.subr.mxu0 0.0
    %3512 = vmatpush1.xpose.msra.mxu0 0.0
    %3513 = vmatprep.subr.mxu0 0.0
    %3514 = vmatpush1.xpose.msra.mxu0 0.0
    %3515 = vmatprep.subr.mxu0 0.0
    %3516 = vmatpush1.xpose.msra.mxu0 0.0
    %3517 = vmatprep.subr.mxu0 0.0
    %3518 = vmatpush1.xpose.msra.mxu0 0.0
    %3519 = vmatprep.subr.mxu0 0.0
    %3520 = vmatpush1.xpose.msra.mxu0 0.0
    %3521 = vmatprep.subr.mxu0 0.0
    %3522 = vmatpush1.xpose.msra.mxu0 0.0
    %3523 = vmatprep.subr.mxu0 0.0
    %3524 = vmatpush1.xpose.msra.mxu0 0.0
    %3525 = vmatprep.subr.mxu0 0.0
    %3526 = vmatpush1.xpose.msra.mxu0 0.0
    %3527 = vmatprep.subr.mxu0 0.0
    %3528 = vmatpush1.xpose.msra.mxu0 0.0
    %3529 = vmatprep.subr.mxu0 0.0
    %3530 = vmatpush1.xpose.msra.mxu0 0.0
    %3531 = vmatprep.subr.mxu0 0.0
    %3532 = vmatpush1.xpose.msra.mxu0 0.0
    %3533 = vmatprep.subr.mxu0 0.0
    %3534 = vmatpush1.xpose.msra.mxu0 0.0
    %3535 = vmatprep.subr.mxu0 0.0
    %3536 = vmatpush1.xpose.msra.mxu0 0.0
    %3537 = vmatprep.subr.mxu0 0.0
    %3538 = vmatpush1.xpose.msra.mxu0 0.0
    %3539 = vmatprep.mubr.f32.mxu0 0.0
    %3540 = vmatmul.mubr.f32.gmra.mrb[0].mxu0 %v3470
    %v3541 = vpop.f32.mrb[0].mxu0
    %v3542 = vadd.f32 0.0, %v3541
    %v3543 = vpop.f32.mrb[0].mxu0
    %3544 = vdwg.mxu0
    %v3545 = vmul.f32 %v3542, 0.35355338
    %v3546 = vsel %vm375, %v3545, -inf
    %3547 = vmax.xlane.f32.xlu0 %v3546
    %v3548 = vpop.xlane.xlu0 %3547
    %v3549 = vsub.f32 %v3545, %v3548
    %v3550 = vmul.f32 %v3549, 1.442695
    %v3551 = vpow.pop %v3550
    %v3552 = vsel %vm375, %v3551, 0.0
    %3553 = vadd.xlane.f32.xlu0 %v3552
    %v3554 = vpop.xlane.xlu0 %3553
    %v3555 = vrcp.pop %v3554
    %v3556 = vmul.f32 %v3551, %v3555
    %v3558 = vsel %vm375, %v3556, 0
    %3560 = vmatprep.subr.mxu0 0.0
    %3561 = vmatpush1.msra.mxu0 %v3466
    %3562 = vmatprep.subr.mxu0 0.0
    %3563 = vmatpush1.msra.mxu0 0.0
    %3564 = vmatprep.subr.mxu0 0.0
    %3565 = vmatpush1.msra.mxu0 0.0
    %3566 = vmatprep.subr.mxu0 0.0
    %3567 = vmatpush1.msra.mxu0 0.0
    %3568 = vmatprep.subr.mxu0 0.0
    %3569 = vmatpush1.msra.mxu0 0.0
    %3570 = vmatprep.subr.mxu0 0.0
    %3571 = vmatpush1.msra.mxu0 0.0
    %3572 = vmatprep.subr.mxu0 0.0
    %3573 = vmatpush1.msra.mxu0 0.0
    %3574 = vmatprep.subr.mxu0 0.0
    %3575 = vmatpush1.msra.mxu0 0.0
    %3576 = vmatprep.subr.mxu0 0.0
    %3577 = vmatpush1.msra.mxu0 0.0
    %3578 = vmatprep.subr.mxu0 0.0
    %3579 = vmatpush1.msra.mxu0 0.0
    %3580 = vmatprep.subr.mxu0 0.0
    %3581 = vmatpush1.msra.mxu0 0.0
    %3582 = vmatprep.subr.mxu0 0.0
    %3583 = vmatpush1.msra.mxu0 0.0
    %3584 = vmatprep.subr.mxu0 0.0
    %3585 = vmatpush1.msra.mxu0 0.0
    %3586 = vmatprep.subr.mxu0 0.0
    %3587 = vmatpush1.msra.mxu0 0.0
    %3588 = vmatprep.subr.mxu0 0.0
    %3589 = vmatpush1.msra.mxu0 0.0
    %3590 = vmatprep.subr.mxu0 0.0
    %3591 = vmatpush1.msra.mxu0 0.0
    %3592 = vmatprep.subr.mxu0 0.0
    %3593 = vmatpush1.msra.mxu0 0.0
    %3594 = vmatprep.subr.mxu0 0.0
    %3595 = vmatpush1.msra.mxu0 0.0
    %3596 = vmatprep.subr.mxu0 0.0
    %3597 = vmatpush1.msra.mxu0 0.0
    %3598 = vmatprep.subr.mxu0 0.0
    %3599 = vmatpush1.msra.mxu0 0.0
    %3600 = vmatprep.subr.mxu0 0.0
    %3601 = vmatpush1.msra.mxu0 0.0
    %3602 = vmatprep.subr.mxu0 0.0
    %3603 = vmatpush1.msra.mxu0 0.0
    %3604 = vmatprep.subr.mxu0 0.0
    %3605 = vmatpush1.msra.mxu0 0.0
    %3606 = vmatprep.subr.mxu0 0.0
    %3607 = vmatpush1.msra.mxu0 0.0
    %3608 = vmatprep.subr.mxu0 0.0
    %3609 = vmatpush1.msra.mxu0 0.0
    %3610 = vmatprep.subr.mxu0 0.0
    %3611 = vmatpush1.msra.mxu0 0.0
    %3612 = vmatprep.subr.mxu0 0.0
    %3613 = vmatpush1.msra.mxu0 0.0
    %3614 = vmatprep.subr.mxu0 0.0
    %3615 = vmatpush1.msra.mxu0 0.0
    %3616 = vmatprep.subr.mxu0 0.0
    %3617 = vmatpush1.msra.mxu0 0.0
    %3618 = vmatprep.subr.mxu0 0.0
    %3619 = vmatpush1.msra.mxu0 0.0
    %3620 = vmatprep.subr.mxu0 0.0
    %3621 = vmatpush1.msra.mxu0 0.0
    %3622 = vmatprep.subr.mxu0 0.0
    %3623 = vmatpush1.msra.mxu0 0.0
    %3624 = vmatprep.mubr.f32.mxu0 0.0
    %3625 = vmatmul.mubr.f32.gmra.mrb[0].mxu0 %v3558
    %v3626 = vpop.f32.mrb[0].mxu0
    %v3627 = vadd.f32 0.0, %v3626
    %v3628 = vpop.f32.mrb[0].mxu0
    %3629 = vdwg.mxu0
    %s3630 = scalar_lea.vmem %s5, 48
    %v3631 = vld [vmem:[%s3630] sm:$0xff]
    %v3633 = vsel %vm375, %v3627, 0
    %3635 = vmatprep.subr.mxu0 0.0
    %3636 = vmatpush1.msra.mxu0 %v3631
    %3637 = vmatprep.subr.mxu0 0.0
    %3638 = vmatpush1.msra.mxu0 0.0
    %3639 = vmatprep.subr.mxu0 0.0
    %3640 = vmatpush1.msra.mxu0 0.0
    %3641 = vmatprep.subr.mxu0 0.0
    %3642 = vmatpush1.msra.mxu0 0.0
    %3643 = vmatprep.subr.mxu0 0.0
    %3644 = vmatpush1.msra.mxu0 0.0
    %3645 = vmatprep.subr.mxu0 0.0
    %3646 = vmatpush1.msra.mxu0 0.0
    %3647 = vmatprep.subr.mxu0 0.0
    %3648 = vmatpush1.msra.mxu0 0.0
    %3649 = vmatprep.subr.mxu0 0.0
    %3650 = vmatpush1.msra.mxu0 0.0
    %3651 = vmatprep.subr.mxu0 0.0
    %3652 = vmatpush1.msra.mxu0 0.0
    %3653 = vmatprep.subr.mxu0 0.0
    %3654 = vmatpush1.msra.mxu0 0.0
    %3655 = vmatprep.subr.mxu0 0.0
    %3656 = vmatpush1.msra.mxu0 0.0
    %3657 = vmatprep.subr.mxu0 0.0
    %3658 = vmatpush1.msra.mxu0 0.0
    %3659 = vmatprep.subr.mxu0 0.0
    %3660 = vmatpush1.msra.mxu0 0.0
    %3661 = vmatprep.subr.mxu0 0.0
    %3662 = vmatpush1.msra.mxu0 0.0
    %3663 = vmatprep.subr.mxu0 0.0
    %3664 = vmatpush1.msra.mxu0 0.0
    %3665 = vmatprep.subr.mxu0 0.0
    %3666 = vmatpush1.msra.mxu0 0.0
    %3667 = vmatprep.subr.mxu0 0.0
    %3668 = vmatpush1.msra.mxu0 0.0
    %3669 = vmatprep.subr.mxu0 0.0
    %3670 = vmatpush1.msra.mxu0 0.0
    %3671 = vmatprep.subr.mxu0 0.0
    %3672 = vmatpush1.msra.mxu0 0.0
    %3673 = vmatprep.subr.mxu0 0.0
    %3674 = vmatpush1.msra.mxu0 0.0
    %3675 = vmatprep.subr.mxu0 0.0
    %3676 = vmatpush1.msra.mxu0 0.0
    %3677 = vmatprep.subr.mxu0 0.0
    %3678 = vmatpush1.msra.mxu0 0.0
    %3679 = vmatprep.subr.mxu0 0.0
    %3680 = vmatpush1.msra.mxu0 0.0
    %3681 = vmatprep.subr.mxu0 0.0
    %3682 = vmatpush1.msra.mxu0 0.0
    %3683 = vmatprep.subr.mxu0 0.0
    %3684 = vmatpush1.msra.mxu0 0.0
    %3685 = vmatprep.subr.mxu0 0.0
    %3686 = vmatpush1.msra.mxu0 0.0
    %3687 = vmatprep.subr.mxu0 0.0
    %3688 = vmatpush1.msra.mxu0 0.0
    %3689 = vmatprep.subr.mxu0 0.0
    %3690 = vmatpush1.msra.mxu0 0.0
    %3691 = vmatprep.subr.mxu0 0.0
    %3692 = vmatpush1.msra.mxu0 0.0
    %3693 = vmatprep.subr.mxu0 0.0
    %3694 = vmatpush1.msra.mxu0 0.0
    %3695 = vmatprep.subr.mxu0 0.0
    %3696 = vmatpush1.msra.mxu0 0.0
    %3697 = vmatprep.subr.mxu0 0.0
    %3698 = vmatpush1.msra.mxu0 0.0
    %3699 = vmatprep.mubr.f32.mxu0 0.0
    %3700 = vmatmul.mubr.f32.gmra.mrb[0].mxu0 %v3633
    %v3701 = vpop.f32.mrb[0].mxu0
    %v3702 = vadd.f32 0.0, %v3701
    %v3703 = vpop.f32.mrb[0].mxu0
    %3704 = vdwg.mxu0
    %v3705 = vadd.f32 %v3226, %v3702
    %s3706 = scalar_lea.vmem %s3, 480
    %v3707 = vld [vmem:[%s3706] sm:$0xff]
    %v3708 = vld [vmem:[%s3706 + $0x8] sm:$0xff]
    %v3709 = vld [vmem:[%s3706 + $0x10] sm:$0xff]
    %v3710 = vld [vmem:[%s3706 + $0x18] sm:$0xff]
    %v3711 = vld [vmem:[%s4 + $0xf] sm:$0x1]
    %v3712 = vlaneseq
    %v3713 = vshrl.u32 %v3712, 7
    %v3714 = vsub.s32 0, %v3713
    %v3715 = vrot.slane %v3711, %v3714
    %3716 = vmatprep.subr.mxu0 0.0
    %3717 = vmatpush1.msra.mxu0 %v3707
    %3718 = vmatprep.subr.mxu0 0.0
    %3719 = vmatpush1.msra.mxu0 %v3708
    %3720 = vmatprep.subr.mxu0 0.0
    %3721 = vmatpush1.msra.mxu0 %v3709
    %3722 = vmatprep.subr.mxu0 0.0
    %3723 = vmatpush1.msra.mxu0 %v3710
    %3724 = vmatprep.subr.mxu0 0.0
    %3725 = vmatpush1.msra.mxu0 0.0
    %3726 = vmatprep.subr.mxu0 0.0
    %3727 = vmatpush1.msra.mxu0 0.0
    %3728 = vmatprep.subr.mxu0 0.0
    %3729 = vmatpush1.msra.mxu0 0.0
    %3730 = vmatprep.subr.mxu0 0.0
    %3731 = vmatpush1.msra.mxu0 0.0
    %3732 = vmatprep.subr.mxu0 0.0
    %3733 = vmatpush1.msra.mxu0 0.0
    %3734 = vmatprep.subr.mxu0 0.0
    %3735 = vmatpush1.msra.mxu0 0.0
    %3736 = vmatprep.subr.mxu0 0.0
    %3737 = vmatpush1.msra.mxu0 0.0
    %3738 = vmatprep.subr.mxu0 0.0
    %3739 = vmatpush1.msra.mxu0 0.0
    %3740 = vmatprep.subr.mxu0 0.0
    %3741 = vmatpush1.msra.mxu0 0.0
    %3742 = vmatprep.subr.mxu0 0.0
    %3743 = vmatpush1.msra.mxu0 0.0
    %3744 = vmatprep.subr.mxu0 0.0
    %3745 = vmatpush1.msra.mxu0 0.0
    %3746 = vmatprep.subr.mxu0 0.0
    %3747 = vmatpush1.msra.mxu0 0.0
    %3748 = vmatprep.subr.mxu0 0.0
    %3749 = vmatpush1.msra.mxu0 0.0
    %3750 = vmatprep.subr.mxu0 0.0
    %3751 = vmatpush1.msra.mxu0 0.0
    %3752 = vmatprep.subr.mxu0 0.0
    %3753 = vmatpush1.msra.mxu0 0.0
    %3754 = vmatprep.subr.mxu0 0.0
    %3755 = vmatpush1.msra.mxu0 0.0
    %3756 = vmatprep.subr.mxu0 0.0
    %3757 = vmatpush1.msra.mxu0 0.0
    %3758 = vmatprep.subr.mxu0 0.0
    %3759 = vmatpush1.msra.mxu0 0.0
    %3760 = vmatprep.subr.mxu0 0.0
    %3761 = vmatpush1.msra.mxu0 0.0
    %3762 = vmatprep.subr.mxu0 0.0
    %3763 = vmatpush1.msra.mxu0 0.0
    %3764 = vmatprep.subr.mxu0 0.0
    %3765 = vmatpush1.msra.mxu0 0.0
    %3766 = vmatprep.subr.mxu0 0.0
    %3767 = vmatpush1.msra.mxu0 0.0
    %3768 = vmatprep.subr.mxu0 0.0
    %3769 = vmatpush1.msra.mxu0 0.0
    %3770 = vmatprep.subr.mxu0 0.0
    %3771 = vmatpush1.msra.mxu0 0.0
    %3772 = vmatprep.subr.mxu0 0.0
    %3773 = vmatpush1.msra.mxu0 0.0
    %3774 = vmatprep.subr.mxu0 0.0
    %3775 = vmatpush1.msra.mxu0 0.0
    %3776 = vmatprep.subr.mxu0 0.0
    %3777 = vmatpush1.msra.mxu0 0.0
    %3778 = vmatprep.subr.mxu0 0.0
    %3779 = vmatpush1.msra.mxu0 0.0
    %3780 = vmatprep.mubr.f32.mxu0 0.0
    %3781 = vmatmul.mubr.f32.gmra.mrb[0].mxu0 %v2285
    %v3782 = vpop.f32.mrb[0].mxu0
    %v3783 = vadd.f32 %v3715, %v3782
    %v3784 = vpop.f32.mrb[0].mxu0
    %3785 = vdwg.mxu0
    %s3786 = scalar_lea.vmem %s3, 608
    %v3787 = vld [vmem:[%s3786] sm:$0xff]
    %v3788 = vld [vmem:[%s3786 + $0x8] sm:$0xff]
    %v3789 = vld [vmem:[%s3786 + $0x10] sm:$0xff]
    %v3790 = vld [vmem:[%s3786 + $0x18] sm:$0xff]
    %v3791 = vld [vmem:[%s4 + $0x13] sm:$0x1]
    %v3792 = vlaneseq
    %v3793 = vshrl.u32 %v3792, 7
    %v3794 = vsub.s32 0, %v3793
    %v3795 = vrot.slane %v3791, %v3794
    %3796 = vmatprep.subr.mxu0 0.0
    %3797 = vmatpush1.msra.mxu0 %v3787
    %3798 = vmatprep.subr.mxu0 0.0
    %3799 = vmatpush1.msra.mxu0 %v3788
    %3800 = vmatprep.subr.mxu0 0.0
    %3801 = vmatpush1.msra.mxu0 %v3789
    %3802 = vmatprep.subr.mxu0 0.0
    %3803 = vmatpush1.msra.mxu0 %v3790
    %3804 = vmatprep.subr.mxu0 0.0
    %3805 = vmatpush1.msra.mxu0 0.0
    %3806 = vmatprep.subr.mxu0 0.0
    %3807 = vmatpush1.msra.mxu0 0.0
    %3808 = vmatprep.subr.mxu0 0.0
    %3809 = vmatpush1.msra.mxu0 0.0
    %3810 = vmatprep.subr.mxu0 0.0
    %3811 = vmatpush1.msra.mxu0 0.0
    %3812 = vmatprep.subr.mxu0 0.0
    %3813 = vmatpush1.msra.mxu0 0.0
    %3814 = vmatprep.subr.mxu0 0.0
    %3815 = vmatpush1.msra.mxu0 0.0
    %3816 = vmatprep.subr.mxu0 0.0
    %3817 = vmatpush1.msra.mxu0 0.0
    %3818 = vmatprep.subr.mxu0 0.0
    %3819 = vmatpush1.msra.mxu0 0.0
    %3820 = vmatprep.subr.mxu0 0.0
    %3821 = vmatpush1.msra.mxu0 0.0
    %3822 = vmatprep.subr.mxu0 0.0
    %3823 = vmatpush1.msra.mxu0 0.0
    %3824 = vmatprep.subr.mxu0 0.0
    %3825 = vmatpush1.msra.mxu0 0.0
    %3826 = vmatprep.subr.mxu0 0.0
    %3827 = vmatpush1.msra.mxu0 0.0
    %3828 = vmatprep.subr.mxu0 0.0
    %3829 = vmatpush1.msra.mxu0 0.0
    %3830 = vmatprep.subr.mxu0 0.0
    %3831 = vmatpush1.msra.mxu0 0.0
    %3832 = vmatprep.subr.mxu0 0.0
    %3833 = vmatpush1.msra.mxu0 0.0
    %3834 = vmatprep.subr.mxu0 0.0
    %3835 = vmatpush1.msra.mxu0 0.0
    %3836 = vmatprep.subr.mxu0 0.0
    %3837 = vmatpush1.msra.mxu0 0.0
    %3838 = vmatprep.subr.mxu0 0.0
    %3839 = vmatpush1.msra.mxu0 0.0
    %3840 = vmatprep.subr.mxu0 0.0
    %3841 = vmatpush1.msra.mxu0 0.0
    %3842 = vmatprep.subr.mxu0 0.0
    %3843 = vmatpush1.msra.mxu0 0.0
    %3844 = vmatprep.subr.mxu0 0.0
    %3845 = vmatpush1.msra.mxu0 0.0
    %3846 = vmatprep.subr.mxu0 0.0
    %3847 = vmatpush1.msra.mxu0 0.0
    %3848 = vmatprep.subr.mxu0 0.0
    %3849 = vmatpush1.msra.mxu0 0.0
    %3850 = vmatprep.subr.mxu0 0.0
    %3851 = vmatpush1.msra.mxu0 0.0
    %3852 = vmatprep.subr.mxu0 0.0
    %3853 = vmatpush1.msra.mxu0 0.0
    %3854 = vmatprep.subr.mxu0 0.0
    %3855 = vmatpush1.msra.mxu0 0.0
    %3856 = vmatprep.subr.mxu0 0.0
    %3857 = vmatpush1.msra.mxu0 0.0
    %3858 = vmatprep.subr.mxu0 0.0
    %3859 = vmatpush1.msra.mxu0 0.0
    %3860 = vmatprep.mubr.f32.mxu0 0.0
    %3861 = vmatmul.mubr.f32.gmra.mrb[0].mxu0 %v2285
    %v3862 = vpop.f32.mrb[0].mxu0
    %v3863 = vadd.f32 %v3795, %v3862
    %v3864 = vpop.f32.mrb[0].mxu0
    %3865 = vdwg.mxu0
    %s3866 = scalar_lea.vmem %s3, 736
    %v3867 = vld [vmem:[%s3866] sm:$0xff]
    %v3868 = vld [vmem:[%s3866 + $0x8] sm:$0xff]
    %v3869 = vld [vmem:[%s3866 + $0x10] sm:$0xff]
    %v3870 = vld [vmem:[%s3866 + $0x18] sm:$0xff]
    %v3871 = vld [vmem:[%s4 + $0x17] sm:$0x1]
    %v3872 = vlaneseq
    %v3873 = vshrl.u32 %v3872, 7
    %v3874 = vsub.s32 0, %v3873
    %v3875 = vrot.slane %v3871, %v3874
    %3876 = vmatprep.subr.mxu0 0.0
    %3877 = vmatpush1.msra.mxu0 %v3867
    %3878 = vmatprep.subr.mxu0 0.0
    %3879 = vmatpush1.msra.mxu0 %v3868
    %3880 = vmatprep.subr.mxu0 0.0
    %3881 = vmatpush1.msra.mxu0 %v3869
    %3882 = vmatprep.subr.mxu0 0.0
    %3883 = vmatpush1.msra.mxu0 %v3870
    %3884 = vmatprep.subr.mxu0 0.0
    %3885 = vmatpush1.msra.mxu0 0.0
    %3886 = vmatprep.subr.mxu0 0.0
    %3887 = vmatpush1.msra.mxu0 0.0
    %3888 = vmatprep.subr.mxu0 0.0
    %3889 = vmatpush1.msra.mxu0 0.0
    %3890 = vmatprep.subr.mxu0 0.0
    %3891 = vmatpush1.msra.mxu0 0.0
    %3892 = vmatprep.subr.mxu0 0.0
    %3893 = vmatpush1.msra.mxu0 0.0
    %3894 = vmatprep.subr.mxu0 0.0
    %3895 = vmatpush1.msra.mxu0 0.0
    %3896 = vmatprep.subr.mxu0 0.0
    %3897 = vmatpush1.msra.mxu0 0.0
    %3898 = vmatprep.subr.mxu0 0.0
    %3899 = vmatpush1.msra.mxu0 0.0
    %3900 = vmatprep.subr.mxu0 0.0
    %3901 = vmatpush1.msra.mxu0 0.0
    %3902 = vmatprep.subr.mxu0 0.0
    %3903 = vmatpush1.msra.mxu0 0.0
    %3904 = vmatprep.subr.mxu0 0.0
    %3905 = vmatpush1.msra.mxu0 0.0
    %3906 = vmatprep.subr.mxu0 0.0
    %3907 = vmatpush1.msra.mxu0 0.0
    %3908 = vmatprep.subr.mxu0 0.0
    %3909 = vmatpush1.msra.mxu0 0.0
    %3910 = vmatprep.subr.mxu0 0.0
    %3911 = vmatpush1.msra.mxu0 0.0
    %3912 = vmatprep.subr.mxu0 0.0
    %3913 = vmatpush1.msra.mxu0 0.0
    %3914 = vmatprep.subr.mxu0 0.0
    %3915 = vmatpush1.msra.mxu0 0.0
    %3916 = vmatprep.subr.mxu0 0.0
    %3917 = vmatpush1.msra.mxu0 0.0
    %3918 = vmatprep.subr.mxu0 0.0
    %3919 = vmatpush1.msra.mxu0 0.0
    %3920 = vmatprep.subr.mxu0 0.0
    %3921 = vmatpush1.msra.mxu0 0.0
    %3922 = vmatprep.subr.mxu0 0.0
    %3923 = vmatpush1.msra.mxu0 0.0
    %3924 = vmatprep.subr.mxu0 0.0
    %3925 = vmatpush1.msra.mxu0 0.0
    %3926 = vmatprep.subr.mxu0 0.0
    %3927 = vmatpush1.msra.mxu0 0.0
    %3928 = vmatprep.subr.mxu0 0.0
    %3929 = vmatpush1.msra.mxu0 0.0
    %3930 = vmatprep.subr.mxu0 0.0
    %3931 = vmatpush1.msra.mxu0 0.0
    %3932 = vmatprep.subr.mxu0 0.0
    %3933 = vmatpush1.msra.mxu0 0.0
    %3934 = vmatprep.subr.mxu0 0.0
    %3935 = vmatpush1.msra.mxu0 0.0
    %3936 = vmatprep.subr.mxu0 0.0
    %3937 = vmatpush1.msra.mxu0 0.0
    %3938 = vmatprep.subr.mxu0 0.0
    %3939 = vmatpush1.msra.mxu0 0.0
    %3940 = vmatprep.mubr.f32.mxu0 0.0
    %3941 = vmatmul.mubr.f32.gmra.mrb[0].mxu0 %v2285
    %v3942 = vpop.f32.mrb[0].mxu0
    %v3943 = vadd.f32 %v3875, %v3942
    %v3944 = vpop.f32.mrb[0].mxu0
    %3945 = vdwg.mxu0
    %v3947 = vsel %vm375, %v3783, 0
    %v3950 = vsel %vm375, %v3863, 0
    %3952 = vmatprep.subr.mxu0 0.0
    %3953 = vmatpush1.xpose.msra.mxu0 %v3950
    %3954 = vmatprep.subr.mxu0 0.0
    %3955 = vmatpush1.xpose.msra.mxu0 0.0
    %3956 = vmatprep.subr.mxu0 0.0
    %3957 = vmatpush1.xpose.msra.mxu0 0.0
    %3958 = vmatprep.subr.mxu0 0.0
    %3959 = vmatpush1.xpose.msra.mxu0 0.0
    %3960 = vmatprep.subr.mxu0 0.0
    %3961 = vmatpush1.xpose.msra.mxu0 0.0
    %3962 = vmatprep.subr.mxu0 0.0
    %3963 = vmatpush1.xpose.msra.mxu0 0.0
    %3964 = vmatprep.subr.mxu0 0.0
    %3965 = vmatpush1.xpose.msra.mxu0 0.0
    %3966 = vmatprep.subr.mxu0 0.0
    %3967 = vmatpush1.xpose.msra.mxu0 0.0
    %3968 = vmatprep.subr.mxu0 0.0
    %3969 = vmatpush1.xpose.msra.mxu0 0.0
    %3970 = vmatprep.subr.mxu0 0.0
    %3971 = vmatpush1.xpose.msra.mxu0 0.0
    %3972 = vmatprep.subr.mxu0 0.0
    %3973 = vmatpush1.xpose.msra.mxu0 0.0
    %3974 = vmatprep.subr.mxu0 0.0
    %3975 = vmatpush1.xpose.msra.mxu0 0.0
    %3976 = vmatprep.subr.mxu0 0.0
    %3977 = vmatpush1.xpose.msra.mxu0 0.0
    %3978 = vmatprep.subr.mxu0 0.0
    %3979 = vmatpush1.xpose.msra.mxu0 0.0
    %3980 = vmatprep.subr.mxu0 0.0
    %3981 = vmatpush1.xpose.msra.mxu0 0.0
    %3982 = vmatprep.subr.mxu0 0.0
    %3983 = vmatpush1.xpose.msra.mxu0 0.0
    %3984 = vmatprep.subr.mxu0 0.0
    %3985 = vmatpush1.xpose.msra.mxu0 0.0
    %3986 = vmatprep.subr.mxu0 0.0
    %3987 = vmatpush1.xpose.msra.mxu0 0.0
    %3988 = vmatprep.subr.mxu0 0.0
    %3989 = vmatpush1.xpose.msra.mxu0 0.0
    %3990 = vmatprep.subr.mxu0 0.0
    %3991 = vmatpush1.xpose.msra.mxu0 0.0
    %3992 = vmatprep.subr.mxu0 0.0
    %3993 = vmatpush1.xpose.msra.mxu0 0.0
    %3994 = vmatprep.subr.mxu0 0.0
    %3995 = vmatpush1.xpose.msra.mxu0 0.0
    %3996 = vmatprep.subr.mxu0 0.0
    %3997 = vmatpush1.xpose.msra.mxu0 0.0
    %3998 = vmatprep.subr.mxu0 0.0
    %3999 = vmatpush1.xpose.msra.mxu0 0.0
    %4000 = vmatprep.subr.mxu0 0.0
    %4001 = vmatpush1.xpose.msra.mxu0 0.0
    %4002 = vmatprep.subr.mxu0 0.0
    %4003 = vmatpush1.xpose.msra.mxu0 0.0
    %4004 = vmatprep.subr.mxu0 0.0
    %4005 = vmatpush1.xpose.msra.mxu0 0.0
    %4006 = vmatprep.subr.mxu0 0.0
    %4007 = vmatpush1.xpose.msra.mxu0 0.0
    %4008 = vmatprep.subr.mxu0 0.0
    %4009 = vmatpush1.xpose.msra.mxu0 0.0
    %4010 = vmatprep.subr.mxu0 0.0
    %4011 = vmatpush1.xpose.msra.mxu0 0.0
    %4012 = vmatprep.subr.mxu0 0.0
    %4013 = vmatpush1.xpose.msra.mxu0 0.0
    %4014 = vmatprep.subr.mxu0 0.0
    %4015 = vmatpush1.xpose.msra.mxu0 0.0
    %4016 = vmatprep.mubr.f32.mxu0 0.0
    %4017 = vmatmul.mubr.f32.gmra.mrb[0].mxu0 %v3947
    %v4018 = vpop.f32.mrb[0].mxu0
    %v4019 = vadd.f32 0.0, %v4018
    %v4020 = vpop.f32.mrb[0].mxu0
    %4021 = vdwg.mxu0
    %v4022 = vmul.f32 %v4019, 0.35355338
    %v4023 = vsel %vm375, %v4022, -inf
    %4024 = vmax.xlane.f32.xlu0 %v4023
    %v4025 = vpop.xlane.xlu0 %4024
    %v4026 = vsub.f32 %v4022, %v4025
    %v4027 = vmul.f32 %v4026, 1.442695
    %v4028 = vpow.pop %v4027
    %v4029 = vsel %vm375, %v4028, 0.0
    %4030 = vadd.xlane.f32.xlu0 %v4029
    %v4031 = vpop.xlane.xlu0 %4030
    %v4032 = vrcp.pop %v4031
    %v4033 = vmul.f32 %v4028, %v4032
    %v4035 = vsel %vm375, %v4033, 0
    %4037 = vmatprep.subr.mxu0 0.0
    %4038 = vmatpush1.msra.mxu0 %v3943
    %4039 = vmatprep.subr.mxu0 0.0
    %4040 = vmatpush1.msra.mxu0 0.0
    %4041 = vmatprep.subr.mxu0 0.0
    %4042 = vmatpush1.msra.mxu0 0.0
    %4043 = vmatprep.subr.mxu0 0.0
    %4044 = vmatpush1.msra.mxu0 0.0
    %4045 = vmatprep.subr.mxu0 0.0
    %4046 = vmatpush1.msra.mxu0 0.0
    %4047 = vmatprep.subr.mxu0 0.0
    %4048 = vmatpush1.msra.mxu0 0.0
    %4049 = vmatprep.subr.mxu0 0.0
    %4050 = vmatpush1.msra.mxu0 0.0
    %4051 = vmatprep.subr.mxu0 0.0
    %4052 = vmatpush1.msra.mxu0 0.0
    %4053 = vmatprep.subr.mxu0 0.0
    %4054 = vmatpush1.msra.mxu0 0.0
    %4055 = vmatprep.subr.mxu0 0.0
    %4056 = vmatpush1.msra.mxu0 0.0
    %4057 = vmatprep.subr.mxu0 0.0
    %4058 = vmatpush1.msra.mxu0 0.0
    %4059 = vmatprep.subr.mxu0 0.0
    %4060 = vmatpush1.msra.mxu0 0.0
    %4061 = vmatprep.subr.mxu0 0.0
    %4062 = vmatpush1.msra.mxu0 0.0
    %4063 = vmatprep.subr.mxu0 0.0
    %4064 = vmatpush1.msra.mxu0 0.0
    %4065 = vmatprep.subr.mxu0 0.0
    %4066 = vmatpush1.msra.mxu0 0.0
    %4067 = vmatprep.subr.mxu0 0.0
    %4068 = vmatpush1.msra.mxu0 0.0
    %4069 = vmatprep.subr.mxu0 0.0
    %4070 = vmatpush1.msra.mxu0 0.0
    %4071 = vmatprep.subr.mxu0 0.0
    %4072 = vmatpush1.msra.mxu0 0.0
    %4073 = vmatprep.subr.mxu0 0.0
    %4074 = vmatpush1.msra.mxu0 0.0
    %4075 = vmatprep.subr.mxu0 0.0
    %4076 = vmatpush1.msra.mxu0 0.0
    %4077 = vmatprep.subr.mxu0 0.0
    %4078 = vmatpush1.msra.mxu0 0.0
    %4079 = vmatprep.subr.mxu0 0.0
    %4080 = vmatpush1.msra.mxu0 0.0
    %4081 = vmatprep.subr.mxu0 0.0
    %4082 = vmatpush1.msra.mxu0 0.0
    %4083 = vmatprep.subr.mxu0 0.0
    %4084 = vmatpush1.msra.mxu0 0.0
    %4085 = vmatprep.subr.mxu0 0.0
    %4086 = vmatpush1.msra.mxu0 0.0
    %4087 = vmatprep.subr.mxu0 0.0
    %4088 = vmatpush1.msra.mxu0 0.0
    %4089 = vmatprep.subr.mxu0 0.0
    %4090 = vmatpush1.msra.mxu0 0.0
    %4091 = vmatprep.subr.mxu0 0.0
    %4092 = vmatpush1.msra.mxu0 0.0
    %4093 = vmatprep.subr.mxu0 0.0
    %4094 = vmatpush1.msra.mxu0 0.0
    %4095 = vmatprep.subr.mxu0 0.0
    %4096 = vmatpush1.msra.mxu0 0.0
    %4097 = vmatprep.subr.mxu0 0.0
    %4098 = vmatpush1.msra.mxu0 0.0
    %4099 = vmatprep.subr.mxu0 0.0
    %4100 = vmatpush1.msra.mxu0 0.0
    %4101 = vmatprep.mubr.f32.mxu0 0.0
    %4102 = vmatmul.mubr.f32.gmra.mrb[0].mxu0 %v4035
    %v4103 = vpop.f32.mrb[0].mxu0
    %v4104 = vadd.f32 0.0, %v4103
    %v4105 = vpop.f32.mrb[0].mxu0
    %4106 = vdwg.mxu0
    %s4107 = scalar_lea.vmem %s5, 56
    %v4108 = vld [vmem:[%s4107] sm:$0xff]
    %v4110 = vsel %vm375, %v4104, 0
    %4112 = vmatprep.subr.mxu0 0.0
    %4113 = vmatpush1.msra.mxu0 %v4108
    %4114 = vmatprep.subr.mxu0 0.0
    %4115 = vmatpush1.msra.mxu0 0.0
    %4116 = vmatprep.subr.mxu0 0.0
    %4117 = vmatpush1.msra.mxu0 0.0
    %4118 = vmatprep.subr.mxu0 0.0
    %4119 = vmatpush1.msra.mxu0 0.0
    %4120 = vmatprep.subr.mxu0 0.0
    %4121 = vmatpush1.msra.mxu0 0.0
    %4122 = vmatprep.subr.mxu0 0.0
    %4123 = vmatpush1.msra.mxu0 0.0
    %4124 = vmatprep.subr.mxu0 0.0
    %4125 = vmatpush1.msra.mxu0 0.0
    %4126 = vmatprep.subr.mxu0 0.0
    %4127 = vmatpush1.msra.mxu0 0.0
    %4128 = vmatprep.subr.mxu0 0.0
    %4129 = vmatpush1.msra.mxu0 0.0
    %4130 = vmatprep.subr.mxu0 0.0
    %4131 = vmatpush1.msra.mxu0 0.0
    %4132 = vmatprep.subr.mxu0 0.0
    %4133 = vmatpush1.msra.mxu0 0.0
    %4134 = vmatprep.subr.mxu0 0.0
    %4135 = vmatpush1.msra.mxu0 0.0
    %4136 = vmatprep.subr.mxu0 0.0
    %4137 = vmatpush1.msra.mxu0 0.0
    %4138 = vmatprep.subr.mxu0 0.0
    %4139 = vmatpush1.msra.mxu0 0.0
    %4140 = vmatprep.subr.mxu0 0.0
    %4141 = vmatpush1.msra.mxu0 0.0
    %4142 = vmatprep.subr.mxu0 0.0
    %4143 = vmatpush1.msra.mxu0 0.0
    %4144 = vmatprep.subr.mxu0 0.0
    %4145 = vmatpush1.msra.mxu0 0.0
    %4146 = vmatprep.subr.mxu0 0.0
    %4147 = vmatpush1.msra.mxu0 0.0
    %4148 = vmatprep.subr.mxu0 0.0
    %4149 = vmatpush1.msra.mxu0 0.0
    %4150 = vmatprep.subr.mxu0 0.0
    %4151 = vmatpush1.msra.mxu0 0.0
    %4152 = vmatprep.subr.mxu0 0.0
    %4153 = vmatpush1.msra.mxu0 0.0
    %4154 = vmatprep.subr.mxu0 0.0
    %4155 = vmatpush1.msra.mxu0 0.0
    %4156 = vmatprep.subr.mxu0 0.0
    %4157 = vmatpush1.msra.mxu0 0.0
    %4158 = vmatprep.subr.mxu0 0.0
    %4159 = vmatpush1.msra.mxu0 0.0
    %4160 = vmatprep.subr.mxu0 0.0
    %4161 = vmatpush1.msra.mxu0 0.0
    %4162 = vmatprep.subr.mxu0 0.0
    %4163 = vmatpush1.msra.mxu0 0.0
    %4164 = vmatprep.subr.mxu0 0.0
    %4165 = vmatpush1.msra.mxu0 0.0
    %4166 = vmatprep.subr.mxu0 0.0
    %4167 = vmatpush1.msra.mxu0 0.0
    %4168 = vmatprep.subr.mxu0 0.0
    %4169 = vmatpush1.msra.mxu0 0.0
    %4170 = vmatprep.subr.mxu0 0.0
    %4171 = vmatpush1.msra.mxu0 0.0
    %4172 = vmatprep.subr.mxu0 0.0
    %4173 = vmatpush1.msra.mxu0 0.0
    %4174 = vmatprep.subr.mxu0 0.0
    %4175 = vmatpush1.msra.mxu0 0.0
    %4176 = vmatprep.mubr.f32.mxu0 0.0
    %4177 = vmatmul.mubr.f32.gmra.mrb[0].mxu0 %v4110
    %v4178 = vpop.f32.mrb[0].mxu0
    %v4179 = vadd.f32 0.0, %v4178
    %v4180 = vpop.f32.mrb[0].mxu0
    %4181 = vdwg.mxu0
    %v4182 = vadd.f32 %v3705, %v4179
    %v4183 = vld [vmem:[%s6 + $0x6] sm:$0x1]
    %v4184 = vlaneseq
    %v4185 = vshrl.u32 %v4184, 7
    %v4186 = vsub.s32 0, %v4185
    %v4187 = vrot.slane %v4183, %v4186
    %v4188 = vadd.f32 %v4182, %v4187
    %v4189 = vadd.f32 %v2273, %v4188
    %v4190 = vld [vmem:[%s6 + $0x7] sm:$0x1]
    %v4191 = vld [vmem:[%s6 + $0x8] sm:$0x1]
    %v4192 = vsel %vm141, %v4189, 0.0
    %4193 = vadd.xlane.f32.xlu0 %v4192
    %v4194 = vpop.xlane.xlu0 %4193
    %v4195 = vmul.f32 %v4194, %v2053
    %v4196 = vsub.f32 %v4189, %v4195
    %v4197 = vmul.f32 %v4196, %v4196
    %v4198 = vsel %vm141, %v4197, 0.0
    %4199 = vadd.xlane.f32.xlu0 %v4198
    %v4200 = vpop.xlane.xlu0 %4199
    %v4201 = vmul.f32 %v4200, %v2053
    %v4202 = vadd.f32 %v4201, 1e-05
    %v4203 = vrsqrt.pop %v4202
    %v4204 = vmul.f32 %v4196, %v4203
    %v4205 = vlaneseq
    %v4206 = vshrl.u32 %v4205, 7
    %v4207 = vsub.s32 0, %v4206
    %v4208 = vrot.slane %v4190, %v4207
    %v4209 = vmul.f32 %v4204, %v4208
    %v4210 = vlaneseq
    %v4211 = vshrl.u32 %v4210, 7
    %v4212 = vsub.s32 0, %v4211
    %v4213 = vrot.slane %v4191, %v4212
    %v4214 = vadd.f32 %v4209, %v4213
    %s4215 = scalar_lea.vmem %s7, 32
    %v4216 = vld [vmem:[%s4215] sm:$0xff]
    %v4217 = vld [vmem:[%s4215 + $0x8] sm:$0xff]
    %v4218 = vld [vmem:[%s4215 + $0x10] sm:$0xff]
    %v4219 = vld [vmem:[%s4215 + $0x18] sm:$0xff]
    %v4220 = vld [vmem:[%s8 + $0x1] sm:$0x1]
    %v4221 = vlaneseq
    %v4222 = vshrl.u32 %v4221, 7
    %v4223 = vsub.s32 0, %v4222
    %v4224 = vrot.slane %v4220, %v4223
    %v4226 = vsel %vm141, %v4214, 0
    %4228 = vmatprep.subr.mxu0 0.0
    %4229 = vmatpush1.msra.mxu0 %v4216
    %4230 = vmatprep.subr.mxu0 0.0
    %4231 = vmatpush1.msra.mxu0 %v4217
    %4232 = vmatprep.subr.mxu0 0.0
    %4233 = vmatpush1.msra.mxu0 %v4218
    %4234 = vmatprep.subr.mxu0 0.0
    %4235 = vmatpush1.msra.mxu0 %v4219
    %4236 = vmatprep.subr.mxu0 0.0
    %4237 = vmatpush1.msra.mxu0 0.0
    %4238 = vmatprep.subr.mxu0 0.0
    %4239 = vmatpush1.msra.mxu0 0.0
    %4240 = vmatprep.subr.mxu0 0.0
    %4241 = vmatpush1.msra.mxu0 0.0
    %4242 = vmatprep.subr.mxu0 0.0
    %4243 = vmatpush1.msra.mxu0 0.0
    %4244 = vmatprep.subr.mxu0 0.0
    %4245 = vmatpush1.msra.mxu0 0.0
    %4246 = vmatprep.subr.mxu0 0.0
    %4247 = vmatpush1.msra.mxu0 0.0
    %4248 = vmatprep.subr.mxu0 0.0
    %4249 = vmatpush1.msra.mxu0 0.0
    %4250 = vmatprep.subr.mxu0 0.0
    %4251 = vmatpush1.msra.mxu0 0.0
    %4252 = vmatprep.subr.mxu0 0.0
    %4253 = vmatpush1.msra.mxu0 0.0
    %4254 = vmatprep.subr.mxu0 0.0
    %4255 = vmatpush1.msra.mxu0 0.0
    %4256 = vmatprep.subr.mxu0 0.0
    %4257 = vmatpush1.msra.mxu0 0.0
    %4258 = vmatprep.subr.mxu0 0.0
    %4259 = vmatpush1.msra.mxu0 0.0
    %4260 = vmatprep.subr.mxu0 0.0
    %4261 = vmatpush1.msra.mxu0 0.0
    %4262 = vmatprep.subr.mxu0 0.0
    %4263 = vmatpush1.msra.mxu0 0.0
    %4264 = vmatprep.subr.mxu0 0.0
    %4265 = vmatpush1.msra.mxu0 0.0
    %4266 = vmatprep.subr.mxu0 0.0
    %4267 = vmatpush1.msra.mxu0 0.0
    %4268 = vmatprep.subr.mxu0 0.0
    %4269 = vmatpush1.msra.mxu0 0.0
    %4270 = vmatprep.subr.mxu0 0.0
    %4271 = vmatpush1.msra.mxu0 0.0
    %4272 = vmatprep.subr.mxu0 0.0
    %4273 = vmatpush1.msra.mxu0 0.0
    %4274 = vmatprep.subr.mxu0 0.0
    %4275 = vmatpush1.msra.mxu0 0.0
    %4276 = vmatprep.subr.mxu0 0.0
    %4277 = vmatpush1.msra.mxu0 0.0
    %4278 = vmatprep.subr.mxu0 0.0
    %4279 = vmatpush1.msra.mxu0 0.0
    %4280 = vmatprep.subr.mxu0 0.0
    %4281 = vmatpush1.msra.mxu0 0.0
    %4282 = vmatprep.subr.mxu0 0.0
    %4283 = vmatpush1.msra.mxu0 0.0
    %4284 = vmatprep.subr.mxu0 0.0
    %4285 = vmatpush1.msra.mxu0 0.0
    %4286 = vmatprep.subr.mxu0 0.0
    %4287 = vmatpush1.msra.mxu0 0.0
    %4288 = vmatprep.subr.mxu0 0.0
    %4289 = vmatpush1.msra.mxu0 0.0
    %4290 = vmatprep.subr.mxu0 0.0
    %4291 = vmatpush1.msra.mxu0 0.0
    %4292 = vmatprep.mubr.f32.mxu0 0.0
    %4293 = vmatmul.mubr.f32.gmra.mrb[0].mxu0 %v4226
    %v4294 = vpop.f32.mrb[0].mxu0
    %v4295 = vadd.f32 %v4224, %v4294
    %v4296 = vpop.f32.mrb[0].mxu0
    %4297 = vdwg.mxu0
    %v4298 = vmax.f32 %v4295, 0.0
    %s4299 = scalar_lea.vmem %s9, 128
    %v4300 = vld [vmem:[%s4299] sm:$0xff]
    %v4301 = vld [vmem:[%s4299 + $0x8] sm:$0xff]
    %v4302 = vld [vmem:[%s4299 + $0x10] sm:$0xff]
    %v4303 = vld [vmem:[%s4299 + $0x18] sm:$0xff]
    %v4304 = vld [vmem:[%s4299 + $0x20] sm:$0xff]
    %v4305 = vld [vmem:[%s4299 + $0x28] sm:$0xff]
    %v4306 = vld [vmem:[%s4299 + $0x30] sm:$0xff]
    %v4307 = vld [vmem:[%s4299 + $0x38] sm:$0xff]
    %v4308 = vld [vmem:[%s4299 + $0x40] sm:$0xff]
    %v4309 = vld [vmem:[%s4299 + $0x48] sm:$0xff]
    %v4310 = vld [vmem:[%s4299 + $0x50] sm:$0xff]
    %v4311 = vld [vmem:[%s4299 + $0x58] sm:$0xff]
    %v4312 = vld [vmem:[%s4299 + $0x60] sm:$0xff]
    %v4313 = vld [vmem:[%s4299 + $0x68] sm:$0xff]
    %v4314 = vld [vmem:[%s4299 + $0x70] sm:$0xff]
    %v4315 = vld [vmem:[%s4299 + $0x78] sm:$0xff]
    %v4316 = vld [vmem:[%s6 + $0x9] sm:$0x1]
    %v4317 = vlaneseq
    %v4318 = vshrl.u32 %v4317, 7
    %v4319 = vsub.s32 0, %v4318
    %v4320 = vrot.slane %v4316, %v4319
    %4321 = vmatprep.subr.mxu0 0.0
    %4322 = vmatpush1.msra.mxu0 %v4300
    %4323 = vmatprep.subr.mxu0 0.0
    %4324 = vmatpush1.msra.mxu0 %v4301
    %4325 = vmatprep.subr.mxu0 0.0
    %4326 = vmatpush1.msra.mxu0 %v4302
    %4327 = vmatprep.subr.mxu0 0.0
    %4328 = vmatpush1.msra.mxu0 %v4303
    %4329 = vmatprep.subr.mxu0 0.0
    %4330 = vmatpush1.msra.mxu0 %v4304
    %4331 = vmatprep.subr.mxu0 0.0
    %4332 = vmatpush1.msra.mxu0 %v4305
    %4333 = vmatprep.subr.mxu0 0.0
    %4334 = vmatpush1.msra.mxu0 %v4306
    %4335 = vmatprep.subr.mxu0 0.0
    %4336 = vmatpush1.msra.mxu0 %v4307
    %4337 = vmatprep.subr.mxu0 0.0
    %4338 = vmatpush1.msra.mxu0 %v4308
    %4339 = vmatprep.subr.mxu0 0.0
    %4340 = vmatpush1.msra.mxu0 %v4309
    %4341 = vmatprep.subr.mxu0 0.0
    %4342 = vmatpush1.msra.mxu0 %v4310
    %4343 = vmatprep.subr.mxu0 0.0
    %4344 = vmatpush1.msra.mxu0 %v4311
    %4345 = vmatprep.subr.mxu0 0.0
    %4346 = vmatpush1.msra.mxu0 %v4312
    %4347 = vmatprep.subr.mxu0 0.0
    %4348 = vmatpush1.msra.mxu0 %v4313
    %4349 = vmatprep.subr.mxu0 0.0
    %4350 = vmatpush1.msra.mxu0 %v4314
    %4351 = vmatprep.subr.mxu0 0.0
    %4352 = vmatpush1.msra.mxu0 %v4315
    %4353 = vmatprep.subr.mxu0 0.0
    %4354 = vmatpush1.msra.mxu0 0.0
    %4355 = vmatprep.subr.mxu0 0.0
    %4356 = vmatpush1.msra.mxu0 0.0
    %4357 = vmatprep.subr.mxu0 0.0
    %4358 = vmatpush1.msra.mxu0 0.0
    %4359 = vmatprep.subr.mxu0 0.0
    %4360 = vmatpush1.msra.mxu0 0.0
    %4361 = vmatprep.subr.mxu0 0.0
    %4362 = vmatpush1.msra.mxu0 0.0
    %4363 = vmatprep.subr.mxu0 0.0
    %4364 = vmatpush1.msra.mxu0 0.0
    %4365 = vmatprep.subr.mxu0 0.0
    %4366 = vmatpush1.msra.mxu0 0.0
    %4367 = vmatprep.subr.mxu0 0.0
    %4368 = vmatpush1.msra.mxu0 0.0
    %4369 = vmatprep.subr.mxu0 0.0
    %4370 = vmatpush1.msra.mxu0 0.0
    %4371 = vmatprep.subr.mxu0 0.0
    %4372 = vmatpush1.msra.mxu0 0.0
    %4373 = vmatprep.subr.mxu0 0.0
    %4374 = vmatpush1.msra.mxu0 0.0
    %4375 = vmatprep.subr.mxu0 0.0
    %4376 = vmatpush1.msra.mxu0 0.0
    %4377 = vmatprep.subr.mxu0 0.0
    %4378 = vmatpush1.msra.mxu0 0.0
    %4379 = vmatprep.subr.mxu0 0.0
    %4380 = vmatpush1.msra.mxu0 0.0
    %4381 = vmatprep.subr.mxu0 0.0
    %4382 = vmatpush1.msra.mxu0 0.0
    %4383 = vmatprep.subr.mxu0 0.0
    %4384 = vmatpush1.msra.mxu0 0.0
    %4385 = vmatprep.mubr.f32.mxu0 0.0
    %4386 = vmatmul.mubr.f32.gmra.mrb[0].mxu0 %v4298
    %v4387 = vpop.f32.mrb[0].mxu0
    %v4388 = vadd.f32 %v4320, %v4387
    %v4389 = vpop.f32.mrb[0].mxu0
    %4390 = vdwg.mxu0
    %v4391 = vadd.f32 %v4214, %v4388
    %v4392 = vld [vmem:[%s6 + $0xa] sm:$0x1]
    %v4393 = vld [vmem:[%s6 + $0xb] sm:$0x1]
    %v4394 = vsel %vm141, %v4391, 0.0
    %4395 = vadd.xlane.f32.xlu0 %v4394
    %v4396 = vpop.xlane.xlu0 %4395
    %v4397 = vmul.f32 %v4396, %v2053
    %v4398 = vsub.f32 %v4391, %v4397
    %v4399 = vmul.f32 %v4398, %v4398
    %v4400 = vsel %vm141, %v4399, 0.0
    %4401 = vadd.xlane.f32.xlu0 %v4400
    %v4402 = vpop.xlane.xlu0 %4401
    %v4403 = vmul.f32 %v4402, %v2053
    %v4404 = vadd.f32 %v4403, 1e-05
    %v4405 = vrsqrt.pop %v4404
    %v4406 = vmul.f32 %v4398, %v4405
    %v4407 = vlaneseq
    %v4408 = vshrl.u32 %v4407, 7
    %v4409 = vsub.s32 0, %v4408
    %v4410 = vrot.slane %v4392, %v4409
    %v4411 = vmul.f32 %v4406, %v4410
    %v4412 = vlaneseq
    %v4413 = vshrl.u32 %v4412, 7
    %v4414 = vsub.s32 0, %v4413
    %v4415 = vrot.slane %v4393, %v4414
    %v4416 = vadd.f32 %v4411, %v4415
    %v4417 = vld [vmem:[%s10] sm:$0xff]
    %v4418 = vld [vmem:[%s10 + $0x8] sm:$0xff]
    %v4419 = vld [vmem:[%s10 + $0x10] sm:$0xff]
    %v4420 = vld [vmem:[%s10 + $0x18] sm:$0xff]
    %v4421 = vld [vmem:[%s11] sm:$0x1]
    %v4423 = vlaneseq
    %v4424 = vshrl.u32 %v4423, 7
    %v4425 = vsub.s32 0, %v4424
    %v4426 = vrot.slane %v4421, %v4425
    %v4429 = vsel %vm141, %v4416, 0
    %4431 = vmatprep.subr.mxu0 0.0
    %4432 = vmatpush1.msra.mxu0 %v4417
    %4433 = vmatprep.subr.mxu0 0.0
    %4434 = vmatpush1.msra.mxu0 %v4418
    %4435 = vmatprep.subr.mxu0 0.0
    %4436 = vmatpush1.msra.mxu0 %v4419
    %4437 = vmatprep.subr.mxu0 0.0
    %4438 = vmatpush1.msra.mxu0 %v4420
    %4439 = vmatprep.subr.mxu0 0.0
    %4440 = vmatpush1.msra.mxu0 0.0
    %4441 = vmatprep.subr.mxu0 0.0
    %4442 = vmatpush1.msra.mxu0 0.0
    %4443 = vmatprep.subr.mxu0 0.0
    %4444 = vmatpush1.msra.mxu0 0.0
    %4445 = vmatprep.subr.mxu0 0.0
    %4446 = vmatpush1.msra.mxu0 0.0
    %4447 = vmatprep.subr.mxu0 0.0
    %4448 = vmatpush1.msra.mxu0 0.0
    %4449 = vmatprep.subr.mxu0 0.0
    %4450 = vmatpush1.msra.mxu0 0.0
    %4451 = vmatprep.subr.mxu0 0.0
    %4452 = vmatpush1.msra.mxu0 0.0
    %4453 = vmatprep.subr.mxu0 0.0
    %4454 = vmatpush1.msra.mxu0 0.0
    %4455 = vmatprep.subr.mxu0 0.0
    %4456 = vmatpush1.msra.mxu0 0.0
    %4457 = vmatprep.subr.mxu0 0.0
    %4458 = vmatpush1.msra.mxu0 0.0
    %4459 = vmatprep.subr.mxu0 0.0
    %4460 = vmatpush1.msra.mxu0 0.0
    %4461 = vmatprep.subr.mxu0 0.0
    %4462 = vmatpush1.msra.mxu0 0.0
    %4463 = vmatprep.subr.mxu0 0.0
    %4464 = vmatpush1.msra.mxu0 0.0
    %4465 = vmatprep.subr.mxu0 0.0
    %4466 = vmatpush1.msra.mxu0 0.0
    %4467 = vmatprep.subr.mxu0 0.0
    %4468 = vmatpush1.msra.mxu0 0.0
    %4469 = vmatprep.subr.mxu0 0.0
    %4470 = vmatpush1.msra.mxu0 0.0
    %4471 = vmatprep.subr.mxu0 0.0
    %4472 = vmatpush1.msra.mxu0 0.0
    %4473 = vmatprep.subr.mxu0 0.0
    %4474 = vmatpush1.msra.mxu0 0.0
    %4475 = vmatprep.subr.mxu0 0.0
    %4476 = vmatpush1.msra.mxu0 0.0
    %4477 = vmatprep.subr.mxu0 0.0
    %4478 = vmatpush1.msra.mxu0 0.0
    %4479 = vmatprep.subr.mxu0 0.0
    %4480 = vmatpush1.msra.mxu0 0.0
    %4481 = vmatprep.subr.mxu0 0.0
    %4482 = vmatpush1.msra.mxu0 0.0
    %4483 = vmatprep.subr.mxu0 0.0
    %4484 = vmatpush1.msra.mxu0 0.0
    %4485 = vmatprep.subr.mxu0 0.0
    %4486 = vmatpush1.msra.mxu0 0.0
    %4487 = vmatprep.subr.mxu0 0.0
    %4488 = vmatpush1.msra.mxu0 0.0
    %4489 = vmatprep.subr.mxu0 0.0
    %4490 = vmatpush1.msra.mxu0 0.0
    %4491 = vmatprep.subr.mxu0 0.0
    %4492 = vmatpush1.msra.mxu0 0.0
    %4493 = vmatprep.subr.mxu0 0.0
    %4494 = vmatpush1.msra.mxu0 0.0
    %4495 = vmatprep.mubr.f32.mxu0 0.0
    %4496 = vmatmul.mubr.f32.gmra.mrb[0].mxu0 %v4429
    %v4497 = vpop.f32.mrb[0].mxu0
    %v4498 = vadd.f32 %v4426, %v4497
    %v4499 = vpop.f32.mrb[0].mxu0
    %4500 = vdwg.mxu0
    %4501 = vst [vmem:[#allocation2] sm:$0xff] %v4498
    // Predicated region
    $region50: #{tpu_custom_call.1} parent=1 // pred_check
      _
    $region51: #{tpu_custom_call.1} parent=1 // pred_check_branch
      %4503 = sbr.rel (0) target = $region53
    $region52: #{tpu_custom_call.1} parent=1 // pred_region
      %s4505 = ssub.s32 128, 128
      %4506 = vsyncadd [#allocation3], %s4505
      %s4508 = sshll.u32 [#allocation2], 4
      %s4509 = int_to_ptr.vmem [resolvable:$true] %s4508
      %4511 = dma.vmem_to_hbm [thread:$0]  %s4509, 128, %s12, [#allocation3]
    $region53: #{tpu_custom_call.1} parent=1 // pred_fallthru
      _
    // Predicated region
    $region54: #{tpu_custom_call.1} parent=1 // pred_check
      _
    $region55: #{tpu_custom_call.1} parent=1 // pred_check_branch
      %4513 = sbr.rel (0) target = $region57
    $region56: #{tpu_custom_call.1} parent=1 // pred_region
      %4514 = dma.done [#allocation3], 128
    $region57: #{tpu_custom_call.1} parent=1 // pred_fallthru
      _
    %4515 = vsyncpa [#allocation3], 1

</llo_original>
